<compile_context>
chip_gen: v5e
topology: v5e:2x2
jax: 0.10.0
libtpu: 0.0.40
codegen_flags: <defaults>
</compile_context>

<pallas_src>
import functools

import jax
import jax.numpy as jnp
from jax import lax
from jax.experimental import pallas as pl
from jax.experimental.pallas import tpu as pltpu

# ----------------------------------------------------------------------------
# Static model dimensions (img_dim=16 variant of MNIST_Model)
# ----------------------------------------------------------------------------
IMG = 16
KS = 3
C1, C2 = 32, 16
H1 = IMG - KS + 1            # 14  (conv1: 3x3, stride 1, valid)
H2 = (H1 - KS) // 2 + 1      # 6   (conv2: 3x3, stride 2, valid)
N_FC3, N_FC4, N_OUT = 200, 30, 10
FLAT = C2 * H2 * H2          # 576 (NCHW flatten size)
NTAP = KS * KS               # 9
NPOS = H2 * H2               # 36 conv2 output positions
OUT_PAD = 128                # lane-dense output width (sliced to 10 in wrapper)
BN_EPS = 1e-5
BATCH_TILE = 8               # images per grid step (batch padded to a multiple)


# ----------------------------------------------------------------------------
# The fused Pallas kernel (one batch tile per grid step, all matmuls on MXU)
# ----------------------------------------------------------------------------
def _fused_mnist_kernel(p1_ref, w1_ref, w2_ref, w3_ref, w4_ref, w5_ref, sh_ref,
                        out_ref, *, tb):
    f32, bf16 = jnp.float32, jnp.bfloat16
    np_rows = NPOS * tb                      # conv2-output rows per tap slice

    sh = sh_ref[...]
    sh1 = sh[0:1, 0:C1]
    sh2 = sh[1:2, 0:C2]
    sh3 = sh[2:3, 0:N_FC3]
    sh4 = sh[3:4, 0:N_FC4]

    # conv1 (+BN1, ReLU) fused with the conv2 tap accumulation: per tap t,
    # the p1 rows are exactly the conv1 positions that tap samples (stride-2
    # gather was done for free at im2col time), so conv2 = sum_t h1_t @ w2_t.
    acc2 = jnp.zeros((np_rows, C2), f32)
    for t in range(NTAP):
        p_t = p1_ref[t * np_rows:(t + 1) * np_rows, :]             # [NP,16] bf16
        h1_t = jnp.dot(p_t, w1_ref[...], preferred_element_type=f32)
        h1_t = jnp.maximum(h1_t + sh1, 0.0).astype(bf16)           # [NP,32]
        acc2 = acc2 + jnp.dot(h1_t, w2_ref[t * C1:(t + 1) * C1, :],
                              preferred_element_type=f32)          # [NP,16]
    h2 = jnp.maximum(acc2 + sh2, 0.0)        # f32 [NP,16]; row = s*tb + b_local

    # flatten + fc3 (+BN3, ReLU): sum of 36 per-position matmuls on contiguous
    # sublane-aligned slices (NCHW-flatten permutation baked into w3 packing).
    acc3 = jnp.zeros((tb, N_FC3), f32)
    for s in range(NPOS):
        h2_s = h2[s * tb:(s + 1) * tb, :].astype(bf16)              # [tb,16]
        acc3 = acc3 + jnp.dot(h2_s, w3_ref[s * C2:(s + 1) * C2, :],
                              preferred_element_type=f32)
    h3 = jnp.maximum(acc3 + sh3, 0.0).astype(bf16)                  # [tb,200]

    # fc4 (+BN4) + ReLU
    h4 = jnp.dot(h3, w4_ref[...], preferred_element_type=f32)
    h4 = jnp.maximum(h4 + sh4, 0.0).astype(bf16)                    # [tb,30]

    # output layer (no BN, no activation), lane-dense [tb,128] store
    out_ref[...] = jnp.dot(h4, w5_ref[...], preferred_element_type=f32)


# ----------------------------------------------------------------------------
# Wrapper: tap-ordered conv1 im2col + the single gridded pallas_call
# ----------------------------------------------------------------------------
def _conv1_patches_tapped(x_img, tb):
    """x_img: [B, IMG, IMG].  Returns ([NB*9*36*tb, 16] bf16 patches, B_pad).

    Row layout (within a batch tile): (tap t = ki*3+kj, conv2 position s = h*6+w,
    image b_local); columns 0..8 hold the 3x3 conv1 patch at conv1 position
    (2h+ki, 2w+kj) in raster (ka*3+kb) order, columns 9..15 are zero padding.
    """
    b = x_img.shape[0]
    b_pad = ((b + tb - 1) // tb) * tb
    if b_pad != b:
        x_img = jnp.pad(x_img, ((0, b_pad - b), (0, 0), (0, 0)))
    nb = b_pad // tb

    blocks = []
    for ki in range(KS):
        for kj in range(KS):
            taps = [x_img[:, ki + ka:ki + ka + 2 * H2 - 1:2,
                              kj + kb:kj + kb + 2 * H2 - 1:2]
                    for ka in range(KS) for kb in range(KS)]        # 9 x [B,6,6]
            blk = jnp.stack(taps, axis=-1).reshape(b_pad, NPOS, NTAP)
            blocks.append(blk)
    p = jnp.stack(blocks, axis=0)                                   # [9,B,36,9]
    p = jnp.pad(p, ((0, 0), (0, 0), (0, 0), (0, 16 - NTAP)))        # [9,B,36,16]
    p = p.reshape(NTAP, nb, tb, NPOS, 16)
    p = jnp.transpose(p, (1, 0, 3, 2, 4))                           # [nb,9,36,tb,16]
    return p.reshape(nb * NTAP * NPOS * tb, 16).astype(jnp.bfloat16), b_pad


@jax.jit
def mnist_forward(x_nchw, kp):
    """MNIST_Model.forward (eval mode) as one fused, batch-tiled Pallas kernel."""
    b = x_nchw.shape[0]
    tb = BATCH_TILE
    p1, b_pad = _conv1_patches_tapped(x_nchw[:, 0], tb)
    nb = b_pad // tb
    tile_rows = NTAP * NPOS * tb

    out = pl.pallas_call(
        functools.partial(_fused_mnist_kernel, tb=tb),
        out_shape=jax.ShapeDtypeStruct((b_pad, OUT_PAD), jnp.float32),
        grid=(nb,),
        in_specs=[
            pl.BlockSpec((tile_rows, 16), lambda i: (i, 0)),        # patches
            pl.BlockSpec((16, C1), lambda i: (0, 0)),               # w1
            pl.BlockSpec((NTAP * C1, C2), lambda i: (0, 0)),        # w2 (tap-major)
            pl.BlockSpec((FLAT, N_FC3), lambda i: (0, 0)),          # w3 (perm baked)
            pl.BlockSpec((N_FC3, N_FC4), lambda i: (0, 0)),         # w4
            pl.BlockSpec((N_FC4, OUT_PAD), lambda i: (0, 0)),       # w5 (lane-padded)
            pl.BlockSpec((4, 256), lambda i: (0, 0)),               # BN shifts
        ],
        out_specs=pl.BlockSpec((tb, OUT_PAD), lambda i: (i, 0)),
        compiler_params=pltpu.CompilerParams(
            dimension_semantics=("parallel",)),
    )(p1, kp["w1"], kp["w2"], kp["w3"], kp["w4"], kp["w5"], kp["shifts"])
    return out[:b, :N_OUT]


# ----------------------------------------------------------------------------
# Parameters (PyTorch layout) + batch-independent packing into kernel operands
# ----------------------------------------------------------------------------
def init_params(key):
    """Parameters in PyTorch layout; BN at nn.BatchNorm defaults (eval mode)."""
    ks = jax.random.split(key, 5)

    def kaiming_uniform(k, shape, fan_in):
        bound = (6.0 / fan_in) ** 0.5      # torch kaiming_uniform_ (a=0) bound
        return jax.random.uniform(k, shape, jnp.float32, -bound, bound)

    p = {
        "w1": kaiming_uniform(ks[0], (C1, 1, KS, KS), 1 * KS * KS),
        "w2": kaiming_uniform(ks[1], (C2, C1, KS, KS), C1 * KS * KS),
        "w3": kaiming_uniform(ks[2], (N_FC3, FLAT), FLAT),
        "w4": kaiming_uniform(ks[3], (N_FC4, N_FC3), N_FC3),
        "w5": kaiming_uniform(ks[4], (N_OUT, N_FC4), N_FC4),
    }
    for name, n in (("bn1", C1), ("bn2", C2), ("bn3", N_FC3), ("bn4", N_FC4)):
        p[name] = {"gamma": jnp.ones((n,), jnp.float32),
                   "beta": jnp.zeros((n,), jnp.float32),
                   "mean": jnp.zeros((n,), jnp.float32),
                   "var": jnp.ones((n,), jnp.float32)}
    return p


def _bn_scale_shift(bn):
    scale = bn["gamma"] / jnp.sqrt(bn["var"] + BN_EPS)
    return scale, bn["beta"] - bn["mean"] * scale


def pack_params(p):
    """Fold eval-mode BN into weight columns, bake the NCHW-flatten permutation
    into fc3, pad minor dims, cast to bf16.  Batch-size independent."""
    s1, sh1 = _bn_scale_shift(p["bn1"])
    s2, sh2 = _bn_scale_shift(p["bn2"])
    s3, sh3 = _bn_scale_shift(p["bn3"])
    s4, sh4 = _bn_scale_shift(p["bn4"])
    bf16 = jnp.bfloat16

    # conv1: [Cout,1,kh,kw] -> [kh*kw, Cout] (rows padded 9->16), BN1 folded.
    w1 = jnp.transpose(p["w1"][:, 0], (1, 2, 0)).reshape(NTAP, C1) * s1[None, :]
    w1 = jnp.pad(w1, ((0, 16 - NTAP), (0, 0)))
    # conv2: [Cout,Cin,kh,kw] -> [ntap*Cin, Cout] (tap-major rows), BN2 folded.
    w2 = (jnp.transpose(p["w2"], (2, 3, 1, 0)) * s2).reshape(NTAP * C1, C2)
    # fc3: rows reordered from PyTorch NCHW flatten (c,h,w) to kernel order (h,w,c).
    w3 = jnp.transpose(p["w3"].reshape(N_FC3, C2, H2, H2), (2, 3, 1, 0)).reshape(FLAT, N_FC3)
    w3 = w3 * s3[None, :]
    w4 = p["w4"].T * s4[None, :]
    w5 = jnp.pad(p["w5"].T, ((0, 0), (0, OUT_PAD - N_OUT)))        # lane-dense out

    shifts = jnp.zeros((4, 256), jnp.float32)
    shifts = shifts.at[0, :C1].set(sh1).at[1, :C2].set(sh2)
    shifts = shifts.at[2, :N_FC3].set(sh3).at[3, :N_FC4].set(sh4)

    return {"w1": w1.astype(bf16), "w2": w2.astype(bf16), "w3": w3.astype(bf16),
            "w4": w4.astype(bf16), "w5": w5.astype(bf16), "shifts": shifts}


# ----------------------------------------------------------------------------
# Pure-XLA f32 reference (mirrors MNIST_Model.forward in eval mode)
# ----------------------------------------------------------------------------
@jax.jit
def reference_forward(x, p):
    def conv(h, w, stride):
        return lax.conv_general_dilated(h, w, (stride, stride), "VALID",
                                        dimension_numbers=("NCHW", "OIHW", "NCHW"))

    def bn(h, bnp, caxis):
        scale = bnp["gamma"] / jnp.sqrt(bnp["var"] + BN_EPS)
        shift = bnp["beta"] - bnp["mean"] * scale
        shp = [1] * h.ndim
        shp[caxis] = -1
        return h * scale.reshape(shp) + shift.reshape(shp)

    h = jnp.maximum(bn(conv(x, p["w1"], 1), p["bn1"], 1), 0.0)
    h = jnp.maximum(bn(conv(h, p["w2"], 2), p["bn2"], 1), 0.0)
    h = h.reshape(x.shape[0], -1)                       # NCHW flatten
    h = jnp.maximum(bn(h @ p["w3"].T, p["bn3"], 1), 0.0)
    h = jnp.maximum(bn(h @ p["w4"].T, p["bn4"], 1), 0.0)
    return h @ p["w5"].T


if __name__ == "__main__":
    key = jax.random.PRNGKey(0)
    kx, kp = jax.random.split(key)

    B = 2
    x = jax.random.normal(kx, (B, 1, IMG, IMG), jnp.float32)
    params = init_params(kp)
    kernel_params = pack_params(params)

    logits = mnist_forward(x, kernel_params)
    jax.block_until_ready(logits)
    assert logits.shape == (B, N_OUT) and logits.dtype == jnp.float32

    ref = reference_forward(x, params)
    rel = float(jnp.linalg.norm(logits - ref) / (jnp.linalg.norm(ref) + 1e-6))
    assert rel < 0.03, f"kernel/reference mismatch: rel_err={rel:.4f}"
    print("KERNEL_OK")
</pallas_src>

<mosaic_0001>
module attributes {stable_mosaic.version = 11 : i64} {
  func.func @_fused_mnist_kernel(%arg0: i32, %arg1: memref<2592x16xbf16, #tpu.memory_space<vmem>>, %arg2: memref<16x32xbf16, #tpu.memory_space<vmem>>, %arg3: memref<288x16xbf16, #tpu.memory_space<vmem>>, %arg4: memref<576x200xbf16, #tpu.memory_space<vmem>>, %arg5: memref<200x30xbf16, #tpu.memory_space<vmem>>, %arg6: memref<30x128xbf16, #tpu.memory_space<vmem>>, %arg7: memref<4x256xf32, #tpu.memory_space<vmem>>, %arg8: memref<8x128xf32, #tpu.memory_space<vmem>>) attributes {dimension_semantics = [#tpu.dimension_semantics<parallel>], iteration_bounds = array<i64: 1>, scalar_prefetch = 0 : i64, scratch_operands = 0 : i64, tpu.core_type = #tpu.core_type<tc>, window_params = [{transform_indices = @transform_0, window_bounds = array<i64: 2592, 16>}, {pipeline_mode = #tpu.pipeline_mode<synchronous>, transform_indices = @transform_1, window_bounds = array<i64: 16, 32>}, {pipeline_mode = #tpu.pipeline_mode<synchronous>, transform_indices = @transform_2, window_bounds = array<i64: 288, 16>}, {pipeline_mode = #tpu.pipeline_mode<synchronous>, transform_indices = @transform_3, window_bounds = array<i64: 576, 200>}, {pipeline_mode = #tpu.pipeline_mode<synchronous>, transform_indices = @transform_4, window_bounds = array<i64: 200, 30>}, {pipeline_mode = #tpu.pipeline_mode<synchronous>, transform_indices = @transform_5, window_bounds = array<i64: 30, 128>}, {pipeline_mode = #tpu.pipeline_mode<synchronous>, transform_indices = @transform_6, window_bounds = array<i64: 4, 256>}, {transform_indices = @transform_7, window_bounds = array<i64: 8, 128>}]} {
    %c0 = arith.constant 0 : index
    %c0_0 = arith.constant 0 : index
    %0 = vector.load %arg7[%c0, %c0_0] : memref<4x256xf32, #tpu.memory_space<vmem>>, vector<4x256xf32>
    %1 = vector.extract_strided_slice %0 {offsets = [0, 0], sizes = [1, 32], strides = [1, 1]} : vector<4x256xf32> to vector<1x32xf32>
    %2 = vector.extract_strided_slice %0 {offsets = [1, 0], sizes = [1, 16], strides = [1, 1]} : vector<4x256xf32> to vector<1x16xf32>
    %3 = vector.extract_strided_slice %0 {offsets = [2, 0], sizes = [1, 200], strides = [1, 1]} : vector<4x256xf32> to vector<1x200xf32>
    %4 = vector.extract_strided_slice %0 {offsets = [3, 0], sizes = [1, 30], strides = [1, 1]} : vector<4x256xf32> to vector<1x30xf32>
    %cst = arith.constant 0.000000e+00 : f32
    %5 = vector.broadcast %cst : f32 to vector<288x16xf32>
    %c0_1 = arith.constant 0 : index
    %c0_2 = arith.constant 0 : index
    %6 = vector.load %arg1[%c0_1, %c0_2] : memref<2592x16xbf16, #tpu.memory_space<vmem>>, vector<288x16xbf16>
    %c0_3 = arith.constant 0 : index
    %c0_4 = arith.constant 0 : index
    %7 = vector.load %arg2[%c0_3, %c0_4] : memref<16x32xbf16, #tpu.memory_space<vmem>>, vector<16x32xbf16>
    %cst_5 = arith.constant dense<0.000000e+00> : vector<288x32xf32>
    %8 = tpu.matmul %6, %7, %cst_5 {dimension_numbers = #tpu.dot_dimension_numbers<[1], [0], [0], [1], [0, 0, 1, 1], [], []>} : vector<288x16xbf16>, vector<16x32xbf16>, vector<288x32xf32> -> vector<288x32xf32>
    %9 = vector.broadcast %1 : vector<1x32xf32> to vector<288x32xf32>
    %10 = arith.addf %8, %9 : vector<288x32xf32>
    %cst_6 = arith.constant 0.000000e+00 : f32
    %11 = vector.broadcast %cst_6 : f32 to vector<288x32xf32>
    %12 = arith.maximumf %10, %11 : vector<288x32xf32>
    %13 = arith.truncf %12 : vector<288x32xf32> to vector<288x32xbf16>
    %c0_7 = arith.constant 0 : index
    %c0_8 = arith.constant 0 : index
    %14 = vector.load %arg3[%c0_7, %c0_8] : memref<288x16xbf16, #tpu.memory_space<vmem>>, vector<32x16xbf16>
    %cst_9 = arith.constant dense<0.000000e+00> : vector<288x16xf32>
    %15 = tpu.matmul %13, %14, %cst_9 {dimension_numbers = #tpu.dot_dimension_numbers<[1], [0], [0], [1], [0, 0, 1, 1], [], []>} : vector<288x32xbf16>, vector<32x16xbf16>, vector<288x16xf32> -> vector<288x16xf32>
    %16 = arith.addf %5, %15 : vector<288x16xf32>
    %c288 = arith.constant 288 : index
    %c0_10 = arith.constant 0 : index
    %17 = vector.load %arg1[%c288, %c0_10] : memref<2592x16xbf16, #tpu.memory_space<vmem>>, vector<288x16xbf16>
    %c0_11 = arith.constant 0 : index
    %c0_12 = arith.constant 0 : index
    %18 = vector.load %arg2[%c0_11, %c0_12] : memref<16x32xbf16, #tpu.memory_space<vmem>>, vector<16x32xbf16>
    %cst_13 = arith.constant dense<0.000000e+00> : vector<288x32xf32>
    %19 = tpu.matmul %17, %18, %cst_13 {dimension_numbers = #tpu.dot_dimension_numbers<[1], [0], [0], [1], [0, 0, 1, 1], [], []>} : vector<288x16xbf16>, vector<16x32xbf16>, vector<288x32xf32> -> vector<288x32xf32>
    %20 = vector.broadcast %1 : vector<1x32xf32> to vector<288x32xf32>
    %21 = arith.addf %19, %20 : vector<288x32xf32>
    %cst_14 = arith.constant 0.000000e+00 : f32
    %22 = vector.broadcast %cst_14 : f32 to vector<288x32xf32>
    %23 = arith.maximumf %21, %22 : vector<288x32xf32>
    %24 = arith.truncf %23 : vector<288x32xf32> to vector<288x32xbf16>
    %c32 = arith.constant 32 : index
    %c0_15 = arith.constant 0 : index
    %25 = vector.load %arg3[%c32, %c0_15] : memref<288x16xbf16, #tpu.memory_space<vmem>>, vector<32x16xbf16>
    %cst_16 = arith.constant dense<0.000000e+00> : vector<288x16xf32>
    %26 = tpu.matmul %24, %25, %cst_16 {dimension_numbers = #tpu.dot_dimension_numbers<[1], [0], [0], [1], [0, 0, 1, 1], [], []>} : vector<288x32xbf16>, vector<32x16xbf16>, vector<288x16xf32> -> vector<288x16xf32>
    %27 = arith.addf %16, %26 : vector<288x16xf32>
    %c576 = arith.constant 576 : index
    %c0_17 = arith.constant 0 : index
    %28 = vector.load %arg1[%c576, %c0_17] : memref<2592x16xbf16, #tpu.memory_space<vmem>>, vector<288x16xbf16>
    %c0_18 = arith.constant 0 : index
    %c0_19 = arith.constant 0 : index
    %29 = vector.load %arg2[%c0_18, %c0_19] : memref<16x32xbf16, #tpu.memory_space<vmem>>, vector<16x32xbf16>
    %cst_20 = arith.constant dense<0.000000e+00> : vector<288x32xf32>
    %30 = tpu.matmul %28, %29, %cst_20 {dimension_numbers = #tpu.dot_dimension_numbers<[1], [0], [0], [1], [0, 0, 1, 1], [], []>} : vector<288x16xbf16>, vector<16x32xbf16>, vector<288x32xf32> -> vector<288x32xf32>
    %31 = vector.broadcast %1 : vector<1x32xf32> to vector<288x32xf32>
    %32 = arith.addf %30, %31 : vector<288x32xf32>
    %cst_21 = arith.constant 0.000000e+00 : f32
    %33 = vector.broadcast %cst_21 : f32 to vector<288x32xf32>
    %34 = arith.maximumf %32, %33 : vector<288x32xf32>
    %35 = arith.truncf %34 : vector<288x32xf32> to vector<288x32xbf16>
    %c64 = arith.constant 64 : index
    %c0_22 = arith.constant 0 : index
    %36 = vector.load %arg3[%c64, %c0_22] : memref<288x16xbf16, #tpu.memory_space<vmem>>, vector<32x16xbf16>
    %cst_23 = arith.constant dense<0.000000e+00> : vector<288x16xf32>
    %37 = tpu.matmul %35, %36, %cst_23 {dimension_numbers = #tpu.dot_dimension_numbers<[1], [0], [0], [1], [0, 0, 1, 1], [], []>} : vector<288x32xbf16>, vector<32x16xbf16>, vector<288x16xf32> -> vector<288x16xf32>
    %38 = arith.addf %27, %37 : vector<288x16xf32>
    %c864 = arith.constant 864 : index
    %c0_24 = arith.constant 0 : index
    %39 = vector.load %arg1[%c864, %c0_24] : memref<2592x16xbf16, #tpu.memory_space<vmem>>, vector<288x16xbf16>
    %c0_25 = arith.constant 0 : index
    %c0_26 = arith.constant 0 : index
    %40 = vector.load %arg2[%c0_25, %c0_26] : memref<16x32xbf16, #tpu.memory_space<vmem>>, vector<16x32xbf16>
    %cst_27 = arith.constant dense<0.000000e+00> : vector<288x32xf32>
    %41 = tpu.matmul %39, %40, %cst_27 {dimension_numbers = #tpu.dot_dimension_numbers<[1], [0], [0], [1], [0, 0, 1, 1], [], []>} : vector<288x16xbf16>, vector<16x32xbf16>, vector<288x32xf32> -> vector<288x32xf32>
    %42 = vector.broadcast %1 : vector<1x32xf32> to vector<288x32xf32>
    %43 = arith.addf %41, %42 : vector<288x32xf32>
    %cst_28 = arith.constant 0.000000e+00 : f32
    %44 = vector.broadcast %cst_28 : f32 to vector<288x32xf32>
    %45 = arith.maximumf %43, %44 : vector<288x32xf32>
    %46 = arith.truncf %45 : vector<288x32xf32> to vector<288x32xbf16>
    %c96 = arith.constant 96 : index
    %c0_29 = arith.constant 0 : index
    %47 = vector.load %arg3[%c96, %c0_29] : memref<288x16xbf16, #tpu.memory_space<vmem>>, vector<32x16xbf16>
    %cst_30 = arith.constant dense<0.000000e+00> : vector<288x16xf32>
    %48 = tpu.matmul %46, %47, %cst_30 {dimension_numbers = #tpu.dot_dimension_numbers<[1], [0], [0], [1], [0, 0, 1, 1], [], []>} : vector<288x32xbf16>, vector<32x16xbf16>, vector<288x16xf32> -> vector<288x16xf32>
    %49 = arith.addf %38, %48 : vector<288x16xf32>
    %c1152 = arith.constant 1152 : index
    %c0_31 = arith.constant 0 : index
    %50 = vector.load %arg1[%c1152, %c0_31] : memref<2592x16xbf16, #tpu.memory_space<vmem>>, vector<288x16xbf16>
    %c0_32 = arith.constant 0 : index
    %c0_33 = arith.constant 0 : index
    %51 = vector.load %arg2[%c0_32, %c0_33] : memref<16x32xbf16, #tpu.memory_space<vmem>>, vector<16x32xbf16>
    %cst_34 = arith.constant dense<0.000000e+00> : vector<288x32xf32>
    %52 = tpu.matmul %50, %51, %cst_34 {dimension_numbers = #tpu.dot_dimension_numbers<[1], [0], [0], [1], [0, 0, 1, 1], [], []>} : vector<288x16xbf16>, vector<16x32xbf16>, vector<288x32xf32> -> vector<288x32xf32>
    %53 = vector.broadcast %1 : vector<1x32xf32> to vector<288x32xf32>
    %54 = arith.addf %52, %53 : vector<288x32xf32>
    %cst_35 = arith.constant 0.000000e+00 : f32
    %55 = vector.broadcast %cst_35 : f32 to vector<288x32xf32>
    %56 = arith.maximumf %54, %55 : vector<288x32xf32>
    %57 = arith.truncf %56 : vector<288x32xf32> to vector<288x32xbf16>
    %c128 = arith.constant 128 : index
    %c0_36 = arith.constant 0 : index
    %58 = vector.load %arg3[%c128, %c0_36] : memref<288x16xbf16, #tpu.memory_space<vmem>>, vector<32x16xbf16>
    %cst_37 = arith.constant dense<0.000000e+00> : vector<288x16xf32>
    %59 = tpu.matmul %57, %58, %cst_37 {dimension_numbers = #tpu.dot_dimension_numbers<[1], [0], [0], [1], [0, 0, 1, 1], [], []>} : vector<288x32xbf16>, vector<32x16xbf16>, vector<288x16xf32> -> vector<288x16xf32>
    %60 = arith.addf %49, %59 : vector<288x16xf32>
    %c1440 = arith.constant 1440 : index
    %c0_38 = arith.constant 0 : index
    %61 = vector.load %arg1[%c1440, %c0_38] : memref<2592x16xbf16, #tpu.memory_space<vmem>>, vector<288x16xbf16>
    %c0_39 = arith.constant 0 : index
    %c0_40 = arith.constant 0 : index
    %62 = vector.load %arg2[%c0_39, %c0_40] : memref<16x32xbf16, #tpu.memory_space<vmem>>, vector<16x32xbf16>
    %cst_41 = arith.constant dense<0.000000e+00> : vector<288x32xf32>
    %63 = tpu.matmul %61, %62, %cst_41 {dimension_numbers = #tpu.dot_dimension_numbers<[1], [0], [0], [1], [0, 0, 1, 1], [], []>} : vector<288x16xbf16>, vector<16x32xbf16>, vector<288x32xf32> -> vector<288x32xf32>
    %64 = vector.broadcast %1 : vector<1x32xf32> to vector<288x32xf32>
    %65 = arith.addf %63, %64 : vector<288x32xf32>
    %cst_42 = arith.constant 0.000000e+00 : f32
    %66 = vector.broadcast %cst_42 : f32 to vector<288x32xf32>
    %67 = arith.maximumf %65, %66 : vector<288x32xf32>
    %68 = arith.truncf %67 : vector<288x32xf32> to vector<288x32xbf16>
    %c160 = arith.constant 160 : index
    %c0_43 = arith.constant 0 : index
    %69 = vector.load %arg3[%c160, %c0_43] : memref<288x16xbf16, #tpu.memory_space<vmem>>, vector<32x16xbf16>
    %cst_44 = arith.constant dense<0.000000e+00> : vector<288x16xf32>
    %70 = tpu.matmul %68, %69, %cst_44 {dimension_numbers = #tpu.dot_dimension_numbers<[1], [0], [0], [1], [0, 0, 1, 1], [], []>} : vector<288x32xbf16>, vector<32x16xbf16>, vector<288x16xf32> -> vector<288x16xf32>
    %71 = arith.addf %60, %70 : vector<288x16xf32>
    %c1728 = arith.constant 1728 : index
    %c0_45 = arith.constant 0 : index
    %72 = vector.load %arg1[%c1728, %c0_45] : memref<2592x16xbf16, #tpu.memory_space<vmem>>, vector<288x16xbf16>
    %c0_46 = arith.constant 0 : index
    %c0_47 = arith.constant 0 : index
    %73 = vector.load %arg2[%c0_46, %c0_47] : memref<16x32xbf16, #tpu.memory_space<vmem>>, vector<16x32xbf16>
    %cst_48 = arith.constant dense<0.000000e+00> : vector<288x32xf32>
    %74 = tpu.matmul %72, %73, %cst_48 {dimension_numbers = #tpu.dot_dimension_numbers<[1], [0], [0], [1], [0, 0, 1, 1], [], []>} : vector<288x16xbf16>, vector<16x32xbf16>, vector<288x32xf32> -> vector<288x32xf32>
    %75 = vector.broadcast %1 : vector<1x32xf32> to vector<288x32xf32>
    %76 = arith.addf %74, %75 : vector<288x32xf32>
    %cst_49 = arith.constant 0.000000e+00 : f32
    %77 = vector.broadcast %cst_49 : f32 to vector<288x32xf32>
    %78 = arith.maximumf %76, %77 : vector<288x32xf32>
    %79 = arith.truncf %78 : vector<288x32xf32> to vector<288x32xbf16>
    %c192 = arith.constant 192 : index
    %c0_50 = arith.constant 0 : index
    %80 = vector.load %arg3[%c192, %c0_50] : memref<288x16xbf16, #tpu.memory_space<vmem>>, vector<32x16xbf16>
    %cst_51 = arith.constant dense<0.000000e+00> : vector<288x16xf32>
    %81 = tpu.matmul %79, %80, %cst_51 {dimension_numbers = #tpu.dot_dimension_numbers<[1], [0], [0], [1], [0, 0, 1, 1], [], []>} : vector<288x32xbf16>, vector<32x16xbf16>, vector<288x16xf32> -> vector<288x16xf32>
    %82 = arith.addf %71, %81 : vector<288x16xf32>
    %c2016 = arith.constant 2016 : index
    %c0_52 = arith.constant 0 : index
    %83 = vector.load %arg1[%c2016, %c0_52] : memref<2592x16xbf16, #tpu.memory_space<vmem>>, vector<288x16xbf16>
    %c0_53 = arith.constant 0 : index
    %c0_54 = arith.constant 0 : index
    %84 = vector.load %arg2[%c0_53, %c0_54] : memref<16x32xbf16, #tpu.memory_space<vmem>>, vector<16x32xbf16>
    %cst_55 = arith.constant dense<0.000000e+00> : vector<288x32xf32>
    %85 = tpu.matmul %83, %84, %cst_55 {dimension_numbers = #tpu.dot_dimension_numbers<[1], [0], [0], [1], [0, 0, 1, 1], [], []>} : vector<288x16xbf16>, vector<16x32xbf16>, vector<288x32xf32> -> vector<288x32xf32>
    %86 = vector.broadcast %1 : vector<1x32xf32> to vector<288x32xf32>
    %87 = arith.addf %85, %86 : vector<288x32xf32>
    %cst_56 = arith.constant 0.000000e+00 : f32
    %88 = vector.broadcast %cst_56 : f32 to vector<288x32xf32>
    %89 = arith.maximumf %87, %88 : vector<288x32xf32>
    %90 = arith.truncf %89 : vector<288x32xf32> to vector<288x32xbf16>
    %c224 = arith.constant 224 : index
    %c0_57 = arith.constant 0 : index
    %91 = vector.load %arg3[%c224, %c0_57] : memref<288x16xbf16, #tpu.memory_space<vmem>>, vector<32x16xbf16>
    %cst_58 = arith.constant dense<0.000000e+00> : vector<288x16xf32>
    %92 = tpu.matmul %90, %91, %cst_58 {dimension_numbers = #tpu.dot_dimension_numbers<[1], [0], [0], [1], [0, 0, 1, 1], [], []>} : vector<288x32xbf16>, vector<32x16xbf16>, vector<288x16xf32> -> vector<288x16xf32>
    %93 = arith.addf %82, %92 : vector<288x16xf32>
    %c2304 = arith.constant 2304 : index
    %c0_59 = arith.constant 0 : index
    %94 = vector.load %arg1[%c2304, %c0_59] : memref<2592x16xbf16, #tpu.memory_space<vmem>>, vector<288x16xbf16>
    %c0_60 = arith.constant 0 : index
    %c0_61 = arith.constant 0 : index
    %95 = vector.load %arg2[%c0_60, %c0_61] : memref<16x32xbf16, #tpu.memory_space<vmem>>, vector<16x32xbf16>
    %cst_62 = arith.constant dense<0.000000e+00> : vector<288x32xf32>
    %96 = tpu.matmul %94, %95, %cst_62 {dimension_numbers = #tpu.dot_dimension_numbers<[1], [0], [0], [1], [0, 0, 1, 1], [], []>} : vector<288x16xbf16>, vector<16x32xbf16>, vector<288x32xf32> -> vector<288x32xf32>
    %97 = vector.broadcast %1 : vector<1x32xf32> to vector<288x32xf32>
    %98 = arith.addf %96, %97 : vector<288x32xf32>
    %cst_63 = arith.constant 0.000000e+00 : f32
    %99 = vector.broadcast %cst_63 : f32 to vector<288x32xf32>
    %100 = arith.maximumf %98, %99 : vector<288x32xf32>
    %101 = arith.truncf %100 : vector<288x32xf32> to vector<288x32xbf16>
    %c256 = arith.constant 256 : index
    %c0_64 = arith.constant 0 : index
    %102 = vector.load %arg3[%c256, %c0_64] : memref<288x16xbf16, #tpu.memory_space<vmem>>, vector<32x16xbf16>
    %cst_65 = arith.constant dense<0.000000e+00> : vector<288x16xf32>
    %103 = tpu.matmul %101, %102, %cst_65 {dimension_numbers = #tpu.dot_dimension_numbers<[1], [0], [0], [1], [0, 0, 1, 1], [], []>} : vector<288x32xbf16>, vector<32x16xbf16>, vector<288x16xf32> -> vector<288x16xf32>
    %104 = arith.addf %93, %103 : vector<288x16xf32>
    %105 = vector.broadcast %2 : vector<1x16xf32> to vector<288x16xf32>
    %106 = arith.addf %104, %105 : vector<288x16xf32>
    %cst_66 = arith.constant 0.000000e+00 : f32
    %107 = vector.broadcast %cst_66 : f32 to vector<288x16xf32>
    %108 = arith.maximumf %106, %107 : vector<288x16xf32>
    %cst_67 = arith.constant 0.000000e+00 : f32
    %109 = vector.broadcast %cst_67 : f32 to vector<8x200xf32>
    %110 = vector.extract_strided_slice %108 {offsets = [0, 0], sizes = [8, 16], strides = [1, 1]} : vector<288x16xf32> to vector<8x16xf32>
    %111 = arith.truncf %110 : vector<8x16xf32> to vector<8x16xbf16>
    %c0_68 = arith.constant 0 : index
    %c0_69 = arith.constant 0 : index
    %112 = vector.load %arg4[%c0_68, %c0_69] : memref<576x200xbf16, #tpu.memory_space<vmem>>, vector<16x200xbf16>
    %cst_70 = arith.constant dense<0.000000e+00> : vector<8x200xf32>
    %113 = tpu.matmul %111, %112, %cst_70 {dimension_numbers = #tpu.dot_dimension_numbers<[1], [0], [0], [1], [0, 0, 1, 1], [], []>} : vector<8x16xbf16>, vector<16x200xbf16>, vector<8x200xf32> -> vector<8x200xf32>
    %114 = arith.addf %109, %113 : vector<8x200xf32>
    %115 = vector.extract_strided_slice %108 {offsets = [8, 0], sizes = [8, 16], strides = [1, 1]} : vector<288x16xf32> to vector<8x16xf32>
    %116 = arith.truncf %115 : vector<8x16xf32> to vector<8x16xbf16>
    %c16 = arith.constant 16 : index
    %c0_71 = arith.constant 0 : index
    %117 = vector.load %arg4[%c16, %c0_71] : memref<576x200xbf16, #tpu.memory_space<vmem>>, vector<16x200xbf16>
    %cst_72 = arith.constant dense<0.000000e+00> : vector<8x200xf32>
    %118 = tpu.matmul %116, %117, %cst_72 {dimension_numbers = #tpu.dot_dimension_numbers<[1], [0], [0], [1], [0, 0, 1, 1], [], []>} : vector<8x16xbf16>, vector<16x200xbf16>, vector<8x200xf32> -> vector<8x200xf32>
    %119 = arith.addf %114, %118 : vector<8x200xf32>
    %120 = vector.extract_strided_slice %108 {offsets = [16, 0], sizes = [8, 16], strides = [1, 1]} : vector<288x16xf32> to vector<8x16xf32>
    %121 = arith.truncf %120 : vector<8x16xf32> to vector<8x16xbf16>
    %c32_73 = arith.constant 32 : index
    %c0_74 = arith.constant 0 : index
    %122 = vector.load %arg4[%c32_73, %c0_74] : memref<576x200xbf16, #tpu.memory_space<vmem>>, vector<16x200xbf16>
    %cst_75 = arith.constant dense<0.000000e+00> : vector<8x200xf32>
    %123 = tpu.matmul %121, %122, %cst_75 {dimension_numbers = #tpu.dot_dimension_numbers<[1], [0], [0], [1], [0, 0, 1, 1], [], []>} : vector<8x16xbf16>, vector<16x200xbf16>, vector<8x200xf32> -> vector<8x200xf32>
    %124 = arith.addf %119, %123 : vector<8x200xf32>
    %125 = vector.extract_strided_slice %108 {offsets = [24, 0], sizes = [8, 16], strides = [1, 1]} : vector<288x16xf32> to vector<8x16xf32>
    %126 = arith.truncf %125 : vector<8x16xf32> to vector<8x16xbf16>
    %c48 = arith.constant 48 : index
    %c0_76 = arith.constant 0 : index
    %127 = vector.load %arg4[%c48, %c0_76] : memref<576x200xbf16, #tpu.memory_space<vmem>>, vector<16x200xbf16>
    %cst_77 = arith.constant dense<0.000000e+00> : vector<8x200xf32>
    %128 = tpu.matmul %126, %127, %cst_77 {dimension_numbers = #tpu.dot_dimension_numbers<[1], [0], [0], [1], [0, 0, 1, 1], [], []>} : vector<8x16xbf16>, vector<16x200xbf16>, vector<8x200xf32> -> vector<8x200xf32>
    %129 = arith.addf %124, %128 : vector<8x200xf32>
    %130 = vector.extract_strided_slice %108 {offsets = [32, 0], sizes = [8, 16], strides = [1, 1]} : vector<288x16xf32> to vector<8x16xf32>
    %131 = arith.truncf %130 : vector<8x16xf32> to vector<8x16xbf16>
    %c64_78 = arith.constant 64 : index
    %c0_79 = arith.constant 0 : index
    %132 = vector.load %arg4[%c64_78, %c0_79] : memref<576x200xbf16, #tpu.memory_space<vmem>>, vector<16x200xbf16>
    %cst_80 = arith.constant dense<0.000000e+00> : vector<8x200xf32>
    %133 = tpu.matmul %131, %132, %cst_80 {dimension_numbers = #tpu.dot_dimension_numbers<[1], [0], [0], [1], [0, 0, 1, 1], [], []>} : vector<8x16xbf16>, vector<16x200xbf16>, vector<8x200xf32> -> vector<8x200xf32>
    %134 = arith.addf %129, %133 : vector<8x200xf32>
    %135 = vector.extract_strided_slice %108 {offsets = [40, 0], sizes = [8, 16], strides = [1, 1]} : vector<288x16xf32> to vector<8x16xf32>
    %136 = arith.truncf %135 : vector<8x16xf32> to vector<8x16xbf16>
    %c80 = arith.constant 80 : index
    %c0_81 = arith.constant 0 : index
    %137 = vector.load %arg4[%c80, %c0_81] : memref<576x200xbf16, #tpu.memory_space<vmem>>, vector<16x200xbf16>
    %cst_82 = arith.constant dense<0.000000e+00> : vector<8x200xf32>
    %138 = tpu.matmul %136, %137, %cst_82 {dimension_numbers = #tpu.dot_dimension_numbers<[1], [0], [0], [1], [0, 0, 1, 1], [], []>} : vector<8x16xbf16>, vector<16x200xbf16>, vector<8x200xf32> -> vector<8x200xf32>
    %139 = arith.addf %134, %138 : vector<8x200xf32>
    %140 = vector.extract_strided_slice %108 {offsets = [48, 0], sizes = [8, 16], strides = [1, 1]} : vector<288x16xf32> to vector<8x16xf32>
    %141 = arith.truncf %140 : vector<8x16xf32> to vector<8x16xbf16>
    %c96_83 = arith.constant 96 : index
    %c0_84 = arith.constant 0 : index
    %142 = vector.load %arg4[%c96_83, %c0_84] : memref<576x200xbf16, #tpu.memory_space<vmem>>, vector<16x200xbf16>
    %cst_85 = arith.constant dense<0.000000e+00> : vector<8x200xf32>
    %143 = tpu.matmul %141, %142, %cst_85 {dimension_numbers = #tpu.dot_dimension_numbers<[1], [0], [0], [1], [0, 0, 1, 1], [], []>} : vector<8x16xbf16>, vector<16x200xbf16>, vector<8x200xf32> -> vector<8x200xf32>
    %144 = arith.addf %139, %143 : vector<8x200xf32>
    %145 = vector.extract_strided_slice %108 {offsets = [56, 0], sizes = [8, 16], strides = [1, 1]} : vector<288x16xf32> to vector<8x16xf32>
    %146 = arith.truncf %145 : vector<8x16xf32> to vector<8x16xbf16>
    %c112 = arith.constant 112 : index
    %c0_86 = arith.constant 0 : index
    %147 = vector.load %arg4[%c112, %c0_86] : memref<576x200xbf16, #tpu.memory_space<vmem>>, vector<16x200xbf16>
    %cst_87 = arith.constant dense<0.000000e+00> : vector<8x200xf32>
    %148 = tpu.matmul %146, %147, %cst_87 {dimension_numbers = #tpu.dot_dimension_numbers<[1], [0], [0], [1], [0, 0, 1, 1], [], []>} : vector<8x16xbf16>, vector<16x200xbf16>, vector<8x200xf32> -> vector<8x200xf32>
    %149 = arith.addf %144, %148 : vector<8x200xf32>
    %150 = vector.extract_strided_slice %108 {offsets = [64, 0], sizes = [8, 16], strides = [1, 1]} : vector<288x16xf32> to vector<8x16xf32>
    %151 = arith.truncf %150 : vector<8x16xf32> to vector<8x16xbf16>
    %c128_88 = arith.constant 128 : index
    %c0_89 = arith.constant 0 : index
    %152 = vector.load %arg4[%c128_88, %c0_89] : memref<576x200xbf16, #tpu.memory_space<vmem>>, vector<16x200xbf16>
    %cst_90 = arith.constant dense<0.000000e+00> : vector<8x200xf32>
    %153 = tpu.matmul %151, %152, %cst_90 {dimension_numbers = #tpu.dot_dimension_numbers<[1], [0], [0], [1], [0, 0, 1, 1], [], []>} : vector<8x16xbf16>, vector<16x200xbf16>, vector<8x200xf32> -> vector<8x200xf32>
    %154 = arith.addf %149, %153 : vector<8x200xf32>
    %155 = vector.extract_strided_slice %108 {offsets = [72, 0], sizes = [8, 16], strides = [1, 1]} : vector<288x16xf32> to vector<8x16xf32>
    %156 = arith.truncf %155 : vector<8x16xf32> to vector<8x16xbf16>
    %c144 = arith.constant 144 : index
    %c0_91 = arith.constant 0 : index
    %157 = vector.load %arg4[%c144, %c0_91] : memref<576x200xbf16, #tpu.memory_space<vmem>>, vector<16x200xbf16>
    %cst_92 = arith.constant dense<0.000000e+00> : vector<8x200xf32>
    %158 = tpu.matmul %156, %157, %cst_92 {dimension_numbers = #tpu.dot_dimension_numbers<[1], [0], [0], [1], [0, 0, 1, 1], [], []>} : vector<8x16xbf16>, vector<16x200xbf16>, vector<8x200xf32> -> vector<8x200xf32>
    %159 = arith.addf %154, %158 : vector<8x200xf32>
    %160 = vector.extract_strided_slice %108 {offsets = [80, 0], sizes = [8, 16], strides = [1, 1]} : vector<288x16xf32> to vector<8x16xf32>
    %161 = arith.truncf %160 : vector<8x16xf32> to vector<8x16xbf16>
    %c160_93 = arith.constant 160 : index
    %c0_94 = arith.constant 0 : index
    %162 = vector.load %arg4[%c160_93, %c0_94] : memref<576x200xbf16, #tpu.memory_space<vmem>>, vector<16x200xbf16>
    %cst_95 = arith.constant dense<0.000000e+00> : vector<8x200xf32>
    %163 = tpu.matmul %161, %162, %cst_95 {dimension_numbers = #tpu.dot_dimension_numbers<[1], [0], [0], [1], [0, 0, 1, 1], [], []>} : vector<8x16xbf16>, vector<16x200xbf16>, vector<8x200xf32> -> vector<8x200xf32>
    %164 = arith.addf %159, %163 : vector<8x200xf32>
    %165 = vector.extract_strided_slice %108 {offsets = [88, 0], sizes = [8, 16], strides = [1, 1]} : vector<288x16xf32> to vector<8x16xf32>
    %166 = arith.truncf %165 : vector<8x16xf32> to vector<8x16xbf16>
    %c176 = arith.constant 176 : index
    %c0_96 = arith.constant 0 : index
    %167 = vector.load %arg4[%c176, %c0_96] : memref<576x200xbf16, #tpu.memory_space<vmem>>, vector<16x200xbf16>
    %cst_97 = arith.constant dense<0.000000e+00> : vector<8x200xf32>
    %168 = tpu.matmul %166, %167, %cst_97 {dimension_numbers = #tpu.dot_dimension_numbers<[1], [0], [0], [1], [0, 0, 1, 1], [], []>} : vector<8x16xbf16>, vector<16x200xbf16>, vector<8x200xf32> -> vector<8x200xf32>
    %169 = arith.addf %164, %168 : vector<8x200xf32>
    %170 = vector.extract_strided_slice %108 {offsets = [96, 0], sizes = [8, 16], strides = [1, 1]} : vector<288x16xf32> to vector<8x16xf32>
    %171 = arith.truncf %170 : vector<8x16xf32> to vector<8x16xbf16>
    %c192_98 = arith.constant 192 : index
    %c0_99 = arith.constant 0 : index
    %172 = vector.load %arg4[%c192_98, %c0_99] : memref<576x200xbf16, #tpu.memory_space<vmem>>, vector<16x200xbf16>
    %cst_100 = arith.constant dense<0.000000e+00> : vector<8x200xf32>
    %173 = tpu.matmul %171, %172, %cst_100 {dimension_numbers = #tpu.dot_dimension_numbers<[1], [0], [0], [1], [0, 0, 1, 1], [], []>} : vector<8x16xbf16>, vector<16x200xbf16>, vector<8x200xf32> -> vector<8x200xf32>
    %174 = arith.addf %169, %173 : vector<8x200xf32>
    %175 = vector.extract_strided_slice %108 {offsets = [104, 0], sizes = [8, 16], strides = [1, 1]} : vector<288x16xf32> to vector<8x16xf32>
    %176 = arith.truncf %175 : vector<8x16xf32> to vector<8x16xbf16>
    %c208 = arith.constant 208 : index
    %c0_101 = arith.constant 0 : index
    %177 = vector.load %arg4[%c208, %c0_101] : memref<576x200xbf16, #tpu.memory_space<vmem>>, vector<16x200xbf16>
    %cst_102 = arith.constant dense<0.000000e+00> : vector<8x200xf32>
    %178 = tpu.matmul %176, %177, %cst_102 {dimension_numbers = #tpu.dot_dimension_numbers<[1], [0], [0], [1], [0, 0, 1, 1], [], []>} : vector<8x16xbf16>, vector<16x200xbf16>, vector<8x200xf32> -> vector<8x200xf32>
    %179 = arith.addf %174, %178 : vector<8x200xf32>
    %180 = vector.extract_strided_slice %108 {offsets = [112, 0], sizes = [8, 16], strides = [1, 1]} : vector<288x16xf32> to vector<8x16xf32>
    %181 = arith.truncf %180 : vector<8x16xf32> to vector<8x16xbf16>
    %c224_103 = arith.constant 224 : index
    %c0_104 = arith.constant 0 : index
    %182 = vector.load %arg4[%c224_103, %c0_104] : memref<576x200xbf16, #tpu.memory_space<vmem>>, vector<16x200xbf16>
    %cst_105 = arith.constant dense<0.000000e+00> : vector<8x200xf32>
    %183 = tpu.matmul %181, %182, %cst_105 {dimension_numbers = #tpu.dot_dimension_numbers<[1], [0], [0], [1], [0, 0, 1, 1], [], []>} : vector<8x16xbf16>, vector<16x200xbf16>, vector<8x200xf32> -> vector<8x200xf32>
    %184 = arith.addf %179, %183 : vector<8x200xf32>
    %185 = vector.extract_strided_slice %108 {offsets = [120, 0], sizes = [8, 16], strides = [1, 1]} : vector<288x16xf32> to vector<8x16xf32>
    %186 = arith.truncf %185 : vector<8x16xf32> to vector<8x16xbf16>
    %c240 = arith.constant 240 : index
    %c0_106 = arith.constant 0 : index
    %187 = vector.load %arg4[%c240, %c0_106] : memref<576x200xbf16, #tpu.memory_space<vmem>>, vector<16x200xbf16>
    %cst_107 = arith.constant dense<0.000000e+00> : vector<8x200xf32>
    %188 = tpu.matmul %186, %187, %cst_107 {dimension_numbers = #tpu.dot_dimension_numbers<[1], [0], [0], [1], [0, 0, 1, 1], [], []>} : vector<8x16xbf16>, vector<16x200xbf16>, vector<8x200xf32> -> vector<8x200xf32>
    %189 = arith.addf %184, %188 : vector<8x200xf32>
    %190 = vector.extract_strided_slice %108 {offsets = [128, 0], sizes = [8, 16], strides = [1, 1]} : vector<288x16xf32> to vector<8x16xf32>
    %191 = arith.truncf %190 : vector<8x16xf32> to vector<8x16xbf16>
    %c256_108 = arith.constant 256 : index
    %c0_109 = arith.constant 0 : index
    %192 = vector.load %arg4[%c256_108, %c0_109] : memref<576x200xbf16, #tpu.memory_space<vmem>>, vector<16x200xbf16>
    %cst_110 = arith.constant dense<0.000000e+00> : vector<8x200xf32>
    %193 = tpu.matmul %191, %192, %cst_110 {dimension_numbers = #tpu.dot_dimension_numbers<[1], [0], [0], [1], [0, 0, 1, 1], [], []>} : vector<8x16xbf16>, vector<16x200xbf16>, vector<8x200xf32> -> vector<8x200xf32>
    %194 = arith.addf %189, %193 : vector<8x200xf32>
    %195 = vector.extract_strided_slice %108 {offsets = [136, 0], sizes = [8, 16], strides = [1, 1]} : vector<288x16xf32> to vector<8x16xf32>
    %196 = arith.truncf %195 : vector<8x16xf32> to vector<8x16xbf16>
    %c272 = arith.constant 272 : index
    %c0_111 = arith.constant 0 : index
    %197 = vector.load %arg4[%c272, %c0_111] : memref<576x200xbf16, #tpu.memory_space<vmem>>, vector<16x200xbf16>
    %cst_112 = arith.constant dense<0.000000e+00> : vector<8x200xf32>
    %198 = tpu.matmul %196, %197, %cst_112 {dimension_numbers = #tpu.dot_dimension_numbers<[1], [0], [0], [1], [0, 0, 1, 1], [], []>} : vector<8x16xbf16>, vector<16x200xbf16>, vector<8x200xf32> -> vector<8x200xf32>
    %199 = arith.addf %194, %198 : vector<8x200xf32>
    %200 = vector.extract_strided_slice %108 {offsets = [144, 0], sizes = [8, 16], strides = [1, 1]} : vector<288x16xf32> to vector<8x16xf32>
    %201 = arith.truncf %200 : vector<8x16xf32> to vector<8x16xbf16>
    %c288_113 = arith.constant 288 : index
    %c0_114 = arith.constant 0 : index
    %202 = vector.load %arg4[%c288_113, %c0_114] : memref<576x200xbf16, #tpu.memory_space<vmem>>, vector<16x200xbf16>
    %cst_115 = arith.constant dense<0.000000e+00> : vector<8x200xf32>
    %203 = tpu.matmul %201, %202, %cst_115 {dimension_numbers = #tpu.dot_dimension_numbers<[1], [0], [0], [1], [0, 0, 1, 1], [], []>} : vector<8x16xbf16>, vector<16x200xbf16>, vector<8x200xf32> -> vector<8x200xf32>
    %204 = arith.addf %199, %203 : vector<8x200xf32>
    %205 = vector.extract_strided_slice %108 {offsets = [152, 0], sizes = [8, 16], strides = [1, 1]} : vector<288x16xf32> to vector<8x16xf32>
    %206 = arith.truncf %205 : vector<8x16xf32> to vector<8x16xbf16>
    %c304 = arith.constant 304 : index
    %c0_116 = arith.constant 0 : index
    %207 = vector.load %arg4[%c304, %c0_116] : memref<576x200xbf16, #tpu.memory_space<vmem>>, vector<16x200xbf16>
    %cst_117 = arith.constant dense<0.000000e+00> : vector<8x200xf32>
    %208 = tpu.matmul %206, %207, %cst_117 {dimension_numbers = #tpu.dot_dimension_numbers<[1], [0], [0], [1], [0, 0, 1, 1], [], []>} : vector<8x16xbf16>, vector<16x200xbf16>, vector<8x200xf32> -> vector<8x200xf32>
    %209 = arith.addf %204, %208 : vector<8x200xf32>
    %210 = vector.extract_strided_slice %108 {offsets = [160, 0], sizes = [8, 16], strides = [1, 1]} : vector<288x16xf32> to vector<8x16xf32>
    %211 = arith.truncf %210 : vector<8x16xf32> to vector<8x16xbf16>
    %c320 = arith.constant 320 : index
    %c0_118 = arith.constant 0 : index
    %212 = vector.load %arg4[%c320, %c0_118] : memref<576x200xbf16, #tpu.memory_space<vmem>>, vector<16x200xbf16>
    %cst_119 = arith.constant dense<0.000000e+00> : vector<8x200xf32>
    %213 = tpu.matmul %211, %212, %cst_119 {dimension_numbers = #tpu.dot_dimension_numbers<[1], [0], [0], [1], [0, 0, 1, 1], [], []>} : vector<8x16xbf16>, vector<16x200xbf16>, vector<8x200xf32> -> vector<8x200xf32>
    %214 = arith.addf %209, %213 : vector<8x200xf32>
    %215 = vector.extract_strided_slice %108 {offsets = [168, 0], sizes = [8, 16], strides = [1, 1]} : vector<288x16xf32> to vector<8x16xf32>
    %216 = arith.truncf %215 : vector<8x16xf32> to vector<8x16xbf16>
    %c336 = arith.constant 336 : index
    %c0_120 = arith.constant 0 : index
    %217 = vector.load %arg4[%c336, %c0_120] : memref<576x200xbf16, #tpu.memory_space<vmem>>, vector<16x200xbf16>
    %cst_121 = arith.constant dense<0.000000e+00> : vector<8x200xf32>
    %218 = tpu.matmul %216, %217, %cst_121 {dimension_numbers = #tpu.dot_dimension_numbers<[1], [0], [0], [1], [0, 0, 1, 1], [], []>} : vector<8x16xbf16>, vector<16x200xbf16>, vector<8x200xf32> -> vector<8x200xf32>
    %219 = arith.addf %214, %218 : vector<8x200xf32>
    %220 = vector.extract_strided_slice %108 {offsets = [176, 0], sizes = [8, 16], strides = [1, 1]} : vector<288x16xf32> to vector<8x16xf32>
    %221 = arith.truncf %220 : vector<8x16xf32> to vector<8x16xbf16>
    %c352 = arith.constant 352 : index
    %c0_122 = arith.constant 0 : index
    %222 = vector.load %arg4[%c352, %c0_122] : memref<576x200xbf16, #tpu.memory_space<vmem>>, vector<16x200xbf16>
    %cst_123 = arith.constant dense<0.000000e+00> : vector<8x200xf32>
    %223 = tpu.matmul %221, %222, %cst_123 {dimension_numbers = #tpu.dot_dimension_numbers<[1], [0], [0], [1], [0, 0, 1, 1], [], []>} : vector<8x16xbf16>, vector<16x200xbf16>, vector<8x200xf32> -> vector<8x200xf32>
    %224 = arith.addf %219, %223 : vector<8x200xf32>
    %225 = vector.extract_strided_slice %108 {offsets = [184, 0], sizes = [8, 16], strides = [1, 1]} : vector<288x16xf32> to vector<8x16xf32>
    %226 = arith.truncf %225 : vector<8x16xf32> to vector<8x16xbf16>
    %c368 = arith.constant 368 : index
    %c0_124 = arith.constant 0 : index
    %227 = vector.load %arg4[%c368, %c0_124] : memref<576x200xbf16, #tpu.memory_space<vmem>>, vector<16x200xbf16>
    %cst_125 = arith.constant dense<0.000000e+00> : vector<8x200xf32>
    %228 = tpu.matmul %226, %227, %cst_125 {dimension_numbers = #tpu.dot_dimension_numbers<[1], [0], [0], [1], [0, 0, 1, 1], [], []>} : vector<8x16xbf16>, vector<16x200xbf16>, vector<8x200xf32> -> vector<8x200xf32>
    %229 = arith.addf %224, %228 : vector<8x200xf32>
    %230 = vector.extract_strided_slice %108 {offsets = [192, 0], sizes = [8, 16], strides = [1, 1]} : vector<288x16xf32> to vector<8x16xf32>
    %231 = arith.truncf %230 : vector<8x16xf32> to vector<8x16xbf16>
    %c384 = arith.constant 384 : index
    %c0_126 = arith.constant 0 : index
    %232 = vector.load %arg4[%c384, %c0_126] : memref<576x200xbf16, #tpu.memory_space<vmem>>, vector<16x200xbf16>
    %cst_127 = arith.constant dense<0.000000e+00> : vector<8x200xf32>
    %233 = tpu.matmul %231, %232, %cst_127 {dimension_numbers = #tpu.dot_dimension_numbers<[1], [0], [0], [1], [0, 0, 1, 1], [], []>} : vector<8x16xbf16>, vector<16x200xbf16>, vector<8x200xf32> -> vector<8x200xf32>
    %234 = arith.addf %229, %233 : vector<8x200xf32>
    %235 = vector.extract_strided_slice %108 {offsets = [200, 0], sizes = [8, 16], strides = [1, 1]} : vector<288x16xf32> to vector<8x16xf32>
    %236 = arith.truncf %235 : vector<8x16xf32> to vector<8x16xbf16>
    %c400 = arith.constant 400 : index
    %c0_128 = arith.constant 0 : index
    %237 = vector.load %arg4[%c400, %c0_128] : memref<576x200xbf16, #tpu.memory_space<vmem>>, vector<16x200xbf16>
    %cst_129 = arith.constant dense<0.000000e+00> : vector<8x200xf32>
    %238 = tpu.matmul %236, %237, %cst_129 {dimension_numbers = #tpu.dot_dimension_numbers<[1], [0], [0], [1], [0, 0, 1, 1], [], []>} : vector<8x16xbf16>, vector<16x200xbf16>, vector<8x200xf32> -> vector<8x200xf32>
    %239 = arith.addf %234, %238 : vector<8x200xf32>
    %240 = vector.extract_strided_slice %108 {offsets = [208, 0], sizes = [8, 16], strides = [1, 1]} : vector<288x16xf32> to vector<8x16xf32>
    %241 = arith.truncf %240 : vector<8x16xf32> to vector<8x16xbf16>
    %c416 = arith.constant 416 : index
    %c0_130 = arith.constant 0 : index
    %242 = vector.load %arg4[%c416, %c0_130] : memref<576x200xbf16, #tpu.memory_space<vmem>>, vector<16x200xbf16>
    %cst_131 = arith.constant dense<0.000000e+00> : vector<8x200xf32>
    %243 = tpu.matmul %241, %242, %cst_131 {dimension_numbers = #tpu.dot_dimension_numbers<[1], [0], [0], [1], [0, 0, 1, 1], [], []>} : vector<8x16xbf16>, vector<16x200xbf16>, vector<8x200xf32> -> vector<8x200xf32>
    %244 = arith.addf %239, %243 : vector<8x200xf32>
    %245 = vector.extract_strided_slice %108 {offsets = [216, 0], sizes = [8, 16], strides = [1, 1]} : vector<288x16xf32> to vector<8x16xf32>
    %246 = arith.truncf %245 : vector<8x16xf32> to vector<8x16xbf16>
    %c432 = arith.constant 432 : index
    %c0_132 = arith.constant 0 : index
    %247 = vector.load %arg4[%c432, %c0_132] : memref<576x200xbf16, #tpu.memory_space<vmem>>, vector<16x200xbf16>
    %cst_133 = arith.constant dense<0.000000e+00> : vector<8x200xf32>
    %248 = tpu.matmul %246, %247, %cst_133 {dimension_numbers = #tpu.dot_dimension_numbers<[1], [0], [0], [1], [0, 0, 1, 1], [], []>} : vector<8x16xbf16>, vector<16x200xbf16>, vector<8x200xf32> -> vector<8x200xf32>
    %249 = arith.addf %244, %248 : vector<8x200xf32>
    %250 = vector.extract_strided_slice %108 {offsets = [224, 0], sizes = [8, 16], strides = [1, 1]} : vector<288x16xf32> to vector<8x16xf32>
    %251 = arith.truncf %250 : vector<8x16xf32> to vector<8x16xbf16>
    %c448 = arith.constant 448 : index
    %c0_134 = arith.constant 0 : index
    %252 = vector.load %arg4[%c448, %c0_134] : memref<576x200xbf16, #tpu.memory_space<vmem>>, vector<16x200xbf16>
    %cst_135 = arith.constant dense<0.000000e+00> : vector<8x200xf32>
    %253 = tpu.matmul %251, %252, %cst_135 {dimension_numbers = #tpu.dot_dimension_numbers<[1], [0], [0], [1], [0, 0, 1, 1], [], []>} : vector<8x16xbf16>, vector<16x200xbf16>, vector<8x200xf32> -> vector<8x200xf32>
    %254 = arith.addf %249, %253 : vector<8x200xf32>
    %255 = vector.extract_strided_slice %108 {offsets = [232, 0], sizes = [8, 16], strides = [1, 1]} : vector<288x16xf32> to vector<8x16xf32>
    %256 = arith.truncf %255 : vector<8x16xf32> to vector<8x16xbf16>
    %c464 = arith.constant 464 : index
    %c0_136 = arith.constant 0 : index
    %257 = vector.load %arg4[%c464, %c0_136] : memref<576x200xbf16, #tpu.memory_space<vmem>>, vector<16x200xbf16>
    %cst_137 = arith.constant dense<0.000000e+00> : vector<8x200xf32>
    %258 = tpu.matmul %256, %257, %cst_137 {dimension_numbers = #tpu.dot_dimension_numbers<[1], [0], [0], [1], [0, 0, 1, 1], [], []>} : vector<8x16xbf16>, vector<16x200xbf16>, vector<8x200xf32> -> vector<8x200xf32>
    %259 = arith.addf %254, %258 : vector<8x200xf32>
    %260 = vector.extract_strided_slice %108 {offsets = [240, 0], sizes = [8, 16], strides = [1, 1]} : vector<288x16xf32> to vector<8x16xf32>
    %261 = arith.truncf %260 : vector<8x16xf32> to vector<8x16xbf16>
    %c480 = arith.constant 480 : index
    %c0_138 = arith.constant 0 : index
    %262 = vector.load %arg4[%c480, %c0_138] : memref<576x200xbf16, #tpu.memory_space<vmem>>, vector<16x200xbf16>
    %cst_139 = arith.constant dense<0.000000e+00> : vector<8x200xf32>
    %263 = tpu.matmul %261, %262, %cst_139 {dimension_numbers = #tpu.dot_dimension_numbers<[1], [0], [0], [1], [0, 0, 1, 1], [], []>} : vector<8x16xbf16>, vector<16x200xbf16>, vector<8x200xf32> -> vector<8x200xf32>
    %264 = arith.addf %259, %263 : vector<8x200xf32>
    %265 = vector.extract_strided_slice %108 {offsets = [248, 0], sizes = [8, 16], strides = [1, 1]} : vector<288x16xf32> to vector<8x16xf32>
    %266 = arith.truncf %265 : vector<8x16xf32> to vector<8x16xbf16>
    %c496 = arith.constant 496 : index
    %c0_140 = arith.constant 0 : index
    %267 = vector.load %arg4[%c496, %c0_140] : memref<576x200xbf16, #tpu.memory_space<vmem>>, vector<16x200xbf16>
    %cst_141 = arith.constant dense<0.000000e+00> : vector<8x200xf32>
    %268 = tpu.matmul %266, %267, %cst_141 {dimension_numbers = #tpu.dot_dimension_numbers<[1], [0], [0], [1], [0, 0, 1, 1], [], []>} : vector<8x16xbf16>, vector<16x200xbf16>, vector<8x200xf32> -> vector<8x200xf32>
    %269 = arith.addf %264, %268 : vector<8x200xf32>
    %270 = vector.extract_strided_slice %108 {offsets = [256, 0], sizes = [8, 16], strides = [1, 1]} : vector<288x16xf32> to vector<8x16xf32>
    %271 = arith.truncf %270 : vector<8x16xf32> to vector<8x16xbf16>
    %c512 = arith.constant 512 : index
    %c0_142 = arith.constant 0 : index
    %272 = vector.load %arg4[%c512, %c0_142] : memref<576x200xbf16, #tpu.memory_space<vmem>>, vector<16x200xbf16>
    %cst_143 = arith.constant dense<0.000000e+00> : vector<8x200xf32>
    %273 = tpu.matmul %271, %272, %cst_143 {dimension_numbers = #tpu.dot_dimension_numbers<[1], [0], [0], [1], [0, 0, 1, 1], [], []>} : vector<8x16xbf16>, vector<16x200xbf16>, vector<8x200xf32> -> vector<8x200xf32>
    %274 = arith.addf %269, %273 : vector<8x200xf32>
    %275 = vector.extract_strided_slice %108 {offsets = [264, 0], sizes = [8, 16], strides = [1, 1]} : vector<288x16xf32> to vector<8x16xf32>
    %276 = arith.truncf %275 : vector<8x16xf32> to vector<8x16xbf16>
    %c528 = arith.constant 528 : index
    %c0_144 = arith.constant 0 : index
    %277 = vector.load %arg4[%c528, %c0_144] : memref<576x200xbf16, #tpu.memory_space<vmem>>, vector<16x200xbf16>
    %cst_145 = arith.constant dense<0.000000e+00> : vector<8x200xf32>
    %278 = tpu.matmul %276, %277, %cst_145 {dimension_numbers = #tpu.dot_dimension_numbers<[1], [0], [0], [1], [0, 0, 1, 1], [], []>} : vector<8x16xbf16>, vector<16x200xbf16>, vector<8x200xf32> -> vector<8x200xf32>
    %279 = arith.addf %274, %278 : vector<8x200xf32>
    %280 = vector.extract_strided_slice %108 {offsets = [272, 0], sizes = [8, 16], strides = [1, 1]} : vector<288x16xf32> to vector<8x16xf32>
    %281 = arith.truncf %280 : vector<8x16xf32> to vector<8x16xbf16>
    %c544 = arith.constant 544 : index
    %c0_146 = arith.constant 0 : index
    %282 = vector.load %arg4[%c544, %c0_146] : memref<576x200xbf16, #tpu.memory_space<vmem>>, vector<16x200xbf16>
    %cst_147 = arith.constant dense<0.000000e+00> : vector<8x200xf32>
    %283 = tpu.matmul %281, %282, %cst_147 {dimension_numbers = #tpu.dot_dimension_numbers<[1], [0], [0], [1], [0, 0, 1, 1], [], []>} : vector<8x16xbf16>, vector<16x200xbf16>, vector<8x200xf32> -> vector<8x200xf32>
    %284 = arith.addf %279, %283 : vector<8x200xf32>
    %285 = vector.extract_strided_slice %108 {offsets = [280, 0], sizes = [8, 16], strides = [1, 1]} : vector<288x16xf32> to vector<8x16xf32>
    %286 = arith.truncf %285 : vector<8x16xf32> to vector<8x16xbf16>
    %c560 = arith.constant 560 : index
    %c0_148 = arith.constant 0 : index
    %287 = vector.load %arg4[%c560, %c0_148] : memref<576x200xbf16, #tpu.memory_space<vmem>>, vector<16x200xbf16>
    %cst_149 = arith.constant dense<0.000000e+00> : vector<8x200xf32>
    %288 = tpu.matmul %286, %287, %cst_149 {dimension_numbers = #tpu.dot_dimension_numbers<[1], [0], [0], [1], [0, 0, 1, 1], [], []>} : vector<8x16xbf16>, vector<16x200xbf16>, vector<8x200xf32> -> vector<8x200xf32>
    %289 = arith.addf %284, %288 : vector<8x200xf32>
    %290 = vector.broadcast %3 : vector<1x200xf32> to vector<8x200xf32>
    %291 = arith.addf %289, %290 : vector<8x200xf32>
    %cst_150 = arith.constant 0.000000e+00 : f32
    %292 = vector.broadcast %cst_150 : f32 to vector<8x200xf32>
    %293 = arith.maximumf %291, %292 : vector<8x200xf32>
    %294 = arith.truncf %293 : vector<8x200xf32> to vector<8x200xbf16>
    %c0_151 = arith.constant 0 : index
    %c0_152 = arith.constant 0 : index
    %295 = vector.load %arg5[%c0_151, %c0_152] : memref<200x30xbf16, #tpu.memory_space<vmem>>, vector<200x30xbf16>
    %cst_153 = arith.constant dense<0.000000e+00> : vector<8x30xf32>
    %296 = tpu.matmul %294, %295, %cst_153 {dimension_numbers = #tpu.dot_dimension_numbers<[1], [0], [0], [1], [0, 0, 1, 1], [], []>} : vector<8x200xbf16>, vector<200x30xbf16>, vector<8x30xf32> -> vector<8x30xf32>
    %297 = vector.broadcast %4 : vector<1x30xf32> to vector<8x30xf32>
    %298 = arith.addf %296, %297 : vector<8x30xf32>
    %cst_154 = arith.constant 0.000000e+00 : f32
    %299 = vector.broadcast %cst_154 : f32 to vector<8x30xf32>
    %300 = arith.maximumf %298, %299 : vector<8x30xf32>
    %301 = arith.truncf %300 : vector<8x30xf32> to vector<8x30xbf16>
    %c0_155 = arith.constant 0 : index
    %c0_156 = arith.constant 0 : index
    %302 = vector.load %arg6[%c0_155, %c0_156] : memref<30x128xbf16, #tpu.memory_space<vmem>>, vector<30x128xbf16>
    %cst_157 = arith.constant dense<0.000000e+00> : vector<8x128xf32>
    %303 = tpu.matmul %301, %302, %cst_157 {dimension_numbers = #tpu.dot_dimension_numbers<[1], [0], [0], [1], [0, 0, 1, 1], [], []>} : vector<8x30xbf16>, vector<30x128xbf16>, vector<8x128xf32> -> vector<8x128xf32>
    %c0_158 = arith.constant 0 : index
    %c0_159 = arith.constant 0 : index
    %304 = vector.load %arg8[%c0_158, %c0_159] : memref<8x128xf32, #tpu.memory_space<vmem>>, vector<8x128xf32>
    tpu.vector_store %arg8[%c0_158, %c0_159], %303 {strides = array<i32>} : memref<8x128xf32, #tpu.memory_space<vmem>>, vector<8x128xf32>,
    return
  }
  func.func @transform_0(%arg0: i32) -> (i32, i32) {
    %c0_i32 = arith.constant 0 : i32
    %c0_i32_0 = arith.constant 0 : i32
    return %arg0, %c0_i32 : i32, i32
  }
  func.func @transform_1(%arg0: i32) -> (i32, i32) {
    %c0_i32 = arith.constant 0 : i32
    %c0_i32_0 = arith.constant 0 : i32
    %c0_i32_1 = arith.constant 0 : i32
    return %c0_i32, %c0_i32_0 : i32, i32
  }
  func.func @transform_2(%arg0: i32) -> (i32, i32) {
    %c0_i32 = arith.constant 0 : i32
    %c0_i32_0 = arith.constant 0 : i32
    %c0_i32_1 = arith.constant 0 : i32
    return %c0_i32, %c0_i32_0 : i32, i32
  }
  func.func @transform_3(%arg0: i32) -> (i32, i32) {
    %c0_i32 = arith.constant 0 : i32
    %c0_i32_0 = arith.constant 0 : i32
    %c0_i32_1 = arith.constant 0 : i32
    return %c0_i32, %c0_i32_0 : i32, i32
  }
  func.func @transform_4(%arg0: i32) -> (i32, i32) {
    %c0_i32 = arith.constant 0 : i32
    %c0_i32_0 = arith.constant 0 : i32
    %c0_i32_1 = arith.constant 0 : i32
    return %c0_i32, %c0_i32_0 : i32, i32
  }
  func.func @transform_5(%arg0: i32) -> (i32, i32) {
    %c0_i32 = arith.constant 0 : i32
    %c0_i32_0 = arith.constant 0 : i32
    %c0_i32_1 = arith.constant 0 : i32
    return %c0_i32, %c0_i32_0 : i32, i32
  }
  func.func @transform_6(%arg0: i32) -> (i32, i32) {
    %c0_i32 = arith.constant 0 : i32
    %c0_i32_0 = arith.constant 0 : i32
    %c0_i32_1 = arith.constant 0 : i32
    return %c0_i32, %c0_i32_0 : i32, i32
  }
  func.func @transform_7(%arg0: i32) -> (i32, i32) {
    %c0_i32 = arith.constant 0 : i32
    %c0_i32_0 = arith.constant 0 : i32
    return %arg0, %c0_i32 : i32, i32
  }
}

</mosaic_0001>

<llo_original>
// kernel: mnist_forward.1
$region0: #{mnist_forward.1}
  #allocation0 [shape = 'u32[]', space=smem, size = 0x4, offset = 0x4, fixed_abs, tag = 'smem constant byte address 0x4 - core index']
  #allocation1 [shape = 'u32[72,128]{1,0:T(1,128)}', space=vmem, size = 0x9000, scoped, tag = 'internal scratch']
  %s0 = inlined_call_operand.vmem [shape: bf16[2592,16], index: 0, kind: input, shape index: {}]
  %s1 = inlined_call_operand.vmem [shape: bf16[16,32], index: 1, kind: input, shape index: {}]
  %s2 = inlined_call_operand.vmem [shape: bf16[288,16], index: 2, kind: input, shape index: {}]
  %s3 = inlined_call_operand.vmem [shape: bf16[576,200], index: 3, kind: input, shape index: {}]
  %s4 = inlined_call_operand.vmem [shape: bf16[200,30], index: 4, kind: input, shape index: {}]
  %s5 = inlined_call_operand.vmem [shape: bf16[30,128], index: 5, kind: input, shape index: {}]
  %s6 = inlined_call_operand.vmem [shape: f32[4,256], index: 6, kind: input, shape index: {}]
  %s7 = inlined_call_operand.vmem [shape: f32[8,128], index: 7, kind: output, shape index: {}]
  %s8 = sld [smem:[#allocation0]]
  $region38: #{mnist_forward.1} parent=0
    _
  %s10 = ssub.s32 1, %s8
  %s11 = scalar_select 0, %s10, %s8
  // Predicated region
  $region2: #{mnist_forward.1} parent=0 // pred_check
    _
  $region3: #{mnist_forward.1} parent=0 // pred_check_branch
    %13 = sbr.rel (0) target = $region5
  $region4: #{mnist_forward.1} parent=0 // pred_region
    _
  $region5: #{mnist_forward.1} parent=0 // pred_fallthru
    _
  // Predicated region
  $region6: #{mnist_forward.1} parent=0 // pred_check
    _
  $region7: #{mnist_forward.1} parent=0 // pred_check_branch
    %15 = sbr.rel (0) target = $region9
  $region8: #{mnist_forward.1} parent=0 // pred_region
    _
  $region9: #{mnist_forward.1} parent=0 // pred_fallthru
    _
  // Predicated region
  $region10: #{mnist_forward.1} parent=0 // pred_check
    _
  $region11: #{mnist_forward.1} parent=0 // pred_check_branch
    %17 = sbr.rel (0) target = $region13
  $region12: #{mnist_forward.1} parent=0 // pred_region
    _
  $region13: #{mnist_forward.1} parent=0 // pred_fallthru
    _
  // Predicated region
  $region14: #{mnist_forward.1} parent=0 // pred_check
    _
  $region15: #{mnist_forward.1} parent=0 // pred_check_branch
    %19 = sbr.rel (0) target = $region17
  $region16: #{mnist_forward.1} parent=0 // pred_region
    _
  $region17: #{mnist_forward.1} parent=0 // pred_fallthru
    _
  // Predicated region
  $region18: #{mnist_forward.1} parent=0 // pred_check
    _
  $region19: #{mnist_forward.1} parent=0 // pred_check_branch
    %21 = sbr.rel (0) target = $region21
  $region20: #{mnist_forward.1} parent=0 // pred_region
    _
  $region21: #{mnist_forward.1} parent=0 // pred_fallthru
    _
  // Predicated region
  $region22: #{mnist_forward.1} parent=0 // pred_check
    _
  $region23: #{mnist_forward.1} parent=0 // pred_check_branch
    %23 = sbr.rel (0) target = $region25
  $region24: #{mnist_forward.1} parent=0 // pred_region
    _
  $region25: #{mnist_forward.1} parent=0 // pred_fallthru
    _
  // Predicated region
  $region26: #{mnist_forward.1} parent=0 // pred_check
    _
  $region27: #{mnist_forward.1} parent=0 // pred_check_branch
    %25 = sbr.rel (0) target = $region29
  $region28: #{mnist_forward.1} parent=0 // pred_region
    _
  $region29: #{mnist_forward.1} parent=0 // pred_fallthru
    _
  %v27 = vld [vmem:[%s6] sm:$0xff]
  %v28 = vld [vmem:[%s0] sm:$0xf]
  %v29 = vld [vmem:[%s0 + $0x4] sm:$0xf]
  %v30 = vld [vmem:[%s0 + $0x8] sm:$0xf]
  %v31 = vld [vmem:[%s0 + $0xc] sm:$0xf]
  %v32 = vld [vmem:[%s0 + $0x10] sm:$0xf]
  %v33 = vld [vmem:[%s0 + $0x14] sm:$0xf]
  %v34 = vld [vmem:[%s0 + $0x18] sm:$0xf]
  %v35 = vld [vmem:[%s0 + $0x1c] sm:$0xf]
  %v36 = vld [vmem:[%s0 + $0x20] sm:$0xf]
  %v37 = vld [vmem:[%s0 + $0x24] sm:$0xf]
  %v38 = vld [vmem:[%s0 + $0x28] sm:$0xf]
  %v39 = vld [vmem:[%s0 + $0x2c] sm:$0xf]
  %v40 = vld [vmem:[%s0 + $0x30] sm:$0xf]
  %v41 = vld [vmem:[%s0 + $0x34] sm:$0xf]
  %v42 = vld [vmem:[%s0 + $0x38] sm:$0xf]
  %v43 = vld [vmem:[%s0 + $0x3c] sm:$0xf]
  %v44 = vld [vmem:[%s0 + $0x40] sm:$0xf]
  %v45 = vld [vmem:[%s0 + $0x44] sm:$0xf]
  %v46 = vld [vmem:[%s0 + $0x48] sm:$0xf]
  %v47 = vld [vmem:[%s0 + $0x4c] sm:$0xf]
  %v48 = vld [vmem:[%s0 + $0x50] sm:$0xf]
  %v49 = vld [vmem:[%s0 + $0x54] sm:$0xf]
  %v50 = vld [vmem:[%s0 + $0x58] sm:$0xf]
  %v51 = vld [vmem:[%s0 + $0x5c] sm:$0xf]
  %v52 = vld [vmem:[%s0 + $0x60] sm:$0xf]
  %v53 = vld [vmem:[%s0 + $0x64] sm:$0xf]
  %v54 = vld [vmem:[%s0 + $0x68] sm:$0xf]
  %v55 = vld [vmem:[%s0 + $0x6c] sm:$0xf]
  %v56 = vld [vmem:[%s0 + $0x70] sm:$0xf]
  %v57 = vld [vmem:[%s0 + $0x74] sm:$0xf]
  %v58 = vld [vmem:[%s0 + $0x78] sm:$0xf]
  %v59 = vld [vmem:[%s0 + $0x7c] sm:$0xf]
  %v60 = vld [vmem:[%s0 + $0x80] sm:$0xf]
  %v61 = vld [vmem:[%s0 + $0x84] sm:$0xf]
  %v62 = vld [vmem:[%s0 + $0x88] sm:$0xf]
  %v63 = vld [vmem:[%s0 + $0x8c] sm:$0xf]
  %v64 = vld [vmem:[%s1] sm:$0xf]
  %v65 = vld [vmem:[%s1 + $0x4] sm:$0xf]
  %v66 = vperm.slane %v27, 0
  %v103 = vunpack.c.l.b16 %v28
  %v104 = vunpack.c.l.b16 %v29
  %v105 = vunpack.c.l.b16 %v30
  %v106 = vunpack.c.l.b16 %v31
  %v107 = vunpack.c.l.b16 %v32
  %v108 = vunpack.c.l.b16 %v33
  %v109 = vunpack.c.l.b16 %v34
  %v110 = vunpack.c.l.b16 %v35
  %v111 = vunpack.c.l.b16 %v36
  %v112 = vunpack.c.l.b16 %v37
  %v113 = vunpack.c.l.b16 %v38
  %v114 = vunpack.c.l.b16 %v39
  %v115 = vunpack.c.l.b16 %v40
  %v116 = vunpack.c.l.b16 %v41
  %v117 = vunpack.c.l.b16 %v42
  %v118 = vunpack.c.l.b16 %v43
  %v119 = vunpack.c.l.b16 %v44
  %v120 = vunpack.c.l.b16 %v45
  %v121 = vunpack.c.l.b16 %v46
  %v122 = vunpack.c.l.b16 %v47
  %v123 = vunpack.c.l.b16 %v48
  %v124 = vunpack.c.l.b16 %v49
  %v125 = vunpack.c.l.b16 %v50
  %v126 = vunpack.c.l.b16 %v51
  %v127 = vunpack.c.l.b16 %v52
  %v128 = vunpack.c.l.b16 %v53
  %v129 = vunpack.c.l.b16 %v54
  %v130 = vunpack.c.l.b16 %v55
  %v131 = vunpack.c.l.b16 %v56
  %v132 = vunpack.c.l.b16 %v57
  %v133 = vunpack.c.l.b16 %v58
  %v134 = vunpack.c.l.b16 %v59
  %v135 = vunpack.c.l.b16 %v60
  %v136 = vunpack.c.l.b16 %v61
  %v137 = vunpack.c.l.b16 %v62
  %v138 = vunpack.c.l.b16 %v63
  %v139 = vpack.c.b16 %v104, %v103
  %v140 = vpack.c.b16 %v106, %v105
  %v141 = vpack.c.b16 %v108, %v107
  %v142 = vpack.c.b16 %v110, %v109
  %v143 = vpack.c.b16 %v112, %v111
  %v144 = vpack.c.b16 %v114, %v113
  %v145 = vpack.c.b16 %v116, %v115
  %v146 = vpack.c.b16 %v118, %v117
  %v147 = vpack.c.b16 %v120, %v119
  %v148 = vpack.c.b16 %v122, %v121
  %v149 = vpack.c.b16 %v124, %v123
  %v150 = vpack.c.b16 %v126, %v125
  %v151 = vpack.c.b16 %v128, %v127
  %v152 = vpack.c.b16 %v130, %v129
  %v153 = vpack.c.b16 %v132, %v131
  %v154 = vpack.c.b16 %v134, %v133
  %v155 = vpack.c.b16 %v136, %v135
  %v156 = vpack.c.b16 %v138, %v137
  %v159 = vunpack.c.l.b16 %v64
  %v160 = vunpack.c.l.b16 %v65
  %v161 = vpack.c.b16 %v160, %v159
  %vm163 = vcmask 130048
  %v165 = vsel %vm163, %v139, 0
  %v168 = vsel %vm163, %v140, 0
  %v171 = vsel %vm163, %v141, 0
  %v174 = vsel %vm163, %v142, 0
  %v177 = vsel %vm163, %v143, 0
  %v180 = vsel %vm163, %v144, 0
  %v183 = vsel %vm163, %v145, 0
  %v186 = vsel %vm163, %v146, 0
  %v189 = vsel %vm163, %v147, 0
  %v192 = vsel %vm163, %v148, 0
  %v195 = vsel %vm163, %v149, 0
  %v198 = vsel %vm163, %v150, 0
  %v201 = vsel %vm163, %v151, 0
  %v204 = vsel %vm163, %v152, 0
  %v207 = vsel %vm163, %v153, 0
  %v210 = vsel %vm163, %v154, 0
  %v213 = vsel %vm163, %v155, 0
  %v216 = vsel %vm163, %v156, 0
  %218 = vmatpush.bf16.msra.mxu0 0
  %219 = vmatpush.bf16.msra.mxu0 0
  %220 = vmatpush.bf16.msra.mxu0 0
  %221 = vmatpush.bf16.msra.mxu0 0
  %222 = vmatpush.bf16.msra.mxu0 0
  %223 = vmatpush.bf16.msra.mxu0 0
  %224 = vmatpush.bf16.msra.mxu0 0
  %225 = vmatpush.bf16.msra.mxu0 %v161
  %226 = vmatmul.bf16.gmra.mxu0 %v165
  %v227 = vpop.f32.mrf.mxu0
  %v228 = vadd.f32 %v66, %v227
  %v229 = vpop.f32.mrf.mxu0
  %v230 = vadd.f32 %v66, %v229
  %231 = vmatmul.bf16.gmra.mxu0 %v168
  %v232 = vpop.f32.mrf.mxu0
  %v233 = vadd.f32 %v66, %v232
  %v234 = vpop.f32.mrf.mxu0
  %v235 = vadd.f32 %v66, %v234
  %236 = vmatmul.bf16.gmra.mxu0 %v171
  %v237 = vpop.f32.mrf.mxu0
  %v238 = vadd.f32 %v66, %v237
  %v239 = vpop.f32.mrf.mxu0
  %v240 = vadd.f32 %v66, %v239
  %241 = vmatmul.bf16.gmra.mxu0 %v174
  %v242 = vpop.f32.mrf.mxu0
  %v243 = vadd.f32 %v66, %v242
  %v244 = vpop.f32.mrf.mxu0
  %v245 = vadd.f32 %v66, %v244
  %246 = vmatmul.bf16.gmra.mxu0 %v177
  %v247 = vpop.f32.mrf.mxu0
  %v248 = vadd.f32 %v66, %v247
  %v249 = vpop.f32.mrf.mxu0
  %v250 = vadd.f32 %v66, %v249
  %251 = vmatmul.bf16.gmra.mxu0 %v180
  %v252 = vpop.f32.mrf.mxu0
  %v253 = vadd.f32 %v66, %v252
  %v254 = vpop.f32.mrf.mxu0
  %v255 = vadd.f32 %v66, %v254
  %256 = vmatmul.bf16.gmra.mxu0 %v183
  %v257 = vpop.f32.mrf.mxu0
  %v258 = vadd.f32 %v66, %v257
  %v259 = vpop.f32.mrf.mxu0
  %v260 = vadd.f32 %v66, %v259
  %261 = vmatmul.bf16.gmra.mxu0 %v186
  %v262 = vpop.f32.mrf.mxu0
  %v263 = vadd.f32 %v66, %v262
  %v264 = vpop.f32.mrf.mxu0
  %v265 = vadd.f32 %v66, %v264
  %266 = vmatmul.bf16.gmra.mxu0 %v189
  %v267 = vpop.f32.mrf.mxu0
  %v268 = vadd.f32 %v66, %v267
  %v269 = vpop.f32.mrf.mxu0
  %v270 = vadd.f32 %v66, %v269
  %271 = vmatmul.bf16.gmra.mxu0 %v192
  %v272 = vpop.f32.mrf.mxu0
  %v273 = vadd.f32 %v66, %v272
  %v274 = vpop.f32.mrf.mxu0
  %v275 = vadd.f32 %v66, %v274
  %276 = vmatmul.bf16.gmra.mxu0 %v195
  %v277 = vpop.f32.mrf.mxu0
  %v278 = vadd.f32 %v66, %v277
  %v279 = vpop.f32.mrf.mxu0
  %v280 = vadd.f32 %v66, %v279
  %281 = vmatmul.bf16.gmra.mxu0 %v198
  %v282 = vpop.f32.mrf.mxu0
  %v283 = vadd.f32 %v66, %v282
  %v284 = vpop.f32.mrf.mxu0
  %v285 = vadd.f32 %v66, %v284
  %286 = vmatmul.bf16.gmra.mxu0 %v201
  %v287 = vpop.f32.mrf.mxu0
  %v288 = vadd.f32 %v66, %v287
  %v289 = vpop.f32.mrf.mxu0
  %v290 = vadd.f32 %v66, %v289
  %291 = vmatmul.bf16.gmra.mxu0 %v204
  %v292 = vpop.f32.mrf.mxu0
  %v293 = vadd.f32 %v66, %v292
  %v294 = vpop.f32.mrf.mxu0
  %v295 = vadd.f32 %v66, %v294
  %296 = vmatmul.bf16.gmra.mxu0 %v207
  %v297 = vpop.f32.mrf.mxu0
  %v298 = vadd.f32 %v66, %v297
  %v299 = vpop.f32.mrf.mxu0
  %v300 = vadd.f32 %v66, %v299
  %301 = vmatmul.bf16.gmra.mxu0 %v210
  %v302 = vpop.f32.mrf.mxu0
  %v303 = vadd.f32 %v66, %v302
  %v304 = vpop.f32.mrf.mxu0
  %v305 = vadd.f32 %v66, %v304
  %306 = vmatmul.bf16.gmra.mxu0 %v213
  %v307 = vpop.f32.mrf.mxu0
  %v308 = vadd.f32 %v66, %v307
  %v309 = vpop.f32.mrf.mxu0
  %v310 = vadd.f32 %v66, %v309
  %311 = vmatmul.bf16.gmra.mxu0 %v216
  %v312 = vpop.f32.mrf.mxu0
  %v313 = vadd.f32 %v66, %v312
  %v314 = vpop.f32.mrf.mxu0
  %v315 = vadd.f32 %v66, %v314
  %316 = vdwg.mxu0
  %v317 = vmax.f32 %v228, 0.0
  %v318 = vmax.f32 %v230, 0.0
  %v319 = vmax.f32 %v233, 0.0
  %v320 = vmax.f32 %v235, 0.0
  %v321 = vmax.f32 %v238, 0.0
  %v322 = vmax.f32 %v240, 0.0
  %v323 = vmax.f32 %v243, 0.0
  %v324 = vmax.f32 %v245, 0.0
  %v325 = vmax.f32 %v248, 0.0
  %v326 = vmax.f32 %v250, 0.0
  %v327 = vmax.f32 %v253, 0.0
  %v328 = vmax.f32 %v255, 0.0
  %v329 = vmax.f32 %v258, 0.0
  %v330 = vmax.f32 %v260, 0.0
  %v331 = vmax.f32 %v263, 0.0
  %v332 = vmax.f32 %v265, 0.0
  %v333 = vmax.f32 %v268, 0.0
  %v334 = vmax.f32 %v270, 0.0
  %v335 = vmax.f32 %v273, 0.0
  %v336 = vmax.f32 %v275, 0.0
  %v337 = vmax.f32 %v278, 0.0
  %v338 = vmax.f32 %v280, 0.0
  %v339 = vmax.f32 %v283, 0.0
  %v340 = vmax.f32 %v285, 0.0
  %v341 = vmax.f32 %v288, 0.0
  %v342 = vmax.f32 %v290, 0.0
  %v343 = vmax.f32 %v293, 0.0
  %v344 = vmax.f32 %v295, 0.0
  %v345 = vmax.f32 %v298, 0.0
  %v346 = vmax.f32 %v300, 0.0
  %v347 = vmax.f32 %v303, 0.0
  %v348 = vmax.f32 %v305, 0.0
  %v349 = vmax.f32 %v308, 0.0
  %v350 = vmax.f32 %v310, 0.0
  %v351 = vmax.f32 %v313, 0.0
  %v352 = vmax.f32 %v315, 0.0
  %v353 = vpack.c.bf16 %v318, %v317
  %v354 = vpack.c.bf16 %v320, %v319
  %v355 = vpack.c.bf16 %v322, %v321
  %v356 = vpack.c.bf16 %v324, %v323
  %v357 = vpack.c.bf16 %v326, %v325
  %v358 = vpack.c.bf16 %v328, %v327
  %v359 = vpack.c.bf16 %v330, %v329
  %v360 = vpack.c.bf16 %v332, %v331
  %v361 = vpack.c.bf16 %v334, %v333
  %v362 = vpack.c.bf16 %v336, %v335
  %v363 = vpack.c.bf16 %v338, %v337
  %v364 = vpack.c.bf16 %v340, %v339
  %v365 = vpack.c.bf16 %v342, %v341
  %v366 = vpack.c.bf16 %v344, %v343
  %v367 = vpack.c.bf16 %v346, %v345
  %v368 = vpack.c.bf16 %v348, %v347
  %v369 = vpack.c.bf16 %v350, %v349
  %v370 = vpack.c.bf16 %v352, %v351
  %v371 = vld [vmem:[%s2] sm:$0xf]
  %v372 = vld [vmem:[%s2 + $0x4] sm:$0xf]
  %v373 = vld [vmem:[%s2 + $0x8] sm:$0xf]
  %v374 = vld [vmem:[%s2 + $0xc] sm:$0xf]
  %v375 = vld [vmem:[%s0 + $0x90] sm:$0xf]
  %v376 = vld [vmem:[%s0 + $0x94] sm:$0xf]
  %v377 = vld [vmem:[%s0 + $0x98] sm:$0xf]
  %v378 = vld [vmem:[%s0 + $0x9c] sm:$0xf]
  %v379 = vld [vmem:[%s0 + $0xa0] sm:$0xf]
  %v380 = vld [vmem:[%s0 + $0xa4] sm:$0xf]
  %v381 = vld [vmem:[%s0 + $0xa8] sm:$0xf]
  %v382 = vld [vmem:[%s0 + $0xac] sm:$0xf]
  %v383 = vld [vmem:[%s0 + $0xb0] sm:$0xf]
  %v384 = vld [vmem:[%s0 + $0xb4] sm:$0xf]
  %v385 = vld [vmem:[%s0 + $0xb8] sm:$0xf]
  %v386 = vld [vmem:[%s0 + $0xbc] sm:$0xf]
  %v387 = vld [vmem:[%s0 + $0xc0] sm:$0xf]
  %v388 = vld [vmem:[%s0 + $0xc4] sm:$0xf]
  %v389 = vld [vmem:[%s0 + $0xc8] sm:$0xf]
  %v390 = vld [vmem:[%s0 + $0xcc] sm:$0xf]
  %v391 = vld [vmem:[%s0 + $0xd0] sm:$0xf]
  %v392 = vld [vmem:[%s0 + $0xd4] sm:$0xf]
  %v393 = vld [vmem:[%s0 + $0xd8] sm:$0xf]
  %v394 = vld [vmem:[%s0 + $0xdc] sm:$0xf]
  %v395 = vld [vmem:[%s0 + $0xe0] sm:$0xf]
  %v396 = vld [vmem:[%s0 + $0xe4] sm:$0xf]
  %v397 = vld [vmem:[%s0 + $0xe8] sm:$0xf]
  %v398 = vld [vmem:[%s0 + $0xec] sm:$0xf]
  %v399 = vld [vmem:[%s0 + $0xf0] sm:$0xf]
  %v400 = vld [vmem:[%s0 + $0xf4] sm:$0xf]
  %v401 = vld [vmem:[%s0 + $0xf8] sm:$0xf]
  %v402 = vld [vmem:[%s0 + $0xfc] sm:$0xf]
  %v403 = vld [vmem:[%s0 + $0x100] sm:$0xf]
  %v404 = vld [vmem:[%s0 + $0x104] sm:$0xf]
  %v405 = vld [vmem:[%s0 + $0x108] sm:$0xf]
  %v406 = vld [vmem:[%s0 + $0x10c] sm:$0xf]
  %v407 = vld [vmem:[%s0 + $0x110] sm:$0xf]
  %v408 = vld [vmem:[%s0 + $0x114] sm:$0xf]
  %v409 = vld [vmem:[%s0 + $0x118] sm:$0xf]
  %v410 = vld [vmem:[%s0 + $0x11c] sm:$0xf]
  %v447 = vunpack.c.l.b16 %v375
  %v448 = vunpack.c.l.b16 %v376
  %v449 = vunpack.c.l.b16 %v377
  %v450 = vunpack.c.l.b16 %v378
  %v451 = vunpack.c.l.b16 %v379
  %v452 = vunpack.c.l.b16 %v380
  %v453 = vunpack.c.l.b16 %v381
  %v454 = vunpack.c.l.b16 %v382
  %v455 = vunpack.c.l.b16 %v383
  %v456 = vunpack.c.l.b16 %v384
  %v457 = vunpack.c.l.b16 %v385
  %v458 = vunpack.c.l.b16 %v386
  %v459 = vunpack.c.l.b16 %v387
  %v460 = vunpack.c.l.b16 %v388
  %v461 = vunpack.c.l.b16 %v389
  %v462 = vunpack.c.l.b16 %v390
  %v463 = vunpack.c.l.b16 %v391
  %v464 = vunpack.c.l.b16 %v392
  %v465 = vunpack.c.l.b16 %v393
  %v466 = vunpack.c.l.b16 %v394
  %v467 = vunpack.c.l.b16 %v395
  %v468 = vunpack.c.l.b16 %v396
  %v469 = vunpack.c.l.b16 %v397
  %v470 = vunpack.c.l.b16 %v398
  %v471 = vunpack.c.l.b16 %v399
  %v472 = vunpack.c.l.b16 %v400
  %v473 = vunpack.c.l.b16 %v401
  %v474 = vunpack.c.l.b16 %v402
  %v475 = vunpack.c.l.b16 %v403
  %v476 = vunpack.c.l.b16 %v404
  %v477 = vunpack.c.l.b16 %v405
  %v478 = vunpack.c.l.b16 %v406
  %v479 = vunpack.c.l.b16 %v407
  %v480 = vunpack.c.l.b16 %v408
  %v481 = vunpack.c.l.b16 %v409
  %v482 = vunpack.c.l.b16 %v410
  %v483 = vpack.c.b16 %v448, %v447
  %v484 = vpack.c.b16 %v450, %v449
  %v485 = vpack.c.b16 %v452, %v451
  %v486 = vpack.c.b16 %v454, %v453
  %v487 = vpack.c.b16 %v456, %v455
  %v488 = vpack.c.b16 %v458, %v457
  %v489 = vpack.c.b16 %v460, %v459
  %v490 = vpack.c.b16 %v462, %v461
  %v491 = vpack.c.b16 %v464, %v463
  %v492 = vpack.c.b16 %v466, %v465
  %v493 = vpack.c.b16 %v468, %v467
  %v494 = vpack.c.b16 %v470, %v469
  %v495 = vpack.c.b16 %v472, %v471
  %v496 = vpack.c.b16 %v474, %v473
  %v497 = vpack.c.b16 %v476, %v475
  %v498 = vpack.c.b16 %v478, %v477
  %v499 = vpack.c.b16 %v480, %v479
  %v500 = vpack.c.b16 %v482, %v481
  %v502 = vsel %vm163, %v483, 0
  %v505 = vsel %vm163, %v484, 0
  %v508 = vsel %vm163, %v485, 0
  %v511 = vsel %vm163, %v486, 0
  %v514 = vsel %vm163, %v487, 0
  %v517 = vsel %vm163, %v488, 0
  %v520 = vsel %vm163, %v489, 0
  %v523 = vsel %vm163, %v490, 0
  %v526 = vsel %vm163, %v491, 0
  %v529 = vsel %vm163, %v492, 0
  %v532 = vsel %vm163, %v493, 0
  %v535 = vsel %vm163, %v494, 0
  %v538 = vsel %vm163, %v495, 0
  %v541 = vsel %vm163, %v496, 0
  %v544 = vsel %vm163, %v497, 0
  %v547 = vsel %vm163, %v498, 0
  %v550 = vsel %vm163, %v499, 0
  %v553 = vsel %vm163, %v500, 0
  %555 = vmatpush.bf16.msra.mxu0 0
  %556 = vmatpush.bf16.msra.mxu0 0
  %557 = vmatpush.bf16.msra.mxu0 0
  %558 = vmatpush.bf16.msra.mxu0 0
  %559 = vmatpush.bf16.msra.mxu0 0
  %560 = vmatpush.bf16.msra.mxu0 0
  %561 = vmatpush.bf16.msra.mxu0 0
  %562 = vmatpush.bf16.msra.mxu0 %v161
  %563 = vmatmul.bf16.gmra.mxu0 %v502
  %v564 = vpop.f32.mrf.mxu0
  %v565 = vadd.f32 %v66, %v564
  %v566 = vpop.f32.mrf.mxu0
  %v567 = vadd.f32 %v66, %v566
  %568 = vmatmul.bf16.gmra.mxu0 %v505
  %v569 = vpop.f32.mrf.mxu0
  %v570 = vadd.f32 %v66, %v569
  %v571 = vpop.f32.mrf.mxu0
  %v572 = vadd.f32 %v66, %v571
  %573 = vmatmul.bf16.gmra.mxu0 %v508
  %v574 = vpop.f32.mrf.mxu0
  %v575 = vadd.f32 %v66, %v574
  %v576 = vpop.f32.mrf.mxu0
  %v577 = vadd.f32 %v66, %v576
  %578 = vmatmul.bf16.gmra.mxu0 %v511
  %v579 = vpop.f32.mrf.mxu0
  %v580 = vadd.f32 %v66, %v579
  %v581 = vpop.f32.mrf.mxu0
  %v582 = vadd.f32 %v66, %v581
  %583 = vmatmul.bf16.gmra.mxu0 %v514
  %v584 = vpop.f32.mrf.mxu0
  %v585 = vadd.f32 %v66, %v584
  %v586 = vpop.f32.mrf.mxu0
  %v587 = vadd.f32 %v66, %v586
  %588 = vmatmul.bf16.gmra.mxu0 %v517
  %v589 = vpop.f32.mrf.mxu0
  %v590 = vadd.f32 %v66, %v589
  %v591 = vpop.f32.mrf.mxu0
  %v592 = vadd.f32 %v66, %v591
  %593 = vmatmul.bf16.gmra.mxu0 %v520
  %v594 = vpop.f32.mrf.mxu0
  %v595 = vadd.f32 %v66, %v594
  %v596 = vpop.f32.mrf.mxu0
  %v597 = vadd.f32 %v66, %v596
  %598 = vmatmul.bf16.gmra.mxu0 %v523
  %v599 = vpop.f32.mrf.mxu0
  %v600 = vadd.f32 %v66, %v599
  %v601 = vpop.f32.mrf.mxu0
  %v602 = vadd.f32 %v66, %v601
  %603 = vmatmul.bf16.gmra.mxu0 %v526
  %v604 = vpop.f32.mrf.mxu0
  %v605 = vadd.f32 %v66, %v604
  %v606 = vpop.f32.mrf.mxu0
  %v607 = vadd.f32 %v66, %v606
  %608 = vmatmul.bf16.gmra.mxu0 %v529
  %v609 = vpop.f32.mrf.mxu0
  %v610 = vadd.f32 %v66, %v609
  %v611 = vpop.f32.mrf.mxu0
  %v612 = vadd.f32 %v66, %v611
  %613 = vmatmul.bf16.gmra.mxu0 %v532
  %v614 = vpop.f32.mrf.mxu0
  %v615 = vadd.f32 %v66, %v614
  %v616 = vpop.f32.mrf.mxu0
  %v617 = vadd.f32 %v66, %v616
  %618 = vmatmul.bf16.gmra.mxu0 %v535
  %v619 = vpop.f32.mrf.mxu0
  %v620 = vadd.f32 %v66, %v619
  %v621 = vpop.f32.mrf.mxu0
  %v622 = vadd.f32 %v66, %v621
  %623 = vmatmul.bf16.gmra.mxu0 %v538
  %v624 = vpop.f32.mrf.mxu0
  %v625 = vadd.f32 %v66, %v624
  %v626 = vpop.f32.mrf.mxu0
  %v627 = vadd.f32 %v66, %v626
  %628 = vmatmul.bf16.gmra.mxu0 %v541
  %v629 = vpop.f32.mrf.mxu0
  %v630 = vadd.f32 %v66, %v629
  %v631 = vpop.f32.mrf.mxu0
  %v632 = vadd.f32 %v66, %v631
  %633 = vmatmul.bf16.gmra.mxu0 %v544
  %v634 = vpop.f32.mrf.mxu0
  %v635 = vadd.f32 %v66, %v634
  %v636 = vpop.f32.mrf.mxu0
  %v637 = vadd.f32 %v66, %v636
  %638 = vmatmul.bf16.gmra.mxu0 %v547
  %v639 = vpop.f32.mrf.mxu0
  %v640 = vadd.f32 %v66, %v639
  %v641 = vpop.f32.mrf.mxu0
  %v642 = vadd.f32 %v66, %v641
  %643 = vmatmul.bf16.gmra.mxu0 %v550
  %v644 = vpop.f32.mrf.mxu0
  %v645 = vadd.f32 %v66, %v644
  %v646 = vpop.f32.mrf.mxu0
  %v647 = vadd.f32 %v66, %v646
  %648 = vmatmul.bf16.gmra.mxu0 %v553
  %v649 = vpop.f32.mrf.mxu0
  %v650 = vadd.f32 %v66, %v649
  %v651 = vpop.f32.mrf.mxu0
  %v652 = vadd.f32 %v66, %v651
  %653 = vdwg.mxu0
  %v654 = vmax.f32 %v565, 0.0
  %v655 = vmax.f32 %v567, 0.0
  %v656 = vmax.f32 %v570, 0.0
  %v657 = vmax.f32 %v572, 0.0
  %v658 = vmax.f32 %v575, 0.0
  %v659 = vmax.f32 %v577, 0.0
  %v660 = vmax.f32 %v580, 0.0
  %v661 = vmax.f32 %v582, 0.0
  %v662 = vmax.f32 %v585, 0.0
  %v663 = vmax.f32 %v587, 0.0
  %v664 = vmax.f32 %v590, 0.0
  %v665 = vmax.f32 %v592, 0.0
  %v666 = vmax.f32 %v595, 0.0
  %v667 = vmax.f32 %v597, 0.0
  %v668 = vmax.f32 %v600, 0.0
  %v669 = vmax.f32 %v602, 0.0
  %v670 = vmax.f32 %v605, 0.0
  %v671 = vmax.f32 %v607, 0.0
  %v672 = vmax.f32 %v610, 0.0
  %v673 = vmax.f32 %v612, 0.0
  %v674 = vmax.f32 %v615, 0.0
  %v675 = vmax.f32 %v617, 0.0
  %v676 = vmax.f32 %v620, 0.0
  %v677 = vmax.f32 %v622, 0.0
  %v678 = vmax.f32 %v625, 0.0
  %v679 = vmax.f32 %v627, 0.0
  %v680 = vmax.f32 %v630, 0.0
  %v681 = vmax.f32 %v632, 0.0
  %v682 = vmax.f32 %v635, 0.0
  %v683 = vmax.f32 %v637, 0.0
  %v684 = vmax.f32 %v640, 0.0
  %v685 = vmax.f32 %v642, 0.0
  %v686 = vmax.f32 %v645, 0.0
  %v687 = vmax.f32 %v647, 0.0
  %v688 = vmax.f32 %v650, 0.0
  %v689 = vmax.f32 %v652, 0.0
  %v690 = vpack.c.bf16 %v655, %v654
  %v691 = vpack.c.bf16 %v657, %v656
  %v692 = vpack.c.bf16 %v659, %v658
  %v693 = vpack.c.bf16 %v661, %v660
  %v694 = vpack.c.bf16 %v663, %v662
  %v695 = vpack.c.bf16 %v665, %v664
  %v696 = vpack.c.bf16 %v667, %v666
  %v697 = vpack.c.bf16 %v669, %v668
  %v698 = vpack.c.bf16 %v671, %v670
  %v699 = vpack.c.bf16 %v673, %v672
  %v700 = vpack.c.bf16 %v675, %v674
  %v701 = vpack.c.bf16 %v677, %v676
  %v702 = vpack.c.bf16 %v679, %v678
  %v703 = vpack.c.bf16 %v681, %v680
  %v704 = vpack.c.bf16 %v683, %v682
  %v705 = vpack.c.bf16 %v685, %v684
  %v706 = vpack.c.bf16 %v687, %v686
  %v707 = vpack.c.bf16 %v689, %v688
  %v708 = vld [vmem:[%s2 + $0x10] sm:$0xf]
  %v709 = vld [vmem:[%s2 + $0x14] sm:$0xf]
  %v710 = vld [vmem:[%s2 + $0x18] sm:$0xf]
  %v711 = vld [vmem:[%s2 + $0x1c] sm:$0xf]
  %v716 = vunpack.c.l.b16 %v708
  %v717 = vunpack.c.l.b16 %v709
  %v718 = vunpack.c.l.b16 %v710
  %v719 = vunpack.c.l.b16 %v711
  %v720 = vpack.c.b16 %v717, %v716
  %v721 = vpack.c.b16 %v719, %v718
  %vm724 = vcmask 261120
  %v726 = vsel %vm724, %v690, 0
  %v729 = vsel %vm724, %v691, 0
  %v732 = vsel %vm724, %v692, 0
  %v735 = vsel %vm724, %v693, 0
  %v738 = vsel %vm724, %v694, 0
  %v741 = vsel %vm724, %v695, 0
  %v744 = vsel %vm724, %v696, 0
  %v747 = vsel %vm724, %v697, 0
  %v750 = vsel %vm724, %v698, 0
  %v753 = vsel %vm724, %v699, 0
  %v756 = vsel %vm724, %v700, 0
  %v759 = vsel %vm724, %v701, 0
  %v762 = vsel %vm724, %v702, 0
  %v765 = vsel %vm724, %v703, 0
  %v768 = vsel %vm724, %v704, 0
  %v771 = vsel %vm724, %v705, 0
  %v774 = vsel %vm724, %v706, 0
  %v777 = vsel %vm724, %v707, 0
  %779 = vmatpush.bf16.msra.mxu0 0
  %780 = vmatpush.bf16.msra.mxu0 0
  %781 = vmatpush.bf16.msra.mxu0 0
  %782 = vmatpush.bf16.msra.mxu0 0
  %783 = vmatpush.bf16.msra.mxu0 0
  %784 = vmatpush.bf16.msra.mxu0 0
  %785 = vmatpush.bf16.msra.mxu0 %v721
  %786 = vmatpush.bf16.msra.mxu0 %v720
  %787 = vmatmul.bf16.gmra.mxu0 %v726
  %v788 = vpop.f32.mrf.mxu0
  %v789 = vadd.f32 0.0, %v788
  %v790 = vpop.f32.mrf.mxu0
  %v791 = vadd.f32 0.0, %v790
  %792 = vmatmul.bf16.gmra.mxu0 %v729
  %v793 = vpop.f32.mrf.mxu0
  %v794 = vadd.f32 0.0, %v793
  %v795 = vpop.f32.mrf.mxu0
  %v796 = vadd.f32 0.0, %v795
  %797 = vmatmul.bf16.gmra.mxu0 %v732
  %v798 = vpop.f32.mrf.mxu0
  %v799 = vadd.f32 0.0, %v798
  %v800 = vpop.f32.mrf.mxu0
  %v801 = vadd.f32 0.0, %v800
  %802 = vmatmul.bf16.gmra.mxu0 %v735
  %v803 = vpop.f32.mrf.mxu0
  %v804 = vadd.f32 0.0, %v803
  %v805 = vpop.f32.mrf.mxu0
  %v806 = vadd.f32 0.0, %v805
  %807 = vmatmul.bf16.gmra.mxu0 %v738
  %v808 = vpop.f32.mrf.mxu0
  %v809 = vadd.f32 0.0, %v808
  %v810 = vpop.f32.mrf.mxu0
  %v811 = vadd.f32 0.0, %v810
  %812 = vmatmul.bf16.gmra.mxu0 %v741
  %v813 = vpop.f32.mrf.mxu0
  %v814 = vadd.f32 0.0, %v813
  %v815 = vpop.f32.mrf.mxu0
  %v816 = vadd.f32 0.0, %v815
  %817 = vmatmul.bf16.gmra.mxu0 %v744
  %v818 = vpop.f32.mrf.mxu0
  %v819 = vadd.f32 0.0, %v818
  %v820 = vpop.f32.mrf.mxu0
  %v821 = vadd.f32 0.0, %v820
  %822 = vmatmul.bf16.gmra.mxu0 %v747
  %v823 = vpop.f32.mrf.mxu0
  %v824 = vadd.f32 0.0, %v823
  %v825 = vpop.f32.mrf.mxu0
  %v826 = vadd.f32 0.0, %v825
  %827 = vmatmul.bf16.gmra.mxu0 %v750
  %v828 = vpop.f32.mrf.mxu0
  %v829 = vadd.f32 0.0, %v828
  %v830 = vpop.f32.mrf.mxu0
  %v831 = vadd.f32 0.0, %v830
  %832 = vmatmul.bf16.gmra.mxu0 %v753
  %v833 = vpop.f32.mrf.mxu0
  %v834 = vadd.f32 0.0, %v833
  %v835 = vpop.f32.mrf.mxu0
  %v836 = vadd.f32 0.0, %v835
  %837 = vmatmul.bf16.gmra.mxu0 %v756
  %v838 = vpop.f32.mrf.mxu0
  %v839 = vadd.f32 0.0, %v838
  %v840 = vpop.f32.mrf.mxu0
  %v841 = vadd.f32 0.0, %v840
  %842 = vmatmul.bf16.gmra.mxu0 %v759
  %v843 = vpop.f32.mrf.mxu0
  %v844 = vadd.f32 0.0, %v843
  %v845 = vpop.f32.mrf.mxu0
  %v846 = vadd.f32 0.0, %v845
  %847 = vmatmul.bf16.gmra.mxu0 %v762
  %v848 = vpop.f32.mrf.mxu0
  %v849 = vadd.f32 0.0, %v848
  %v850 = vpop.f32.mrf.mxu0
  %v851 = vadd.f32 0.0, %v850
  %852 = vmatmul.bf16.gmra.mxu0 %v765
  %v853 = vpop.f32.mrf.mxu0
  %v854 = vadd.f32 0.0, %v853
  %v855 = vpop.f32.mrf.mxu0
  %v856 = vadd.f32 0.0, %v855
  %857 = vmatmul.bf16.gmra.mxu0 %v768
  %v858 = vpop.f32.mrf.mxu0
  %v859 = vadd.f32 0.0, %v858
  %v860 = vpop.f32.mrf.mxu0
  %v861 = vadd.f32 0.0, %v860
  %862 = vmatmul.bf16.gmra.mxu0 %v771
  %v863 = vpop.f32.mrf.mxu0
  %v864 = vadd.f32 0.0, %v863
  %v865 = vpop.f32.mrf.mxu0
  %v866 = vadd.f32 0.0, %v865
  %867 = vmatmul.bf16.gmra.mxu0 %v774
  %v868 = vpop.f32.mrf.mxu0
  %v869 = vadd.f32 0.0, %v868
  %v870 = vpop.f32.mrf.mxu0
  %v871 = vadd.f32 0.0, %v870
  %872 = vmatmul.bf16.gmra.mxu0 %v777
  %v873 = vpop.f32.mrf.mxu0
  %v874 = vadd.f32 0.0, %v873
  %v875 = vpop.f32.mrf.mxu0
  %v876 = vadd.f32 0.0, %v875
  %877 = vdwg.mxu0
  %v882 = vunpack.c.l.b16 %v371
  %v883 = vunpack.c.l.b16 %v372
  %v884 = vunpack.c.l.b16 %v373
  %v885 = vunpack.c.l.b16 %v374
  %v886 = vpack.c.b16 %v883, %v882
  %v887 = vpack.c.b16 %v885, %v884
  %v891 = vsel %vm724, %v353, 0
  %v894 = vsel %vm724, %v354, 0
  %v897 = vsel %vm724, %v355, 0
  %v900 = vsel %vm724, %v356, 0
  %v903 = vsel %vm724, %v357, 0
  %v906 = vsel %vm724, %v358, 0
  %v909 = vsel %vm724, %v359, 0
  %v912 = vsel %vm724, %v360, 0
  %v915 = vsel %vm724, %v361, 0
  %v918 = vsel %vm724, %v362, 0
  %v921 = vsel %vm724, %v363, 0
  %v924 = vsel %vm724, %v364, 0
  %v927 = vsel %vm724, %v365, 0
  %v930 = vsel %vm724, %v366, 0
  %v933 = vsel %vm724, %v367, 0
  %v936 = vsel %vm724, %v368, 0
  %v939 = vsel %vm724, %v369, 0
  %v942 = vsel %vm724, %v370, 0
  %944 = vmatpush.bf16.msra.mxu0 0
  %945 = vmatpush.bf16.msra.mxu0 0
  %946 = vmatpush.bf16.msra.mxu0 0
  %947 = vmatpush.bf16.msra.mxu0 0
  %948 = vmatpush.bf16.msra.mxu0 0
  %949 = vmatpush.bf16.msra.mxu0 0
  %950 = vmatpush.bf16.msra.mxu0 %v887
  %951 = vmatpush.bf16.msra.mxu0 %v886
  %952 = vmatmul.bf16.gmra.mxu0 %v891
  %v953 = vpop.f32.mrf.mxu0
  %v954 = vadd.f32 %v789, %v953
  %v955 = vpop.f32.mrf.mxu0
  %v956 = vadd.f32 %v791, %v955
  %957 = vmatmul.bf16.gmra.mxu0 %v894
  %v958 = vpop.f32.mrf.mxu0
  %v959 = vadd.f32 %v794, %v958
  %v960 = vpop.f32.mrf.mxu0
  %v961 = vadd.f32 %v796, %v960
  %962 = vmatmul.bf16.gmra.mxu0 %v897
  %v963 = vpop.f32.mrf.mxu0
  %v964 = vadd.f32 %v799, %v963
  %v965 = vpop.f32.mrf.mxu0
  %v966 = vadd.f32 %v801, %v965
  %967 = vmatmul.bf16.gmra.mxu0 %v900
  %v968 = vpop.f32.mrf.mxu0
  %v969 = vadd.f32 %v804, %v968
  %v970 = vpop.f32.mrf.mxu0
  %v971 = vadd.f32 %v806, %v970
  %972 = vmatmul.bf16.gmra.mxu0 %v903
  %v973 = vpop.f32.mrf.mxu0
  %v974 = vadd.f32 %v809, %v973
  %v975 = vpop.f32.mrf.mxu0
  %v976 = vadd.f32 %v811, %v975
  %977 = vmatmul.bf16.gmra.mxu0 %v906
  %v978 = vpop.f32.mrf.mxu0
  %v979 = vadd.f32 %v814, %v978
  %v980 = vpop.f32.mrf.mxu0
  %v981 = vadd.f32 %v816, %v980
  %982 = vmatmul.bf16.gmra.mxu0 %v909
  %v983 = vpop.f32.mrf.mxu0
  %v984 = vadd.f32 %v819, %v983
  %v985 = vpop.f32.mrf.mxu0
  %v986 = vadd.f32 %v821, %v985
  %987 = vmatmul.bf16.gmra.mxu0 %v912
  %v988 = vpop.f32.mrf.mxu0
  %v989 = vadd.f32 %v824, %v988
  %v990 = vpop.f32.mrf.mxu0
  %v991 = vadd.f32 %v826, %v990
  %992 = vmatmul.bf16.gmra.mxu0 %v915
  %v993 = vpop.f32.mrf.mxu0
  %v994 = vadd.f32 %v829, %v993
  %v995 = vpop.f32.mrf.mxu0
  %v996 = vadd.f32 %v831, %v995
  %997 = vmatmul.bf16.gmra.mxu0 %v918
  %v998 = vpop.f32.mrf.mxu0
  %v999 = vadd.f32 %v834, %v998
  %v1000 = vpop.f32.mrf.mxu0
  %v1001 = vadd.f32 %v836, %v1000
  %1002 = vmatmul.bf16.gmra.mxu0 %v921
  %v1003 = vpop.f32.mrf.mxu0
  %v1004 = vadd.f32 %v839, %v1003
  %v1005 = vpop.f32.mrf.mxu0
  %v1006 = vadd.f32 %v841, %v1005
  %1007 = vmatmul.bf16.gmra.mxu0 %v924
  %v1008 = vpop.f32.mrf.mxu0
  %v1009 = vadd.f32 %v844, %v1008
  %v1010 = vpop.f32.mrf.mxu0
  %v1011 = vadd.f32 %v846, %v1010
  %1012 = vmatmul.bf16.gmra.mxu0 %v927
  %v1013 = vpop.f32.mrf.mxu0
  %v1014 = vadd.f32 %v849, %v1013
  %v1015 = vpop.f32.mrf.mxu0
  %v1016 = vadd.f32 %v851, %v1015
  %1017 = vmatmul.bf16.gmra.mxu0 %v930
  %v1018 = vpop.f32.mrf.mxu0
  %v1019 = vadd.f32 %v854, %v1018
  %v1020 = vpop.f32.mrf.mxu0
  %v1021 = vadd.f32 %v856, %v1020
  %1022 = vmatmul.bf16.gmra.mxu0 %v933
  %v1023 = vpop.f32.mrf.mxu0
  %v1024 = vadd.f32 %v859, %v1023
  %v1025 = vpop.f32.mrf.mxu0
  %v1026 = vadd.f32 %v861, %v1025
  %1027 = vmatmul.bf16.gmra.mxu0 %v936
  %v1028 = vpop.f32.mrf.mxu0
  %v1029 = vadd.f32 %v864, %v1028
  %v1030 = vpop.f32.mrf.mxu0
  %v1031 = vadd.f32 %v866, %v1030
  %1032 = vmatmul.bf16.gmra.mxu0 %v939
  %v1033 = vpop.f32.mrf.mxu0
  %v1034 = vadd.f32 %v869, %v1033
  %v1035 = vpop.f32.mrf.mxu0
  %v1036 = vadd.f32 %v871, %v1035
  %1037 = vmatmul.bf16.gmra.mxu0 %v942
  %v1038 = vpop.f32.mrf.mxu0
  %v1039 = vadd.f32 %v874, %v1038
  %v1040 = vpop.f32.mrf.mxu0
  %v1041 = vadd.f32 %v876, %v1040
  %1042 = vdwg.mxu0
  %v1043 = vld [vmem:[%s0 + $0x120] sm:$0xf]
  %v1044 = vld [vmem:[%s0 + $0x124] sm:$0xf]
  %v1045 = vld [vmem:[%s0 + $0x128] sm:$0xf]
  %v1046 = vld [vmem:[%s0 + $0x12c] sm:$0xf]
  %v1047 = vld [vmem:[%s0 + $0x130] sm:$0xf]
  %v1048 = vld [vmem:[%s0 + $0x134] sm:$0xf]
  %v1049 = vld [vmem:[%s0 + $0x138] sm:$0xf]
  %v1050 = vld [vmem:[%s0 + $0x13c] sm:$0xf]
  %v1051 = vld [vmem:[%s0 + $0x140] sm:$0xf]
  %v1052 = vld [vmem:[%s0 + $0x144] sm:$0xf]
  %v1053 = vld [vmem:[%s0 + $0x148] sm:$0xf]
  %v1054 = vld [vmem:[%s0 + $0x14c] sm:$0xf]
  %v1055 = vld [vmem:[%s0 + $0x150] sm:$0xf]
  %v1056 = vld [vmem:[%s0 + $0x154] sm:$0xf]
  %v1057 = vld [vmem:[%s0 + $0x158] sm:$0xf]
  %v1058 = vld [vmem:[%s0 + $0x15c] sm:$0xf]
  %v1059 = vld [vmem:[%s0 + $0x160] sm:$0xf]
  %v1060 = vld [vmem:[%s0 + $0x164] sm:$0xf]
  %v1061 = vld [vmem:[%s0 + $0x168] sm:$0xf]
  %v1062 = vld [vmem:[%s0 + $0x16c] sm:$0xf]
  %v1063 = vld [vmem:[%s0 + $0x170] sm:$0xf]
  %v1064 = vld [vmem:[%s0 + $0x174] sm:$0xf]
  %v1065 = vld [vmem:[%s0 + $0x178] sm:$0xf]
  %v1066 = vld [vmem:[%s0 + $0x17c] sm:$0xf]
  %v1067 = vld [vmem:[%s0 + $0x180] sm:$0xf]
  %v1068 = vld [vmem:[%s0 + $0x184] sm:$0xf]
  %v1069 = vld [vmem:[%s0 + $0x188] sm:$0xf]
  %v1070 = vld [vmem:[%s0 + $0x18c] sm:$0xf]
  %v1071 = vld [vmem:[%s0 + $0x190] sm:$0xf]
  %v1072 = vld [vmem:[%s0 + $0x194] sm:$0xf]
  %v1073 = vld [vmem:[%s0 + $0x198] sm:$0xf]
  %v1074 = vld [vmem:[%s0 + $0x19c] sm:$0xf]
  %v1075 = vld [vmem:[%s0 + $0x1a0] sm:$0xf]
  %v1076 = vld [vmem:[%s0 + $0x1a4] sm:$0xf]
  %v1077 = vld [vmem:[%s0 + $0x1a8] sm:$0xf]
  %v1078 = vld [vmem:[%s0 + $0x1ac] sm:$0xf]
  %v1115 = vunpack.c.l.b16 %v1043
  %v1116 = vunpack.c.l.b16 %v1044
  %v1117 = vunpack.c.l.b16 %v1045
  %v1118 = vunpack.c.l.b16 %v1046
  %v1119 = vunpack.c.l.b16 %v1047
  %v1120 = vunpack.c.l.b16 %v1048
  %v1121 = vunpack.c.l.b16 %v1049
  %v1122 = vunpack.c.l.b16 %v1050
  %v1123 = vunpack.c.l.b16 %v1051
  %v1124 = vunpack.c.l.b16 %v1052
  %v1125 = vunpack.c.l.b16 %v1053
  %v1126 = vunpack.c.l.b16 %v1054
  %v1127 = vunpack.c.l.b16 %v1055
  %v1128 = vunpack.c.l.b16 %v1056
  %v1129 = vunpack.c.l.b16 %v1057
  %v1130 = vunpack.c.l.b16 %v1058
  %v1131 = vunpack.c.l.b16 %v1059
  %v1132 = vunpack.c.l.b16 %v1060
  %v1133 = vunpack.c.l.b16 %v1061
  %v1134 = vunpack.c.l.b16 %v1062
  %v1135 = vunpack.c.l.b16 %v1063
  %v1136 = vunpack.c.l.b16 %v1064
  %v1137 = vunpack.c.l.b16 %v1065
  %v1138 = vunpack.c.l.b16 %v1066
  %v1139 = vunpack.c.l.b16 %v1067
  %v1140 = vunpack.c.l.b16 %v1068
  %v1141 = vunpack.c.l.b16 %v1069
  %v1142 = vunpack.c.l.b16 %v1070
  %v1143 = vunpack.c.l.b16 %v1071
  %v1144 = vunpack.c.l.b16 %v1072
  %v1145 = vunpack.c.l.b16 %v1073
  %v1146 = vunpack.c.l.b16 %v1074
  %v1147 = vunpack.c.l.b16 %v1075
  %v1148 = vunpack.c.l.b16 %v1076
  %v1149 = vunpack.c.l.b16 %v1077
  %v1150 = vunpack.c.l.b16 %v1078
  %v1151 = vpack.c.b16 %v1116, %v1115
  %v1152 = vpack.c.b16 %v1118, %v1117
  %v1153 = vpack.c.b16 %v1120, %v1119
  %v1154 = vpack.c.b16 %v1122, %v1121
  %v1155 = vpack.c.b16 %v1124, %v1123
  %v1156 = vpack.c.b16 %v1126, %v1125
  %v1157 = vpack.c.b16 %v1128, %v1127
  %v1158 = vpack.c.b16 %v1130, %v1129
  %v1159 = vpack.c.b16 %v1132, %v1131
  %v1160 = vpack.c.b16 %v1134, %v1133
  %v1161 = vpack.c.b16 %v1136, %v1135
  %v1162 = vpack.c.b16 %v1138, %v1137
  %v1163 = vpack.c.b16 %v1140, %v1139
  %v1164 = vpack.c.b16 %v1142, %v1141
  %v1165 = vpack.c.b16 %v1144, %v1143
  %v1166 = vpack.c.b16 %v1146, %v1145
  %v1167 = vpack.c.b16 %v1148, %v1147
  %v1168 = vpack.c.b16 %v1150, %v1149
  %v1170 = vsel %vm163, %v1151, 0
  %v1173 = vsel %vm163, %v1152, 0
  %v1176 = vsel %vm163, %v1153, 0
  %v1179 = vsel %vm163, %v1154, 0
  %v1182 = vsel %vm163, %v1155, 0
  %v1185 = vsel %vm163, %v1156, 0
  %v1188 = vsel %vm163, %v1157, 0
  %v1191 = vsel %vm163, %v1158, 0
  %v1194 = vsel %vm163, %v1159, 0
  %v1197 = vsel %vm163, %v1160, 0
  %v1200 = vsel %vm163, %v1161, 0
  %v1203 = vsel %vm163, %v1162, 0
  %v1206 = vsel %vm163, %v1163, 0
  %v1209 = vsel %vm163, %v1164, 0
  %v1212 = vsel %vm163, %v1165, 0
  %v1215 = vsel %vm163, %v1166, 0
  %v1218 = vsel %vm163, %v1167, 0
  %v1221 = vsel %vm163, %v1168, 0
  %1223 = vmatpush.bf16.msra.mxu0 0
  %1224 = vmatpush.bf16.msra.mxu0 0
  %1225 = vmatpush.bf16.msra.mxu0 0
  %1226 = vmatpush.bf16.msra.mxu0 0
  %1227 = vmatpush.bf16.msra.mxu0 0
  %1228 = vmatpush.bf16.msra.mxu0 0
  %1229 = vmatpush.bf16.msra.mxu0 0
  %1230 = vmatpush.bf16.msra.mxu0 %v161
  %1231 = vmatmul.bf16.gmra.mxu0 %v1170
  %v1232 = vpop.f32.mrf.mxu0
  %v1233 = vadd.f32 %v66, %v1232
  %v1234 = vpop.f32.mrf.mxu0
  %v1235 = vadd.f32 %v66, %v1234
  %1236 = vmatmul.bf16.gmra.mxu0 %v1173
  %v1237 = vpop.f32.mrf.mxu0
  %v1238 = vadd.f32 %v66, %v1237
  %v1239 = vpop.f32.mrf.mxu0
  %v1240 = vadd.f32 %v66, %v1239
  %1241 = vmatmul.bf16.gmra.mxu0 %v1176
  %v1242 = vpop.f32.mrf.mxu0
  %v1243 = vadd.f32 %v66, %v1242
  %v1244 = vpop.f32.mrf.mxu0
  %v1245 = vadd.f32 %v66, %v1244
  %1246 = vmatmul.bf16.gmra.mxu0 %v1179
  %v1247 = vpop.f32.mrf.mxu0
  %v1248 = vadd.f32 %v66, %v1247
  %v1249 = vpop.f32.mrf.mxu0
  %v1250 = vadd.f32 %v66, %v1249
  %1251 = vmatmul.bf16.gmra.mxu0 %v1182
  %v1252 = vpop.f32.mrf.mxu0
  %v1253 = vadd.f32 %v66, %v1252
  %v1254 = vpop.f32.mrf.mxu0
  %v1255 = vadd.f32 %v66, %v1254
  %1256 = vmatmul.bf16.gmra.mxu0 %v1185
  %v1257 = vpop.f32.mrf.mxu0
  %v1258 = vadd.f32 %v66, %v1257
  %v1259 = vpop.f32.mrf.mxu0
  %v1260 = vadd.f32 %v66, %v1259
  %1261 = vmatmul.bf16.gmra.mxu0 %v1188
  %v1262 = vpop.f32.mrf.mxu0
  %v1263 = vadd.f32 %v66, %v1262
  %v1264 = vpop.f32.mrf.mxu0
  %v1265 = vadd.f32 %v66, %v1264
  %1266 = vmatmul.bf16.gmra.mxu0 %v1191
  %v1267 = vpop.f32.mrf.mxu0
  %v1268 = vadd.f32 %v66, %v1267
  %v1269 = vpop.f32.mrf.mxu0
  %v1270 = vadd.f32 %v66, %v1269
  %1271 = vmatmul.bf16.gmra.mxu0 %v1194
  %v1272 = vpop.f32.mrf.mxu0
  %v1273 = vadd.f32 %v66, %v1272
  %v1274 = vpop.f32.mrf.mxu0
  %v1275 = vadd.f32 %v66, %v1274
  %1276 = vmatmul.bf16.gmra.mxu0 %v1197
  %v1277 = vpop.f32.mrf.mxu0
  %v1278 = vadd.f32 %v66, %v1277
  %v1279 = vpop.f32.mrf.mxu0
  %v1280 = vadd.f32 %v66, %v1279
  %1281 = vmatmul.bf16.gmra.mxu0 %v1200
  %v1282 = vpop.f32.mrf.mxu0
  %v1283 = vadd.f32 %v66, %v1282
  %v1284 = vpop.f32.mrf.mxu0
  %v1285 = vadd.f32 %v66, %v1284
  %1286 = vmatmul.bf16.gmra.mxu0 %v1203
  %v1287 = vpop.f32.mrf.mxu0
  %v1288 = vadd.f32 %v66, %v1287
  %v1289 = vpop.f32.mrf.mxu0
  %v1290 = vadd.f32 %v66, %v1289
  %1291 = vmatmul.bf16.gmra.mxu0 %v1206
  %v1292 = vpop.f32.mrf.mxu0
  %v1293 = vadd.f32 %v66, %v1292
  %v1294 = vpop.f32.mrf.mxu0
  %v1295 = vadd.f32 %v66, %v1294
  %1296 = vmatmul.bf16.gmra.mxu0 %v1209
  %v1297 = vpop.f32.mrf.mxu0
  %v1298 = vadd.f32 %v66, %v1297
  %v1299 = vpop.f32.mrf.mxu0
  %v1300 = vadd.f32 %v66, %v1299
  %1301 = vmatmul.bf16.gmra.mxu0 %v1212
  %v1302 = vpop.f32.mrf.mxu0
  %v1303 = vadd.f32 %v66, %v1302
  %v1304 = vpop.f32.mrf.mxu0
  %v1305 = vadd.f32 %v66, %v1304
  %1306 = vmatmul.bf16.gmra.mxu0 %v1215
  %v1307 = vpop.f32.mrf.mxu0
  %v1308 = vadd.f32 %v66, %v1307
  %v1309 = vpop.f32.mrf.mxu0
  %v1310 = vadd.f32 %v66, %v1309
  %1311 = vmatmul.bf16.gmra.mxu0 %v1218
  %v1312 = vpop.f32.mrf.mxu0
  %v1313 = vadd.f32 %v66, %v1312
  %v1314 = vpop.f32.mrf.mxu0
  %v1315 = vadd.f32 %v66, %v1314
  %1316 = vmatmul.bf16.gmra.mxu0 %v1221
  %v1317 = vpop.f32.mrf.mxu0
  %v1318 = vadd.f32 %v66, %v1317
  %v1319 = vpop.f32.mrf.mxu0
  %v1320 = vadd.f32 %v66, %v1319
  %1321 = vdwg.mxu0
  %v1322 = vmax.f32 %v1233, 0.0
  %v1323 = vmax.f32 %v1235, 0.0
  %v1324 = vmax.f32 %v1238, 0.0
  %v1325 = vmax.f32 %v1240, 0.0
  %v1326 = vmax.f32 %v1243, 0.0
  %v1327 = vmax.f32 %v1245, 0.0
  %v1328 = vmax.f32 %v1248, 0.0
  %v1329 = vmax.f32 %v1250, 0.0
  %v1330 = vmax.f32 %v1253, 0.0
  %v1331 = vmax.f32 %v1255, 0.0
  %v1332 = vmax.f32 %v1258, 0.0
  %v1333 = vmax.f32 %v1260, 0.0
  %v1334 = vmax.f32 %v1263, 0.0
  %v1335 = vmax.f32 %v1265, 0.0
  %v1336 = vmax.f32 %v1268, 0.0
  %v1337 = vmax.f32 %v1270, 0.0
  %v1338 = vmax.f32 %v1273, 0.0
  %v1339 = vmax.f32 %v1275, 0.0
  %v1340 = vmax.f32 %v1278, 0.0
  %v1341 = vmax.f32 %v1280, 0.0
  %v1342 = vmax.f32 %v1283, 0.0
  %v1343 = vmax.f32 %v1285, 0.0
  %v1344 = vmax.f32 %v1288, 0.0
  %v1345 = vmax.f32 %v1290, 0.0
  %v1346 = vmax.f32 %v1293, 0.0
  %v1347 = vmax.f32 %v1295, 0.0
  %v1348 = vmax.f32 %v1298, 0.0
  %v1349 = vmax.f32 %v1300, 0.0
  %v1350 = vmax.f32 %v1303, 0.0
  %v1351 = vmax.f32 %v1305, 0.0
  %v1352 = vmax.f32 %v1308, 0.0
  %v1353 = vmax.f32 %v1310, 0.0
  %v1354 = vmax.f32 %v1313, 0.0
  %v1355 = vmax.f32 %v1315, 0.0
  %v1356 = vmax.f32 %v1318, 0.0
  %v1357 = vmax.f32 %v1320, 0.0
  %v1358 = vpack.c.bf16 %v1323, %v1322
  %v1359 = vpack.c.bf16 %v1325, %v1324
  %v1360 = vpack.c.bf16 %v1327, %v1326
  %v1361 = vpack.c.bf16 %v1329, %v1328
  %v1362 = vpack.c.bf16 %v1331, %v1330
  %v1363 = vpack.c.bf16 %v1333, %v1332
  %v1364 = vpack.c.bf16 %v1335, %v1334
  %v1365 = vpack.c.bf16 %v1337, %v1336
  %v1366 = vpack.c.bf16 %v1339, %v1338
  %v1367 = vpack.c.bf16 %v1341, %v1340
  %v1368 = vpack.c.bf16 %v1343, %v1342
  %v1369 = vpack.c.bf16 %v1345, %v1344
  %v1370 = vpack.c.bf16 %v1347, %v1346
  %v1371 = vpack.c.bf16 %v1349, %v1348
  %v1372 = vpack.c.bf16 %v1351, %v1350
  %v1373 = vpack.c.bf16 %v1353, %v1352
  %v1374 = vpack.c.bf16 %v1355, %v1354
  %v1375 = vpack.c.bf16 %v1357, %v1356
  %v1376 = vld [vmem:[%s2 + $0x20] sm:$0xf]
  %v1377 = vld [vmem:[%s2 + $0x24] sm:$0xf]
  %v1378 = vld [vmem:[%s2 + $0x28] sm:$0xf]
  %v1379 = vld [vmem:[%s2 + $0x2c] sm:$0xf]
  %v1384 = vunpack.c.l.b16 %v1376
  %v1385 = vunpack.c.l.b16 %v1377
  %v1386 = vunpack.c.l.b16 %v1378
  %v1387 = vunpack.c.l.b16 %v1379
  %v1388 = vpack.c.b16 %v1385, %v1384
  %v1389 = vpack.c.b16 %v1387, %v1386
  %v1393 = vsel %vm724, %v1358, 0
  %v1396 = vsel %vm724, %v1359, 0
  %v1399 = vsel %vm724, %v1360, 0
  %v1402 = vsel %vm724, %v1361, 0
  %v1405 = vsel %vm724, %v1362, 0
  %v1408 = vsel %vm724, %v1363, 0
  %v1411 = vsel %vm724, %v1364, 0
  %v1414 = vsel %vm724, %v1365, 0
  %v1417 = vsel %vm724, %v1366, 0
  %v1420 = vsel %vm724, %v1367, 0
  %v1423 = vsel %vm724, %v1368, 0
  %v1426 = vsel %vm724, %v1369, 0
  %v1429 = vsel %vm724, %v1370, 0
  %v1432 = vsel %vm724, %v1371, 0
  %v1435 = vsel %vm724, %v1372, 0
  %v1438 = vsel %vm724, %v1373, 0
  %v1441 = vsel %vm724, %v1374, 0
  %v1444 = vsel %vm724, %v1375, 0
  %1446 = vmatpush.bf16.msra.mxu0 0
  %1447 = vmatpush.bf16.msra.mxu0 0
  %1448 = vmatpush.bf16.msra.mxu0 0
  %1449 = vmatpush.bf16.msra.mxu0 0
  %1450 = vmatpush.bf16.msra.mxu0 0
  %1451 = vmatpush.bf16.msra.mxu0 0
  %1452 = vmatpush.bf16.msra.mxu0 %v1389
  %1453 = vmatpush.bf16.msra.mxu0 %v1388
  %1454 = vmatmul.bf16.gmra.mxu0 %v1393
  %v1455 = vpop.f32.mrf.mxu0
  %v1456 = vadd.f32 0.0, %v1455
  %v1457 = vpop.f32.mrf.mxu0
  %v1458 = vadd.f32 0.0, %v1457
  %1459 = vmatmul.bf16.gmra.mxu0 %v1396
  %v1460 = vpop.f32.mrf.mxu0
  %v1461 = vadd.f32 0.0, %v1460
  %v1462 = vpop.f32.mrf.mxu0
  %v1463 = vadd.f32 0.0, %v1462
  %1464 = vmatmul.bf16.gmra.mxu0 %v1399
  %v1465 = vpop.f32.mrf.mxu0
  %v1466 = vadd.f32 0.0, %v1465
  %v1467 = vpop.f32.mrf.mxu0
  %v1468 = vadd.f32 0.0, %v1467
  %1469 = vmatmul.bf16.gmra.mxu0 %v1402
  %v1470 = vpop.f32.mrf.mxu0
  %v1471 = vadd.f32 0.0, %v1470
  %v1472 = vpop.f32.mrf.mxu0
  %v1473 = vadd.f32 0.0, %v1472
  %1474 = vmatmul.bf16.gmra.mxu0 %v1405
  %v1475 = vpop.f32.mrf.mxu0
  %v1476 = vadd.f32 0.0, %v1475
  %v1477 = vpop.f32.mrf.mxu0
  %v1478 = vadd.f32 0.0, %v1477
  %1479 = vmatmul.bf16.gmra.mxu0 %v1408
  %v1480 = vpop.f32.mrf.mxu0
  %v1481 = vadd.f32 0.0, %v1480
  %v1482 = vpop.f32.mrf.mxu0
  %v1483 = vadd.f32 0.0, %v1482
  %1484 = vmatmul.bf16.gmra.mxu0 %v1411
  %v1485 = vpop.f32.mrf.mxu0
  %v1486 = vadd.f32 0.0, %v1485
  %v1487 = vpop.f32.mrf.mxu0
  %v1488 = vadd.f32 0.0, %v1487
  %1489 = vmatmul.bf16.gmra.mxu0 %v1414
  %v1490 = vpop.f32.mrf.mxu0
  %v1491 = vadd.f32 0.0, %v1490
  %v1492 = vpop.f32.mrf.mxu0
  %v1493 = vadd.f32 0.0, %v1492
  %1494 = vmatmul.bf16.gmra.mxu0 %v1417
  %v1495 = vpop.f32.mrf.mxu0
  %v1496 = vadd.f32 0.0, %v1495
  %v1497 = vpop.f32.mrf.mxu0
  %v1498 = vadd.f32 0.0, %v1497
  %1499 = vmatmul.bf16.gmra.mxu0 %v1420
  %v1500 = vpop.f32.mrf.mxu0
  %v1501 = vadd.f32 0.0, %v1500
  %v1502 = vpop.f32.mrf.mxu0
  %v1503 = vadd.f32 0.0, %v1502
  %1504 = vmatmul.bf16.gmra.mxu0 %v1423
  %v1505 = vpop.f32.mrf.mxu0
  %v1506 = vadd.f32 0.0, %v1505
  %v1507 = vpop.f32.mrf.mxu0
  %v1508 = vadd.f32 0.0, %v1507
  %1509 = vmatmul.bf16.gmra.mxu0 %v1426
  %v1510 = vpop.f32.mrf.mxu0
  %v1511 = vadd.f32 0.0, %v1510
  %v1512 = vpop.f32.mrf.mxu0
  %v1513 = vadd.f32 0.0, %v1512
  %1514 = vmatmul.bf16.gmra.mxu0 %v1429
  %v1515 = vpop.f32.mrf.mxu0
  %v1516 = vadd.f32 0.0, %v1515
  %v1517 = vpop.f32.mrf.mxu0
  %v1518 = vadd.f32 0.0, %v1517
  %1519 = vmatmul.bf16.gmra.mxu0 %v1432
  %v1520 = vpop.f32.mrf.mxu0
  %v1521 = vadd.f32 0.0, %v1520
  %v1522 = vpop.f32.mrf.mxu0
  %v1523 = vadd.f32 0.0, %v1522
  %1524 = vmatmul.bf16.gmra.mxu0 %v1435
  %v1525 = vpop.f32.mrf.mxu0
  %v1526 = vadd.f32 0.0, %v1525
  %v1527 = vpop.f32.mrf.mxu0
  %v1528 = vadd.f32 0.0, %v1527
  %1529 = vmatmul.bf16.gmra.mxu0 %v1438
  %v1530 = vpop.f32.mrf.mxu0
  %v1531 = vadd.f32 0.0, %v1530
  %v1532 = vpop.f32.mrf.mxu0
  %v1533 = vadd.f32 0.0, %v1532
  %1534 = vmatmul.bf16.gmra.mxu0 %v1441
  %v1535 = vpop.f32.mrf.mxu0
  %v1536 = vadd.f32 0.0, %v1535
  %v1537 = vpop.f32.mrf.mxu0
  %v1538 = vadd.f32 0.0, %v1537
  %1539 = vmatmul.bf16.gmra.mxu0 %v1444
  %v1540 = vpop.f32.mrf.mxu0
  %v1541 = vadd.f32 0.0, %v1540
  %v1542 = vpop.f32.mrf.mxu0
  %v1543 = vadd.f32 0.0, %v1542
  %1544 = vdwg.mxu0
  %v1545 = vadd.f32 %v954, %v1456
  %v1546 = vadd.f32 %v956, %v1458
  %v1547 = vadd.f32 %v959, %v1461
  %v1548 = vadd.f32 %v961, %v1463
  %v1549 = vadd.f32 %v964, %v1466
  %v1550 = vadd.f32 %v966, %v1468
  %v1551 = vadd.f32 %v969, %v1471
  %v1552 = vadd.f32 %v971, %v1473
  %v1553 = vadd.f32 %v974, %v1476
  %v1554 = vadd.f32 %v976, %v1478
  %v1555 = vadd.f32 %v979, %v1481
  %v1556 = vadd.f32 %v981, %v1483
  %v1557 = vadd.f32 %v984, %v1486
  %v1558 = vadd.f32 %v986, %v1488
  %v1559 = vadd.f32 %v989, %v1491
  %v1560 = vadd.f32 %v991, %v1493
  %v1561 = vadd.f32 %v994, %v1496
  %v1562 = vadd.f32 %v996, %v1498
  %v1563 = vadd.f32 %v999, %v1501
  %v1564 = vadd.f32 %v1001, %v1503
  %v1565 = vadd.f32 %v1004, %v1506
  %v1566 = vadd.f32 %v1006, %v1508
  %v1567 = vadd.f32 %v1009, %v1511
  %v1568 = vadd.f32 %v1011, %v1513
  %v1569 = vadd.f32 %v1014, %v1516
  %v1570 = vadd.f32 %v1016, %v1518
  %v1571 = vadd.f32 %v1019, %v1521
  %v1572 = vadd.f32 %v1021, %v1523
  %v1573 = vadd.f32 %v1024, %v1526
  %v1574 = vadd.f32 %v1026, %v1528
  %v1575 = vadd.f32 %v1029, %v1531
  %v1576 = vadd.f32 %v1031, %v1533
  %v1577 = vadd.f32 %v1034, %v1536
  %v1578 = vadd.f32 %v1036, %v1538
  %v1579 = vadd.f32 %v1039, %v1541
  %v1580 = vadd.f32 %v1041, %v1543
  %v1581 = vld [vmem:[%s0 + $0x1b0] sm:$0xf]
  %v1582 = vld [vmem:[%s0 + $0x1b4] sm:$0xf]
  %v1583 = vld [vmem:[%s0 + $0x1b8] sm:$0xf]
  %v1584 = vld [vmem:[%s0 + $0x1bc] sm:$0xf]
  %v1585 = vld [vmem:[%s0 + $0x1c0] sm:$0xf]
  %v1586 = vld [vmem:[%s0 + $0x1c4] sm:$0xf]
  %v1587 = vld [vmem:[%s0 + $0x1c8] sm:$0xf]
  %v1588 = vld [vmem:[%s0 + $0x1cc] sm:$0xf]
  %v1589 = vld [vmem:[%s0 + $0x1d0] sm:$0xf]
  %v1590 = vld [vmem:[%s0 + $0x1d4] sm:$0xf]
  %v1591 = vld [vmem:[%s0 + $0x1d8] sm:$0xf]
  %v1592 = vld [vmem:[%s0 + $0x1dc] sm:$0xf]
  %v1593 = vld [vmem:[%s0 + $0x1e0] sm:$0xf]
  %v1594 = vld [vmem:[%s0 + $0x1e4] sm:$0xf]
  %v1595 = vld [vmem:[%s0 + $0x1e8] sm:$0xf]
  %v1596 = vld [vmem:[%s0 + $0x1ec] sm:$0xf]
  %v1597 = vld [vmem:[%s0 + $0x1f0] sm:$0xf]
  %v1598 = vld [vmem:[%s0 + $0x1f4] sm:$0xf]
  %v1599 = vld [vmem:[%s0 + $0x1f8] sm:$0xf]
  %v1600 = vld [vmem:[%s0 + $0x1fc] sm:$0xf]
  %v1601 = vld [vmem:[%s0 + $0x200] sm:$0xf]
  %v1602 = vld [vmem:[%s0 + $0x204] sm:$0xf]
  %v1603 = vld [vmem:[%s0 + $0x208] sm:$0xf]
  %v1604 = vld [vmem:[%s0 + $0x20c] sm:$0xf]
  %v1605 = vld [vmem:[%s0 + $0x210] sm:$0xf]
  %v1606 = vld [vmem:[%s0 + $0x214] sm:$0xf]
  %v1607 = vld [vmem:[%s0 + $0x218] sm:$0xf]
  %v1608 = vld [vmem:[%s0 + $0x21c] sm:$0xf]
  %v1609 = vld [vmem:[%s0 + $0x220] sm:$0xf]
  %v1610 = vld [vmem:[%s0 + $0x224] sm:$0xf]
  %v1611 = vld [vmem:[%s0 + $0x228] sm:$0xf]
  %v1612 = vld [vmem:[%s0 + $0x22c] sm:$0xf]
  %v1613 = vld [vmem:[%s0 + $0x230] sm:$0xf]
  %v1614 = vld [vmem:[%s0 + $0x234] sm:$0xf]
  %v1615 = vld [vmem:[%s0 + $0x238] sm:$0xf]
  %v1616 = vld [vmem:[%s0 + $0x23c] sm:$0xf]
  %v1653 = vunpack.c.l.b16 %v1581
  %v1654 = vunpack.c.l.b16 %v1582
  %v1655 = vunpack.c.l.b16 %v1583
  %v1656 = vunpack.c.l.b16 %v1584
  %v1657 = vunpack.c.l.b16 %v1585
  %v1658 = vunpack.c.l.b16 %v1586
  %v1659 = vunpack.c.l.b16 %v1587
  %v1660 = vunpack.c.l.b16 %v1588
  %v1661 = vunpack.c.l.b16 %v1589
  %v1662 = vunpack.c.l.b16 %v1590
  %v1663 = vunpack.c.l.b16 %v1591
  %v1664 = vunpack.c.l.b16 %v1592
  %v1665 = vunpack.c.l.b16 %v1593
  %v1666 = vunpack.c.l.b16 %v1594
  %v1667 = vunpack.c.l.b16 %v1595
  %v1668 = vunpack.c.l.b16 %v1596
  %v1669 = vunpack.c.l.b16 %v1597
  %v1670 = vunpack.c.l.b16 %v1598
  %v1671 = vunpack.c.l.b16 %v1599
  %v1672 = vunpack.c.l.b16 %v1600
  %v1673 = vunpack.c.l.b16 %v1601
  %v1674 = vunpack.c.l.b16 %v1602
  %v1675 = vunpack.c.l.b16 %v1603
  %v1676 = vunpack.c.l.b16 %v1604
  %v1677 = vunpack.c.l.b16 %v1605
  %v1678 = vunpack.c.l.b16 %v1606
  %v1679 = vunpack.c.l.b16 %v1607
  %v1680 = vunpack.c.l.b16 %v1608
  %v1681 = vunpack.c.l.b16 %v1609
  %v1682 = vunpack.c.l.b16 %v1610
  %v1683 = vunpack.c.l.b16 %v1611
  %v1684 = vunpack.c.l.b16 %v1612
  %v1685 = vunpack.c.l.b16 %v1613
  %v1686 = vunpack.c.l.b16 %v1614
  %v1687 = vunpack.c.l.b16 %v1615
  %v1688 = vunpack.c.l.b16 %v1616
  %v1689 = vpack.c.b16 %v1654, %v1653
  %v1690 = vpack.c.b16 %v1656, %v1655
  %v1691 = vpack.c.b16 %v1658, %v1657
  %v1692 = vpack.c.b16 %v1660, %v1659
  %v1693 = vpack.c.b16 %v1662, %v1661
  %v1694 = vpack.c.b16 %v1664, %v1663
  %v1695 = vpack.c.b16 %v1666, %v1665
  %v1696 = vpack.c.b16 %v1668, %v1667
  %v1697 = vpack.c.b16 %v1670, %v1669
  %v1698 = vpack.c.b16 %v1672, %v1671
  %v1699 = vpack.c.b16 %v1674, %v1673
  %v1700 = vpack.c.b16 %v1676, %v1675
  %v1701 = vpack.c.b16 %v1678, %v1677
  %v1702 = vpack.c.b16 %v1680, %v1679
  %v1703 = vpack.c.b16 %v1682, %v1681
  %v1704 = vpack.c.b16 %v1684, %v1683
  %v1705 = vpack.c.b16 %v1686, %v1685
  %v1706 = vpack.c.b16 %v1688, %v1687
  %v1708 = vsel %vm163, %v1689, 0
  %v1711 = vsel %vm163, %v1690, 0
  %v1714 = vsel %vm163, %v1691, 0
  %v1717 = vsel %vm163, %v1692, 0
  %v1720 = vsel %vm163, %v1693, 0
  %v1723 = vsel %vm163, %v1694, 0
  %v1726 = vsel %vm163, %v1695, 0
  %v1729 = vsel %vm163, %v1696, 0
  %v1732 = vsel %vm163, %v1697, 0
  %v1735 = vsel %vm163, %v1698, 0
  %v1738 = vsel %vm163, %v1699, 0
  %v1741 = vsel %vm163, %v1700, 0
  %v1744 = vsel %vm163, %v1701, 0
  %v1747 = vsel %vm163, %v1702, 0
  %v1750 = vsel %vm163, %v1703, 0
  %v1753 = vsel %vm163, %v1704, 0
  %v1756 = vsel %vm163, %v1705, 0
  %v1759 = vsel %vm163, %v1706, 0
  %1761 = vmatpush.bf16.msra.mxu0 0
  %1762 = vmatpush.bf16.msra.mxu0 0
  %1763 = vmatpush.bf16.msra.mxu0 0
  %1764 = vmatpush.bf16.msra.mxu0 0
  %1765 = vmatpush.bf16.msra.mxu0 0
  %1766 = vmatpush.bf16.msra.mxu0 0
  %1767 = vmatpush.bf16.msra.mxu0 0
  %1768 = vmatpush.bf16.msra.mxu0 %v161
  %1769 = vmatmul.bf16.gmra.mxu0 %v1708
  %v1770 = vpop.f32.mrf.mxu0
  %v1771 = vadd.f32 %v66, %v1770
  %v1772 = vpop.f32.mrf.mxu0
  %v1773 = vadd.f32 %v66, %v1772
  %1774 = vmatmul.bf16.gmra.mxu0 %v1711
  %v1775 = vpop.f32.mrf.mxu0
  %v1776 = vadd.f32 %v66, %v1775
  %v1777 = vpop.f32.mrf.mxu0
  %v1778 = vadd.f32 %v66, %v1777
  %1779 = vmatmul.bf16.gmra.mxu0 %v1714
  %v1780 = vpop.f32.mrf.mxu0
  %v1781 = vadd.f32 %v66, %v1780
  %v1782 = vpop.f32.mrf.mxu0
  %v1783 = vadd.f32 %v66, %v1782
  %1784 = vmatmul.bf16.gmra.mxu0 %v1717
  %v1785 = vpop.f32.mrf.mxu0
  %v1786 = vadd.f32 %v66, %v1785
  %v1787 = vpop.f32.mrf.mxu0
  %v1788 = vadd.f32 %v66, %v1787
  %1789 = vmatmul.bf16.gmra.mxu0 %v1720
  %v1790 = vpop.f32.mrf.mxu0
  %v1791 = vadd.f32 %v66, %v1790
  %v1792 = vpop.f32.mrf.mxu0
  %v1793 = vadd.f32 %v66, %v1792
  %1794 = vmatmul.bf16.gmra.mxu0 %v1723
  %v1795 = vpop.f32.mrf.mxu0
  %v1796 = vadd.f32 %v66, %v1795
  %v1797 = vpop.f32.mrf.mxu0
  %v1798 = vadd.f32 %v66, %v1797
  %1799 = vmatmul.bf16.gmra.mxu0 %v1726
  %v1800 = vpop.f32.mrf.mxu0
  %v1801 = vadd.f32 %v66, %v1800
  %v1802 = vpop.f32.mrf.mxu0
  %v1803 = vadd.f32 %v66, %v1802
  %1804 = vmatmul.bf16.gmra.mxu0 %v1729
  %v1805 = vpop.f32.mrf.mxu0
  %v1806 = vadd.f32 %v66, %v1805
  %v1807 = vpop.f32.mrf.mxu0
  %v1808 = vadd.f32 %v66, %v1807
  %1809 = vmatmul.bf16.gmra.mxu0 %v1732
  %v1810 = vpop.f32.mrf.mxu0
  %v1811 = vadd.f32 %v66, %v1810
  %v1812 = vpop.f32.mrf.mxu0
  %v1813 = vadd.f32 %v66, %v1812
  %1814 = vmatmul.bf16.gmra.mxu0 %v1735
  %v1815 = vpop.f32.mrf.mxu0
  %v1816 = vadd.f32 %v66, %v1815
  %v1817 = vpop.f32.mrf.mxu0
  %v1818 = vadd.f32 %v66, %v1817
  %1819 = vmatmul.bf16.gmra.mxu0 %v1738
  %v1820 = vpop.f32.mrf.mxu0
  %v1821 = vadd.f32 %v66, %v1820
  %v1822 = vpop.f32.mrf.mxu0
  %v1823 = vadd.f32 %v66, %v1822
  %1824 = vmatmul.bf16.gmra.mxu0 %v1741
  %v1825 = vpop.f32.mrf.mxu0
  %v1826 = vadd.f32 %v66, %v1825
  %v1827 = vpop.f32.mrf.mxu0
  %v1828 = vadd.f32 %v66, %v1827
  %1829 = vmatmul.bf16.gmra.mxu0 %v1744
  %v1830 = vpop.f32.mrf.mxu0
  %v1831 = vadd.f32 %v66, %v1830
  %v1832 = vpop.f32.mrf.mxu0
  %v1833 = vadd.f32 %v66, %v1832
  %1834 = vmatmul.bf16.gmra.mxu0 %v1747
  %v1835 = vpop.f32.mrf.mxu0
  %v1836 = vadd.f32 %v66, %v1835
  %v1837 = vpop.f32.mrf.mxu0
  %v1838 = vadd.f32 %v66, %v1837
  %1839 = vmatmul.bf16.gmra.mxu0 %v1750
  %v1840 = vpop.f32.mrf.mxu0
  %v1841 = vadd.f32 %v66, %v1840
  %v1842 = vpop.f32.mrf.mxu0
  %v1843 = vadd.f32 %v66, %v1842
  %1844 = vmatmul.bf16.gmra.mxu0 %v1753
  %v1845 = vpop.f32.mrf.mxu0
  %v1846 = vadd.f32 %v66, %v1845
  %v1847 = vpop.f32.mrf.mxu0
  %v1848 = vadd.f32 %v66, %v1847
  %1849 = vmatmul.bf16.gmra.mxu0 %v1756
  %v1850 = vpop.f32.mrf.mxu0
  %v1851 = vadd.f32 %v66, %v1850
  %v1852 = vpop.f32.mrf.mxu0
  %v1853 = vadd.f32 %v66, %v1852
  %1854 = vmatmul.bf16.gmra.mxu0 %v1759
  %v1855 = vpop.f32.mrf.mxu0
  %v1856 = vadd.f32 %v66, %v1855
  %v1857 = vpop.f32.mrf.mxu0
  %v1858 = vadd.f32 %v66, %v1857
  %1859 = vdwg.mxu0
  %v1860 = vmax.f32 %v1771, 0.0
  %v1861 = vmax.f32 %v1773, 0.0
  %v1862 = vmax.f32 %v1776, 0.0
  %v1863 = vmax.f32 %v1778, 0.0
  %v1864 = vmax.f32 %v1781, 0.0
  %v1865 = vmax.f32 %v1783, 0.0
  %v1866 = vmax.f32 %v1786, 0.0
  %v1867 = vmax.f32 %v1788, 0.0
  %v1868 = vmax.f32 %v1791, 0.0
  %v1869 = vmax.f32 %v1793, 0.0
  %v1870 = vmax.f32 %v1796, 0.0
  %v1871 = vmax.f32 %v1798, 0.0
  %v1872 = vmax.f32 %v1801, 0.0
  %v1873 = vmax.f32 %v1803, 0.0
  %v1874 = vmax.f32 %v1806, 0.0
  %v1875 = vmax.f32 %v1808, 0.0
  %v1876 = vmax.f32 %v1811, 0.0
  %v1877 = vmax.f32 %v1813, 0.0
  %v1878 = vmax.f32 %v1816, 0.0
  %v1879 = vmax.f32 %v1818, 0.0
  %v1880 = vmax.f32 %v1821, 0.0
  %v1881 = vmax.f32 %v1823, 0.0
  %v1882 = vmax.f32 %v1826, 0.0
  %v1883 = vmax.f32 %v1828, 0.0
  %v1884 = vmax.f32 %v1831, 0.0
  %v1885 = vmax.f32 %v1833, 0.0
  %v1886 = vmax.f32 %v1836, 0.0
  %v1887 = vmax.f32 %v1838, 0.0
  %v1888 = vmax.f32 %v1841, 0.0
  %v1889 = vmax.f32 %v1843, 0.0
  %v1890 = vmax.f32 %v1846, 0.0
  %v1891 = vmax.f32 %v1848, 0.0
  %v1892 = vmax.f32 %v1851, 0.0
  %v1893 = vmax.f32 %v1853, 0.0
  %v1894 = vmax.f32 %v1856, 0.0
  %v1895 = vmax.f32 %v1858, 0.0
  %v1896 = vpack.c.bf16 %v1861, %v1860
  %v1897 = vpack.c.bf16 %v1863, %v1862
  %v1898 = vpack.c.bf16 %v1865, %v1864
  %v1899 = vpack.c.bf16 %v1867, %v1866
  %v1900 = vpack.c.bf16 %v1869, %v1868
  %v1901 = vpack.c.bf16 %v1871, %v1870
  %v1902 = vpack.c.bf16 %v1873, %v1872
  %v1903 = vpack.c.bf16 %v1875, %v1874
  %v1904 = vpack.c.bf16 %v1877, %v1876
  %v1905 = vpack.c.bf16 %v1879, %v1878
  %v1906 = vpack.c.bf16 %v1881, %v1880
  %v1907 = vpack.c.bf16 %v1883, %v1882
  %v1908 = vpack.c.bf16 %v1885, %v1884
  %v1909 = vpack.c.bf16 %v1887, %v1886
  %v1910 = vpack.c.bf16 %v1889, %v1888
  %v1911 = vpack.c.bf16 %v1891, %v1890
  %v1912 = vpack.c.bf16 %v1893, %v1892
  %v1913 = vpack.c.bf16 %v1895, %v1894
  %v1914 = vld [vmem:[%s2 + $0x30] sm:$0xf]
  %v1915 = vld [vmem:[%s2 + $0x34] sm:$0xf]
  %v1916 = vld [vmem:[%s2 + $0x38] sm:$0xf]
  %v1917 = vld [vmem:[%s2 + $0x3c] sm:$0xf]
  %v1922 = vunpack.c.l.b16 %v1914
  %v1923 = vunpack.c.l.b16 %v1915
  %v1924 = vunpack.c.l.b16 %v1916
  %v1925 = vunpack.c.l.b16 %v1917
  %v1926 = vpack.c.b16 %v1923, %v1922
  %v1927 = vpack.c.b16 %v1925, %v1924
  %v1931 = vsel %vm724, %v1896, 0
  %v1934 = vsel %vm724, %v1897, 0
  %v1937 = vsel %vm724, %v1898, 0
  %v1940 = vsel %vm724, %v1899, 0
  %v1943 = vsel %vm724, %v1900, 0
  %v1946 = vsel %vm724, %v1901, 0
  %v1949 = vsel %vm724, %v1902, 0
  %v1952 = vsel %vm724, %v1903, 0
  %v1955 = vsel %vm724, %v1904, 0
  %v1958 = vsel %vm724, %v1905, 0
  %v1961 = vsel %vm724, %v1906, 0
  %v1964 = vsel %vm724, %v1907, 0
  %v1967 = vsel %vm724, %v1908, 0
  %v1970 = vsel %vm724, %v1909, 0
  %v1973 = vsel %vm724, %v1910, 0
  %v1976 = vsel %vm724, %v1911, 0
  %v1979 = vsel %vm724, %v1912, 0
  %v1982 = vsel %vm724, %v1913, 0
  %1984 = vmatpush.bf16.msra.mxu0 0
  %1985 = vmatpush.bf16.msra.mxu0 0
  %1986 = vmatpush.bf16.msra.mxu0 0
  %1987 = vmatpush.bf16.msra.mxu0 0
  %1988 = vmatpush.bf16.msra.mxu0 0
  %1989 = vmatpush.bf16.msra.mxu0 0
  %1990 = vmatpush.bf16.msra.mxu0 %v1927
  %1991 = vmatpush.bf16.msra.mxu0 %v1926
  %1992 = vmatmul.bf16.gmra.mxu0 %v1931
  %v1993 = vpop.f32.mrf.mxu0
  %v1994 = vadd.f32 0.0, %v1993
  %v1995 = vpop.f32.mrf.mxu0
  %v1996 = vadd.f32 0.0, %v1995
  %1997 = vmatmul.bf16.gmra.mxu0 %v1934
  %v1998 = vpop.f32.mrf.mxu0
  %v1999 = vadd.f32 0.0, %v1998
  %v2000 = vpop.f32.mrf.mxu0
  %v2001 = vadd.f32 0.0, %v2000
  %2002 = vmatmul.bf16.gmra.mxu0 %v1937
  %v2003 = vpop.f32.mrf.mxu0
  %v2004 = vadd.f32 0.0, %v2003
  %v2005 = vpop.f32.mrf.mxu0
  %v2006 = vadd.f32 0.0, %v2005
  %2007 = vmatmul.bf16.gmra.mxu0 %v1940
  %v2008 = vpop.f32.mrf.mxu0
  %v2009 = vadd.f32 0.0, %v2008
  %v2010 = vpop.f32.mrf.mxu0
  %v2011 = vadd.f32 0.0, %v2010
  %2012 = vmatmul.bf16.gmra.mxu0 %v1943
  %v2013 = vpop.f32.mrf.mxu0
  %v2014 = vadd.f32 0.0, %v2013
  %v2015 = vpop.f32.mrf.mxu0
  %v2016 = vadd.f32 0.0, %v2015
  %2017 = vmatmul.bf16.gmra.mxu0 %v1946
  %v2018 = vpop.f32.mrf.mxu0
  %v2019 = vadd.f32 0.0, %v2018
  %v2020 = vpop.f32.mrf.mxu0
  %v2021 = vadd.f32 0.0, %v2020
  %2022 = vmatmul.bf16.gmra.mxu0 %v1949
  %v2023 = vpop.f32.mrf.mxu0
  %v2024 = vadd.f32 0.0, %v2023
  %v2025 = vpop.f32.mrf.mxu0
  %v2026 = vadd.f32 0.0, %v2025
  %2027 = vmatmul.bf16.gmra.mxu0 %v1952
  %v2028 = vpop.f32.mrf.mxu0
  %v2029 = vadd.f32 0.0, %v2028
  %v2030 = vpop.f32.mrf.mxu0
  %v2031 = vadd.f32 0.0, %v2030
  %2032 = vmatmul.bf16.gmra.mxu0 %v1955
  %v2033 = vpop.f32.mrf.mxu0
  %v2034 = vadd.f32 0.0, %v2033
  %v2035 = vpop.f32.mrf.mxu0
  %v2036 = vadd.f32 0.0, %v2035
  %2037 = vmatmul.bf16.gmra.mxu0 %v1958
  %v2038 = vpop.f32.mrf.mxu0
  %v2039 = vadd.f32 0.0, %v2038
  %v2040 = vpop.f32.mrf.mxu0
  %v2041 = vadd.f32 0.0, %v2040
  %2042 = vmatmul.bf16.gmra.mxu0 %v1961
  %v2043 = vpop.f32.mrf.mxu0
  %v2044 = vadd.f32 0.0, %v2043
  %v2045 = vpop.f32.mrf.mxu0
  %v2046 = vadd.f32 0.0, %v2045
  %2047 = vmatmul.bf16.gmra.mxu0 %v1964
  %v2048 = vpop.f32.mrf.mxu0
  %v2049 = vadd.f32 0.0, %v2048
  %v2050 = vpop.f32.mrf.mxu0
  %v2051 = vadd.f32 0.0, %v2050
  %2052 = vmatmul.bf16.gmra.mxu0 %v1967
  %v2053 = vpop.f32.mrf.mxu0
  %v2054 = vadd.f32 0.0, %v2053
  %v2055 = vpop.f32.mrf.mxu0
  %v2056 = vadd.f32 0.0, %v2055
  %2057 = vmatmul.bf16.gmra.mxu0 %v1970
  %v2058 = vpop.f32.mrf.mxu0
  %v2059 = vadd.f32 0.0, %v2058
  %v2060 = vpop.f32.mrf.mxu0
  %v2061 = vadd.f32 0.0, %v2060
  %2062 = vmatmul.bf16.gmra.mxu0 %v1973
  %v2063 = vpop.f32.mrf.mxu0
  %v2064 = vadd.f32 0.0, %v2063
  %v2065 = vpop.f32.mrf.mxu0
  %v2066 = vadd.f32 0.0, %v2065
  %2067 = vmatmul.bf16.gmra.mxu0 %v1976
  %v2068 = vpop.f32.mrf.mxu0
  %v2069 = vadd.f32 0.0, %v2068
  %v2070 = vpop.f32.mrf.mxu0
  %v2071 = vadd.f32 0.0, %v2070
  %2072 = vmatmul.bf16.gmra.mxu0 %v1979
  %v2073 = vpop.f32.mrf.mxu0
  %v2074 = vadd.f32 0.0, %v2073
  %v2075 = vpop.f32.mrf.mxu0
  %v2076 = vadd.f32 0.0, %v2075
  %2077 = vmatmul.bf16.gmra.mxu0 %v1982
  %v2078 = vpop.f32.mrf.mxu0
  %v2079 = vadd.f32 0.0, %v2078
  %v2080 = vpop.f32.mrf.mxu0
  %v2081 = vadd.f32 0.0, %v2080
  %2082 = vdwg.mxu0
  %v2083 = vadd.f32 %v1545, %v1994
  %v2084 = vadd.f32 %v1546, %v1996
  %v2085 = vadd.f32 %v1547, %v1999
  %v2086 = vadd.f32 %v1548, %v2001
  %v2087 = vadd.f32 %v1549, %v2004
  %v2088 = vadd.f32 %v1550, %v2006
  %v2089 = vadd.f32 %v1551, %v2009
  %v2090 = vadd.f32 %v1552, %v2011
  %v2091 = vadd.f32 %v1553, %v2014
  %v2092 = vadd.f32 %v1554, %v2016
  %v2093 = vadd.f32 %v1555, %v2019
  %v2094 = vadd.f32 %v1556, %v2021
  %v2095 = vadd.f32 %v1557, %v2024
  %v2096 = vadd.f32 %v1558, %v2026
  %v2097 = vadd.f32 %v1559, %v2029
  %v2098 = vadd.f32 %v1560, %v2031
  %v2099 = vadd.f32 %v1561, %v2034
  %v2100 = vadd.f32 %v1562, %v2036
  %v2101 = vadd.f32 %v1563, %v2039
  %v2102 = vadd.f32 %v1564, %v2041
  %v2103 = vadd.f32 %v1565, %v2044
  %v2104 = vadd.f32 %v1566, %v2046
  %v2105 = vadd.f32 %v1567, %v2049
  %v2106 = vadd.f32 %v1568, %v2051
  %v2107 = vadd.f32 %v1569, %v2054
  %v2108 = vadd.f32 %v1570, %v2056
  %v2109 = vadd.f32 %v1571, %v2059
  %v2110 = vadd.f32 %v1572, %v2061
  %v2111 = vadd.f32 %v1573, %v2064
  %v2112 = vadd.f32 %v1574, %v2066
  %v2113 = vadd.f32 %v1575, %v2069
  %v2114 = vadd.f32 %v1576, %v2071
  %v2115 = vadd.f32 %v1577, %v2074
  %v2116 = vadd.f32 %v1578, %v2076
  %v2117 = vadd.f32 %v1579, %v2079
  %v2118 = vadd.f32 %v1580, %v2081
  %v2119 = vld [vmem:[%s0 + $0x240] sm:$0xf]
  %v2120 = vld [vmem:[%s0 + $0x244] sm:$0xf]
  %v2121 = vld [vmem:[%s0 + $0x248] sm:$0xf]
  %v2122 = vld [vmem:[%s0 + $0x24c] sm:$0xf]
  %v2123 = vld [vmem:[%s0 + $0x250] sm:$0xf]
  %v2124 = vld [vmem:[%s0 + $0x254] sm:$0xf]
  %v2125 = vld [vmem:[%s0 + $0x258] sm:$0xf]
  %v2126 = vld [vmem:[%s0 + $0x25c] sm:$0xf]
  %v2127 = vld [vmem:[%s0 + $0x260] sm:$0xf]
  %v2128 = vld [vmem:[%s0 + $0x264] sm:$0xf]
  %v2129 = vld [vmem:[%s0 + $0x268] sm:$0xf]
  %v2130 = vld [vmem:[%s0 + $0x26c] sm:$0xf]
  %v2131 = vld [vmem:[%s0 + $0x270] sm:$0xf]
  %v2132 = vld [vmem:[%s0 + $0x274] sm:$0xf]
  %v2133 = vld [vmem:[%s0 + $0x278] sm:$0xf]
  %v2134 = vld [vmem:[%s0 + $0x27c] sm:$0xf]
  %v2135 = vld [vmem:[%s0 + $0x280] sm:$0xf]
  %v2136 = vld [vmem:[%s0 + $0x284] sm:$0xf]
  %v2137 = vld [vmem:[%s0 + $0x288] sm:$0xf]
  %v2138 = vld [vmem:[%s0 + $0x28c] sm:$0xf]
  %v2139 = vld [vmem:[%s0 + $0x290] sm:$0xf]
  %v2140 = vld [vmem:[%s0 + $0x294] sm:$0xf]
  %v2141 = vld [vmem:[%s0 + $0x298] sm:$0xf]
  %v2142 = vld [vmem:[%s0 + $0x29c] sm:$0xf]
  %v2143 = vld [vmem:[%s0 + $0x2a0] sm:$0xf]
  %v2144 = vld [vmem:[%s0 + $0x2a4] sm:$0xf]
  %v2145 = vld [vmem:[%s0 + $0x2a8] sm:$0xf]
  %v2146 = vld [vmem:[%s0 + $0x2ac] sm:$0xf]
  %v2147 = vld [vmem:[%s0 + $0x2b0] sm:$0xf]
  %v2148 = vld [vmem:[%s0 + $0x2b4] sm:$0xf]
  %v2149 = vld [vmem:[%s0 + $0x2b8] sm:$0xf]
  %v2150 = vld [vmem:[%s0 + $0x2bc] sm:$0xf]
  %v2151 = vld [vmem:[%s0 + $0x2c0] sm:$0xf]
  %v2152 = vld [vmem:[%s0 + $0x2c4] sm:$0xf]
  %v2153 = vld [vmem:[%s0 + $0x2c8] sm:$0xf]
  %v2154 = vld [vmem:[%s0 + $0x2cc] sm:$0xf]
  %v2191 = vunpack.c.l.b16 %v2119
  %v2192 = vunpack.c.l.b16 %v2120
  %v2193 = vunpack.c.l.b16 %v2121
  %v2194 = vunpack.c.l.b16 %v2122
  %v2195 = vunpack.c.l.b16 %v2123
  %v2196 = vunpack.c.l.b16 %v2124
  %v2197 = vunpack.c.l.b16 %v2125
  %v2198 = vunpack.c.l.b16 %v2126
  %v2199 = vunpack.c.l.b16 %v2127
  %v2200 = vunpack.c.l.b16 %v2128
  %v2201 = vunpack.c.l.b16 %v2129
  %v2202 = vunpack.c.l.b16 %v2130
  %v2203 = vunpack.c.l.b16 %v2131
  %v2204 = vunpack.c.l.b16 %v2132
  %v2205 = vunpack.c.l.b16 %v2133
  %v2206 = vunpack.c.l.b16 %v2134
  %v2207 = vunpack.c.l.b16 %v2135
  %v2208 = vunpack.c.l.b16 %v2136
  %v2209 = vunpack.c.l.b16 %v2137
  %v2210 = vunpack.c.l.b16 %v2138
  %v2211 = vunpack.c.l.b16 %v2139
  %v2212 = vunpack.c.l.b16 %v2140
  %v2213 = vunpack.c.l.b16 %v2141
  %v2214 = vunpack.c.l.b16 %v2142
  %v2215 = vunpack.c.l.b16 %v2143
  %v2216 = vunpack.c.l.b16 %v2144
  %v2217 = vunpack.c.l.b16 %v2145
  %v2218 = vunpack.c.l.b16 %v2146
  %v2219 = vunpack.c.l.b16 %v2147
  %v2220 = vunpack.c.l.b16 %v2148
  %v2221 = vunpack.c.l.b16 %v2149
  %v2222 = vunpack.c.l.b16 %v2150
  %v2223 = vunpack.c.l.b16 %v2151
  %v2224 = vunpack.c.l.b16 %v2152
  %v2225 = vunpack.c.l.b16 %v2153
  %v2226 = vunpack.c.l.b16 %v2154
  %v2227 = vpack.c.b16 %v2192, %v2191
  %v2228 = vpack.c.b16 %v2194, %v2193
  %v2229 = vpack.c.b16 %v2196, %v2195
  %v2230 = vpack.c.b16 %v2198, %v2197
  %v2231 = vpack.c.b16 %v2200, %v2199
  %v2232 = vpack.c.b16 %v2202, %v2201
  %v2233 = vpack.c.b16 %v2204, %v2203
  %v2234 = vpack.c.b16 %v2206, %v2205
  %v2235 = vpack.c.b16 %v2208, %v2207
  %v2236 = vpack.c.b16 %v2210, %v2209
  %v2237 = vpack.c.b16 %v2212, %v2211
  %v2238 = vpack.c.b16 %v2214, %v2213
  %v2239 = vpack.c.b16 %v2216, %v2215
  %v2240 = vpack.c.b16 %v2218, %v2217
  %v2241 = vpack.c.b16 %v2220, %v2219
  %v2242 = vpack.c.b16 %v2222, %v2221
  %v2243 = vpack.c.b16 %v2224, %v2223
  %v2244 = vpack.c.b16 %v2226, %v2225
  %v2246 = vsel %vm163, %v2227, 0
  %v2249 = vsel %vm163, %v2228, 0
  %v2252 = vsel %vm163, %v2229, 0
  %v2255 = vsel %vm163, %v2230, 0
  %v2258 = vsel %vm163, %v2231, 0
  %v2261 = vsel %vm163, %v2232, 0
  %v2264 = vsel %vm163, %v2233, 0
  %v2267 = vsel %vm163, %v2234, 0
  %v2270 = vsel %vm163, %v2235, 0
  %v2273 = vsel %vm163, %v2236, 0
  %v2276 = vsel %vm163, %v2237, 0
  %v2279 = vsel %vm163, %v2238, 0
  %v2282 = vsel %vm163, %v2239, 0
  %v2285 = vsel %vm163, %v2240, 0
  %v2288 = vsel %vm163, %v2241, 0
  %v2291 = vsel %vm163, %v2242, 0
  %v2294 = vsel %vm163, %v2243, 0
  %v2297 = vsel %vm163, %v2244, 0
  %2299 = vmatpush.bf16.msra.mxu0 0
  %2300 = vmatpush.bf16.msra.mxu0 0
  %2301 = vmatpush.bf16.msra.mxu0 0
  %2302 = vmatpush.bf16.msra.mxu0 0
  %2303 = vmatpush.bf16.msra.mxu0 0
  %2304 = vmatpush.bf16.msra.mxu0 0
  %2305 = vmatpush.bf16.msra.mxu0 0
  %2306 = vmatpush.bf16.msra.mxu0 %v161
  %2307 = vmatmul.bf16.gmra.mxu0 %v2246
  %v2308 = vpop.f32.mrf.mxu0
  %v2309 = vadd.f32 %v66, %v2308
  %v2310 = vpop.f32.mrf.mxu0
  %v2311 = vadd.f32 %v66, %v2310
  %2312 = vmatmul.bf16.gmra.mxu0 %v2249
  %v2313 = vpop.f32.mrf.mxu0
  %v2314 = vadd.f32 %v66, %v2313
  %v2315 = vpop.f32.mrf.mxu0
  %v2316 = vadd.f32 %v66, %v2315
  %2317 = vmatmul.bf16.gmra.mxu0 %v2252
  %v2318 = vpop.f32.mrf.mxu0
  %v2319 = vadd.f32 %v66, %v2318
  %v2320 = vpop.f32.mrf.mxu0
  %v2321 = vadd.f32 %v66, %v2320
  %2322 = vmatmul.bf16.gmra.mxu0 %v2255
  %v2323 = vpop.f32.mrf.mxu0
  %v2324 = vadd.f32 %v66, %v2323
  %v2325 = vpop.f32.mrf.mxu0
  %v2326 = vadd.f32 %v66, %v2325
  %2327 = vmatmul.bf16.gmra.mxu0 %v2258
  %v2328 = vpop.f32.mrf.mxu0
  %v2329 = vadd.f32 %v66, %v2328
  %v2330 = vpop.f32.mrf.mxu0
  %v2331 = vadd.f32 %v66, %v2330
  %2332 = vmatmul.bf16.gmra.mxu0 %v2261
  %v2333 = vpop.f32.mrf.mxu0
  %v2334 = vadd.f32 %v66, %v2333
  %v2335 = vpop.f32.mrf.mxu0
  %v2336 = vadd.f32 %v66, %v2335
  %2337 = vmatmul.bf16.gmra.mxu0 %v2264
  %v2338 = vpop.f32.mrf.mxu0
  %v2339 = vadd.f32 %v66, %v2338
  %v2340 = vpop.f32.mrf.mxu0
  %v2341 = vadd.f32 %v66, %v2340
  %2342 = vmatmul.bf16.gmra.mxu0 %v2267
  %v2343 = vpop.f32.mrf.mxu0
  %v2344 = vadd.f32 %v66, %v2343
  %v2345 = vpop.f32.mrf.mxu0
  %v2346 = vadd.f32 %v66, %v2345
  %2347 = vmatmul.bf16.gmra.mxu0 %v2270
  %v2348 = vpop.f32.mrf.mxu0
  %v2349 = vadd.f32 %v66, %v2348
  %v2350 = vpop.f32.mrf.mxu0
  %v2351 = vadd.f32 %v66, %v2350
  %2352 = vmatmul.bf16.gmra.mxu0 %v2273
  %v2353 = vpop.f32.mrf.mxu0
  %v2354 = vadd.f32 %v66, %v2353
  %v2355 = vpop.f32.mrf.mxu0
  %v2356 = vadd.f32 %v66, %v2355
  %2357 = vmatmul.bf16.gmra.mxu0 %v2276
  %v2358 = vpop.f32.mrf.mxu0
  %v2359 = vadd.f32 %v66, %v2358
  %v2360 = vpop.f32.mrf.mxu0
  %v2361 = vadd.f32 %v66, %v2360
  %2362 = vmatmul.bf16.gmra.mxu0 %v2279
  %v2363 = vpop.f32.mrf.mxu0
  %v2364 = vadd.f32 %v66, %v2363
  %v2365 = vpop.f32.mrf.mxu0
  %v2366 = vadd.f32 %v66, %v2365
  %2367 = vmatmul.bf16.gmra.mxu0 %v2282
  %v2368 = vpop.f32.mrf.mxu0
  %v2369 = vadd.f32 %v66, %v2368
  %v2370 = vpop.f32.mrf.mxu0
  %v2371 = vadd.f32 %v66, %v2370
  %2372 = vmatmul.bf16.gmra.mxu0 %v2285
  %v2373 = vpop.f32.mrf.mxu0
  %v2374 = vadd.f32 %v66, %v2373
  %v2375 = vpop.f32.mrf.mxu0
  %v2376 = vadd.f32 %v66, %v2375
  %2377 = vmatmul.bf16.gmra.mxu0 %v2288
  %v2378 = vpop.f32.mrf.mxu0
  %v2379 = vadd.f32 %v66, %v2378
  %v2380 = vpop.f32.mrf.mxu0
  %v2381 = vadd.f32 %v66, %v2380
  %2382 = vmatmul.bf16.gmra.mxu0 %v2291
  %v2383 = vpop.f32.mrf.mxu0
  %v2384 = vadd.f32 %v66, %v2383
  %v2385 = vpop.f32.mrf.mxu0
  %v2386 = vadd.f32 %v66, %v2385
  %2387 = vmatmul.bf16.gmra.mxu0 %v2294
  %v2388 = vpop.f32.mrf.mxu0
  %v2389 = vadd.f32 %v66, %v2388
  %v2390 = vpop.f32.mrf.mxu0
  %v2391 = vadd.f32 %v66, %v2390
  %2392 = vmatmul.bf16.gmra.mxu0 %v2297
  %v2393 = vpop.f32.mrf.mxu0
  %v2394 = vadd.f32 %v66, %v2393
  %v2395 = vpop.f32.mrf.mxu0
  %v2396 = vadd.f32 %v66, %v2395
  %2397 = vdwg.mxu0
  %v2398 = vmax.f32 %v2309, 0.0
  %v2399 = vmax.f32 %v2311, 0.0
  %v2400 = vmax.f32 %v2314, 0.0
  %v2401 = vmax.f32 %v2316, 0.0
  %v2402 = vmax.f32 %v2319, 0.0
  %v2403 = vmax.f32 %v2321, 0.0
  %v2404 = vmax.f32 %v2324, 0.0
  %v2405 = vmax.f32 %v2326, 0.0
  %v2406 = vmax.f32 %v2329, 0.0
  %v2407 = vmax.f32 %v2331, 0.0
  %v2408 = vmax.f32 %v2334, 0.0
  %v2409 = vmax.f32 %v2336, 0.0
  %v2410 = vmax.f32 %v2339, 0.0
  %v2411 = vmax.f32 %v2341, 0.0
  %v2412 = vmax.f32 %v2344, 0.0
  %v2413 = vmax.f32 %v2346, 0.0
  %v2414 = vmax.f32 %v2349, 0.0
  %v2415 = vmax.f32 %v2351, 0.0
  %v2416 = vmax.f32 %v2354, 0.0
  %v2417 = vmax.f32 %v2356, 0.0
  %v2418 = vmax.f32 %v2359, 0.0
  %v2419 = vmax.f32 %v2361, 0.0
  %v2420 = vmax.f32 %v2364, 0.0
  %v2421 = vmax.f32 %v2366, 0.0
  %v2422 = vmax.f32 %v2369, 0.0
  %v2423 = vmax.f32 %v2371, 0.0
  %v2424 = vmax.f32 %v2374, 0.0
  %v2425 = vmax.f32 %v2376, 0.0
  %v2426 = vmax.f32 %v2379, 0.0
  %v2427 = vmax.f32 %v2381, 0.0
  %v2428 = vmax.f32 %v2384, 0.0
  %v2429 = vmax.f32 %v2386, 0.0
  %v2430 = vmax.f32 %v2389, 0.0
  %v2431 = vmax.f32 %v2391, 0.0
  %v2432 = vmax.f32 %v2394, 0.0
  %v2433 = vmax.f32 %v2396, 0.0
  %v2434 = vpack.c.bf16 %v2399, %v2398
  %v2435 = vpack.c.bf16 %v2401, %v2400
  %v2436 = vpack.c.bf16 %v2403, %v2402
  %v2437 = vpack.c.bf16 %v2405, %v2404
  %v2438 = vpack.c.bf16 %v2407, %v2406
  %v2439 = vpack.c.bf16 %v2409, %v2408
  %v2440 = vpack.c.bf16 %v2411, %v2410
  %v2441 = vpack.c.bf16 %v2413, %v2412
  %v2442 = vpack.c.bf16 %v2415, %v2414
  %v2443 = vpack.c.bf16 %v2417, %v2416
  %v2444 = vpack.c.bf16 %v2419, %v2418
  %v2445 = vpack.c.bf16 %v2421, %v2420
  %v2446 = vpack.c.bf16 %v2423, %v2422
  %v2447 = vpack.c.bf16 %v2425, %v2424
  %v2448 = vpack.c.bf16 %v2427, %v2426
  %v2449 = vpack.c.bf16 %v2429, %v2428
  %v2450 = vpack.c.bf16 %v2431, %v2430
  %v2451 = vpack.c.bf16 %v2433, %v2432
  %v2452 = vld [vmem:[%s2 + $0x40] sm:$0xf]
  %v2453 = vld [vmem:[%s2 + $0x44] sm:$0xf]
  %v2454 = vld [vmem:[%s2 + $0x48] sm:$0xf]
  %v2455 = vld [vmem:[%s2 + $0x4c] sm:$0xf]
  %v2460 = vunpack.c.l.b16 %v2452
  %v2461 = vunpack.c.l.b16 %v2453
  %v2462 = vunpack.c.l.b16 %v2454
  %v2463 = vunpack.c.l.b16 %v2455
  %v2464 = vpack.c.b16 %v2461, %v2460
  %v2465 = vpack.c.b16 %v2463, %v2462
  %v2469 = vsel %vm724, %v2434, 0
  %v2472 = vsel %vm724, %v2435, 0
  %v2475 = vsel %vm724, %v2436, 0
  %v2478 = vsel %vm724, %v2437, 0
  %v2481 = vsel %vm724, %v2438, 0
  %v2484 = vsel %vm724, %v2439, 0
  %v2487 = vsel %vm724, %v2440, 0
  %v2490 = vsel %vm724, %v2441, 0
  %v2493 = vsel %vm724, %v2442, 0
  %v2496 = vsel %vm724, %v2443, 0
  %v2499 = vsel %vm724, %v2444, 0
  %v2502 = vsel %vm724, %v2445, 0
  %v2505 = vsel %vm724, %v2446, 0
  %v2508 = vsel %vm724, %v2447, 0
  %v2511 = vsel %vm724, %v2448, 0
  %v2514 = vsel %vm724, %v2449, 0
  %v2517 = vsel %vm724, %v2450, 0
  %v2520 = vsel %vm724, %v2451, 0
  %2522 = vmatpush.bf16.msra.mxu0 0
  %2523 = vmatpush.bf16.msra.mxu0 0
  %2524 = vmatpush.bf16.msra.mxu0 0
  %2525 = vmatpush.bf16.msra.mxu0 0
  %2526 = vmatpush.bf16.msra.mxu0 0
  %2527 = vmatpush.bf16.msra.mxu0 0
  %2528 = vmatpush.bf16.msra.mxu0 %v2465
  %2529 = vmatpush.bf16.msra.mxu0 %v2464
  %2530 = vmatmul.bf16.gmra.mxu0 %v2469
  %v2531 = vpop.f32.mrf.mxu0
  %v2532 = vadd.f32 0.0, %v2531
  %v2533 = vpop.f32.mrf.mxu0
  %v2534 = vadd.f32 0.0, %v2533
  %2535 = vmatmul.bf16.gmra.mxu0 %v2472
  %v2536 = vpop.f32.mrf.mxu0
  %v2537 = vadd.f32 0.0, %v2536
  %v2538 = vpop.f32.mrf.mxu0
  %v2539 = vadd.f32 0.0, %v2538
  %2540 = vmatmul.bf16.gmra.mxu0 %v2475
  %v2541 = vpop.f32.mrf.mxu0
  %v2542 = vadd.f32 0.0, %v2541
  %v2543 = vpop.f32.mrf.mxu0
  %v2544 = vadd.f32 0.0, %v2543
  %2545 = vmatmul.bf16.gmra.mxu0 %v2478
  %v2546 = vpop.f32.mrf.mxu0
  %v2547 = vadd.f32 0.0, %v2546
  %v2548 = vpop.f32.mrf.mxu0
  %v2549 = vadd.f32 0.0, %v2548
  %2550 = vmatmul.bf16.gmra.mxu0 %v2481
  %v2551 = vpop.f32.mrf.mxu0
  %v2552 = vadd.f32 0.0, %v2551
  %v2553 = vpop.f32.mrf.mxu0
  %v2554 = vadd.f32 0.0, %v2553
  %2555 = vmatmul.bf16.gmra.mxu0 %v2484
  %v2556 = vpop.f32.mrf.mxu0
  %v2557 = vadd.f32 0.0, %v2556
  %v2558 = vpop.f32.mrf.mxu0
  %v2559 = vadd.f32 0.0, %v2558
  %2560 = vmatmul.bf16.gmra.mxu0 %v2487
  %v2561 = vpop.f32.mrf.mxu0
  %v2562 = vadd.f32 0.0, %v2561
  %v2563 = vpop.f32.mrf.mxu0
  %v2564 = vadd.f32 0.0, %v2563
  %2565 = vmatmul.bf16.gmra.mxu0 %v2490
  %v2566 = vpop.f32.mrf.mxu0
  %v2567 = vadd.f32 0.0, %v2566
  %v2568 = vpop.f32.mrf.mxu0
  %v2569 = vadd.f32 0.0, %v2568
  %2570 = vmatmul.bf16.gmra.mxu0 %v2493
  %v2571 = vpop.f32.mrf.mxu0
  %v2572 = vadd.f32 0.0, %v2571
  %v2573 = vpop.f32.mrf.mxu0
  %v2574 = vadd.f32 0.0, %v2573
  %2575 = vmatmul.bf16.gmra.mxu0 %v2496
  %v2576 = vpop.f32.mrf.mxu0
  %v2577 = vadd.f32 0.0, %v2576
  %v2578 = vpop.f32.mrf.mxu0
  %v2579 = vadd.f32 0.0, %v2578
  %2580 = vmatmul.bf16.gmra.mxu0 %v2499
  %v2581 = vpop.f32.mrf.mxu0
  %v2582 = vadd.f32 0.0, %v2581
  %v2583 = vpop.f32.mrf.mxu0
  %v2584 = vadd.f32 0.0, %v2583
  %2585 = vmatmul.bf16.gmra.mxu0 %v2502
  %v2586 = vpop.f32.mrf.mxu0
  %v2587 = vadd.f32 0.0, %v2586
  %v2588 = vpop.f32.mrf.mxu0
  %v2589 = vadd.f32 0.0, %v2588
  %2590 = vmatmul.bf16.gmra.mxu0 %v2505
  %v2591 = vpop.f32.mrf.mxu0
  %v2592 = vadd.f32 0.0, %v2591
  %v2593 = vpop.f32.mrf.mxu0
  %v2594 = vadd.f32 0.0, %v2593
  %2595 = vmatmul.bf16.gmra.mxu0 %v2508
  %v2596 = vpop.f32.mrf.mxu0
  %v2597 = vadd.f32 0.0, %v2596
  %v2598 = vpop.f32.mrf.mxu0
  %v2599 = vadd.f32 0.0, %v2598
  %2600 = vmatmul.bf16.gmra.mxu0 %v2511
  %v2601 = vpop.f32.mrf.mxu0
  %v2602 = vadd.f32 0.0, %v2601
  %v2603 = vpop.f32.mrf.mxu0
  %v2604 = vadd.f32 0.0, %v2603
  %2605 = vmatmul.bf16.gmra.mxu0 %v2514
  %v2606 = vpop.f32.mrf.mxu0
  %v2607 = vadd.f32 0.0, %v2606
  %v2608 = vpop.f32.mrf.mxu0
  %v2609 = vadd.f32 0.0, %v2608
  %2610 = vmatmul.bf16.gmra.mxu0 %v2517
  %v2611 = vpop.f32.mrf.mxu0
  %v2612 = vadd.f32 0.0, %v2611
  %v2613 = vpop.f32.mrf.mxu0
  %v2614 = vadd.f32 0.0, %v2613
  %2615 = vmatmul.bf16.gmra.mxu0 %v2520
  %v2616 = vpop.f32.mrf.mxu0
  %v2617 = vadd.f32 0.0, %v2616
  %v2618 = vpop.f32.mrf.mxu0
  %v2619 = vadd.f32 0.0, %v2618
  %2620 = vdwg.mxu0
  %v2621 = vadd.f32 %v2083, %v2532
  %v2622 = vadd.f32 %v2084, %v2534
  %v2623 = vadd.f32 %v2085, %v2537
  %v2624 = vadd.f32 %v2086, %v2539
  %v2625 = vadd.f32 %v2087, %v2542
  %v2626 = vadd.f32 %v2088, %v2544
  %v2627 = vadd.f32 %v2089, %v2547
  %v2628 = vadd.f32 %v2090, %v2549
  %v2629 = vadd.f32 %v2091, %v2552
  %v2630 = vadd.f32 %v2092, %v2554
  %v2631 = vadd.f32 %v2093, %v2557
  %v2632 = vadd.f32 %v2094, %v2559
  %v2633 = vadd.f32 %v2095, %v2562
  %v2634 = vadd.f32 %v2096, %v2564
  %v2635 = vadd.f32 %v2097, %v2567
  %v2636 = vadd.f32 %v2098, %v2569
  %v2637 = vadd.f32 %v2099, %v2572
  %v2638 = vadd.f32 %v2100, %v2574
  %v2639 = vadd.f32 %v2101, %v2577
  %v2640 = vadd.f32 %v2102, %v2579
  %v2641 = vadd.f32 %v2103, %v2582
  %v2642 = vadd.f32 %v2104, %v2584
  %v2643 = vadd.f32 %v2105, %v2587
  %v2644 = vadd.f32 %v2106, %v2589
  %v2645 = vadd.f32 %v2107, %v2592
  %v2646 = vadd.f32 %v2108, %v2594
  %v2647 = vadd.f32 %v2109, %v2597
  %v2648 = vadd.f32 %v2110, %v2599
  %v2649 = vadd.f32 %v2111, %v2602
  %v2650 = vadd.f32 %v2112, %v2604
  %v2651 = vadd.f32 %v2113, %v2607
  %v2652 = vadd.f32 %v2114, %v2609
  %v2653 = vadd.f32 %v2115, %v2612
  %v2654 = vadd.f32 %v2116, %v2614
  %v2655 = vadd.f32 %v2117, %v2617
  %v2656 = vadd.f32 %v2118, %v2619
  %v2657 = vld [vmem:[%s0 + $0x2d0] sm:$0xf]
  %v2658 = vld [vmem:[%s0 + $0x2d4] sm:$0xf]
  %v2659 = vld [vmem:[%s0 + $0x2d8] sm:$0xf]
  %v2660 = vld [vmem:[%s0 + $0x2dc] sm:$0xf]
  %v2661 = vld [vmem:[%s0 + $0x2e0] sm:$0xf]
  %v2662 = vld [vmem:[%s0 + $0x2e4] sm:$0xf]
  %v2663 = vld [vmem:[%s0 + $0x2e8] sm:$0xf]
  %v2664 = vld [vmem:[%s0 + $0x2ec] sm:$0xf]
  %v2665 = vld [vmem:[%s0 + $0x2f0] sm:$0xf]
  %v2666 = vld [vmem:[%s0 + $0x2f4] sm:$0xf]
  %v2667 = vld [vmem:[%s0 + $0x2f8] sm:$0xf]
  %v2668 = vld [vmem:[%s0 + $0x2fc] sm:$0xf]
  %v2669 = vld [vmem:[%s0 + $0x300] sm:$0xf]
  %v2670 = vld [vmem:[%s0 + $0x304] sm:$0xf]
  %v2671 = vld [vmem:[%s0 + $0x308] sm:$0xf]
  %v2672 = vld [vmem:[%s0 + $0x30c] sm:$0xf]
  %v2673 = vld [vmem:[%s0 + $0x310] sm:$0xf]
  %v2674 = vld [vmem:[%s0 + $0x314] sm:$0xf]
  %v2675 = vld [vmem:[%s0 + $0x318] sm:$0xf]
  %v2676 = vld [vmem:[%s0 + $0x31c] sm:$0xf]
  %v2677 = vld [vmem:[%s0 + $0x320] sm:$0xf]
  %v2678 = vld [vmem:[%s0 + $0x324] sm:$0xf]
  %v2679 = vld [vmem:[%s0 + $0x328] sm:$0xf]
  %v2680 = vld [vmem:[%s0 + $0x32c] sm:$0xf]
  %v2681 = vld [vmem:[%s0 + $0x330] sm:$0xf]
  %v2682 = vld [vmem:[%s0 + $0x334] sm:$0xf]
  %v2683 = vld [vmem:[%s0 + $0x338] sm:$0xf]
  %v2684 = vld [vmem:[%s0 + $0x33c] sm:$0xf]
  %v2685 = vld [vmem:[%s0 + $0x340] sm:$0xf]
  %v2686 = vld [vmem:[%s0 + $0x344] sm:$0xf]
  %v2687 = vld [vmem:[%s0 + $0x348] sm:$0xf]
  %v2688 = vld [vmem:[%s0 + $0x34c] sm:$0xf]
  %v2689 = vld [vmem:[%s0 + $0x350] sm:$0xf]
  %v2690 = vld [vmem:[%s0 + $0x354] sm:$0xf]
  %v2691 = vld [vmem:[%s0 + $0x358] sm:$0xf]
  %v2692 = vld [vmem:[%s0 + $0x35c] sm:$0xf]
  %v2729 = vunpack.c.l.b16 %v2657
  %v2730 = vunpack.c.l.b16 %v2658
  %v2731 = vunpack.c.l.b16 %v2659
  %v2732 = vunpack.c.l.b16 %v2660
  %v2733 = vunpack.c.l.b16 %v2661
  %v2734 = vunpack.c.l.b16 %v2662
  %v2735 = vunpack.c.l.b16 %v2663
  %v2736 = vunpack.c.l.b16 %v2664
  %v2737 = vunpack.c.l.b16 %v2665
  %v2738 = vunpack.c.l.b16 %v2666
  %v2739 = vunpack.c.l.b16 %v2667
  %v2740 = vunpack.c.l.b16 %v2668
  %v2741 = vunpack.c.l.b16 %v2669
  %v2742 = vunpack.c.l.b16 %v2670
  %v2743 = vunpack.c.l.b16 %v2671
  %v2744 = vunpack.c.l.b16 %v2672
  %v2745 = vunpack.c.l.b16 %v2673
  %v2746 = vunpack.c.l.b16 %v2674
  %v2747 = vunpack.c.l.b16 %v2675
  %v2748 = vunpack.c.l.b16 %v2676
  %v2749 = vunpack.c.l.b16 %v2677
  %v2750 = vunpack.c.l.b16 %v2678
  %v2751 = vunpack.c.l.b16 %v2679
  %v2752 = vunpack.c.l.b16 %v2680
  %v2753 = vunpack.c.l.b16 %v2681
  %v2754 = vunpack.c.l.b16 %v2682
  %v2755 = vunpack.c.l.b16 %v2683
  %v2756 = vunpack.c.l.b16 %v2684
  %v2757 = vunpack.c.l.b16 %v2685
  %v2758 = vunpack.c.l.b16 %v2686
  %v2759 = vunpack.c.l.b16 %v2687
  %v2760 = vunpack.c.l.b16 %v2688
  %v2761 = vunpack.c.l.b16 %v2689
  %v2762 = vunpack.c.l.b16 %v2690
  %v2763 = vunpack.c.l.b16 %v2691
  %v2764 = vunpack.c.l.b16 %v2692
  %v2765 = vpack.c.b16 %v2730, %v2729
  %v2766 = vpack.c.b16 %v2732, %v2731
  %v2767 = vpack.c.b16 %v2734, %v2733
  %v2768 = vpack.c.b16 %v2736, %v2735
  %v2769 = vpack.c.b16 %v2738, %v2737
  %v2770 = vpack.c.b16 %v2740, %v2739
  %v2771 = vpack.c.b16 %v2742, %v2741
  %v2772 = vpack.c.b16 %v2744, %v2743
  %v2773 = vpack.c.b16 %v2746, %v2745
  %v2774 = vpack.c.b16 %v2748, %v2747
  %v2775 = vpack.c.b16 %v2750, %v2749
  %v2776 = vpack.c.b16 %v2752, %v2751
  %v2777 = vpack.c.b16 %v2754, %v2753
  %v2778 = vpack.c.b16 %v2756, %v2755
  %v2779 = vpack.c.b16 %v2758, %v2757
  %v2780 = vpack.c.b16 %v2760, %v2759
  %v2781 = vpack.c.b16 %v2762, %v2761
  %v2782 = vpack.c.b16 %v2764, %v2763
  %v2784 = vsel %vm163, %v2765, 0
  %v2787 = vsel %vm163, %v2766, 0
  %v2790 = vsel %vm163, %v2767, 0
  %v2793 = vsel %vm163, %v2768, 0
  %v2796 = vsel %vm163, %v2769, 0
  %v2799 = vsel %vm163, %v2770, 0
  %v2802 = vsel %vm163, %v2771, 0
  %v2805 = vsel %vm163, %v2772, 0
  %v2808 = vsel %vm163, %v2773, 0
  %v2811 = vsel %vm163, %v2774, 0
  %v2814 = vsel %vm163, %v2775, 0
  %v2817 = vsel %vm163, %v2776, 0
  %v2820 = vsel %vm163, %v2777, 0
  %v2823 = vsel %vm163, %v2778, 0
  %v2826 = vsel %vm163, %v2779, 0
  %v2829 = vsel %vm163, %v2780, 0
  %v2832 = vsel %vm163, %v2781, 0
  %v2835 = vsel %vm163, %v2782, 0
  %2837 = vmatpush.bf16.msra.mxu0 0
  %2838 = vmatpush.bf16.msra.mxu0 0
  %2839 = vmatpush.bf16.msra.mxu0 0
  %2840 = vmatpush.bf16.msra.mxu0 0
  %2841 = vmatpush.bf16.msra.mxu0 0
  %2842 = vmatpush.bf16.msra.mxu0 0
  %2843 = vmatpush.bf16.msra.mxu0 0
  %2844 = vmatpush.bf16.msra.mxu0 %v161
  %2845 = vmatmul.bf16.gmra.mxu0 %v2784
  %v2846 = vpop.f32.mrf.mxu0
  %v2847 = vadd.f32 %v66, %v2846
  %v2848 = vpop.f32.mrf.mxu0
  %v2849 = vadd.f32 %v66, %v2848
  %2850 = vmatmul.bf16.gmra.mxu0 %v2787
  %v2851 = vpop.f32.mrf.mxu0
  %v2852 = vadd.f32 %v66, %v2851
  %v2853 = vpop.f32.mrf.mxu0
  %v2854 = vadd.f32 %v66, %v2853
  %2855 = vmatmul.bf16.gmra.mxu0 %v2790
  %v2856 = vpop.f32.mrf.mxu0
  %v2857 = vadd.f32 %v66, %v2856
  %v2858 = vpop.f32.mrf.mxu0
  %v2859 = vadd.f32 %v66, %v2858
  %2860 = vmatmul.bf16.gmra.mxu0 %v2793
  %v2861 = vpop.f32.mrf.mxu0
  %v2862 = vadd.f32 %v66, %v2861
  %v2863 = vpop.f32.mrf.mxu0
  %v2864 = vadd.f32 %v66, %v2863
  %2865 = vmatmul.bf16.gmra.mxu0 %v2796
  %v2866 = vpop.f32.mrf.mxu0
  %v2867 = vadd.f32 %v66, %v2866
  %v2868 = vpop.f32.mrf.mxu0
  %v2869 = vadd.f32 %v66, %v2868
  %2870 = vmatmul.bf16.gmra.mxu0 %v2799
  %v2871 = vpop.f32.mrf.mxu0
  %v2872 = vadd.f32 %v66, %v2871
  %v2873 = vpop.f32.mrf.mxu0
  %v2874 = vadd.f32 %v66, %v2873
  %2875 = vmatmul.bf16.gmra.mxu0 %v2802
  %v2876 = vpop.f32.mrf.mxu0
  %v2877 = vadd.f32 %v66, %v2876
  %v2878 = vpop.f32.mrf.mxu0
  %v2879 = vadd.f32 %v66, %v2878
  %2880 = vmatmul.bf16.gmra.mxu0 %v2805
  %v2881 = vpop.f32.mrf.mxu0
  %v2882 = vadd.f32 %v66, %v2881
  %v2883 = vpop.f32.mrf.mxu0
  %v2884 = vadd.f32 %v66, %v2883
  %2885 = vmatmul.bf16.gmra.mxu0 %v2808
  %v2886 = vpop.f32.mrf.mxu0
  %v2887 = vadd.f32 %v66, %v2886
  %v2888 = vpop.f32.mrf.mxu0
  %v2889 = vadd.f32 %v66, %v2888
  %2890 = vmatmul.bf16.gmra.mxu0 %v2811
  %v2891 = vpop.f32.mrf.mxu0
  %v2892 = vadd.f32 %v66, %v2891
  %v2893 = vpop.f32.mrf.mxu0
  %v2894 = vadd.f32 %v66, %v2893
  %2895 = vmatmul.bf16.gmra.mxu0 %v2814
  %v2896 = vpop.f32.mrf.mxu0
  %v2897 = vadd.f32 %v66, %v2896
  %v2898 = vpop.f32.mrf.mxu0
  %v2899 = vadd.f32 %v66, %v2898
  %2900 = vmatmul.bf16.gmra.mxu0 %v2817
  %v2901 = vpop.f32.mrf.mxu0
  %v2902 = vadd.f32 %v66, %v2901
  %v2903 = vpop.f32.mrf.mxu0
  %v2904 = vadd.f32 %v66, %v2903
  %2905 = vmatmul.bf16.gmra.mxu0 %v2820
  %v2906 = vpop.f32.mrf.mxu0
  %v2907 = vadd.f32 %v66, %v2906
  %v2908 = vpop.f32.mrf.mxu0
  %v2909 = vadd.f32 %v66, %v2908
  %2910 = vmatmul.bf16.gmra.mxu0 %v2823
  %v2911 = vpop.f32.mrf.mxu0
  %v2912 = vadd.f32 %v66, %v2911
  %v2913 = vpop.f32.mrf.mxu0
  %v2914 = vadd.f32 %v66, %v2913
  %2915 = vmatmul.bf16.gmra.mxu0 %v2826
  %v2916 = vpop.f32.mrf.mxu0
  %v2917 = vadd.f32 %v66, %v2916
  %v2918 = vpop.f32.mrf.mxu0
  %v2919 = vadd.f32 %v66, %v2918
  %2920 = vmatmul.bf16.gmra.mxu0 %v2829
  %v2921 = vpop.f32.mrf.mxu0
  %v2922 = vadd.f32 %v66, %v2921
  %v2923 = vpop.f32.mrf.mxu0
  %v2924 = vadd.f32 %v66, %v2923
  %2925 = vmatmul.bf16.gmra.mxu0 %v2832
  %v2926 = vpop.f32.mrf.mxu0
  %v2927 = vadd.f32 %v66, %v2926
  %v2928 = vpop.f32.mrf.mxu0
  %v2929 = vadd.f32 %v66, %v2928
  %2930 = vmatmul.bf16.gmra.mxu0 %v2835
  %v2931 = vpop.f32.mrf.mxu0
  %v2932 = vadd.f32 %v66, %v2931
  %v2933 = vpop.f32.mrf.mxu0
  %v2934 = vadd.f32 %v66, %v2933
  %2935 = vdwg.mxu0
  %v2936 = vmax.f32 %v2847, 0.0
  %v2937 = vmax.f32 %v2849, 0.0
  %v2938 = vmax.f32 %v2852, 0.0
  %v2939 = vmax.f32 %v2854, 0.0
  %v2940 = vmax.f32 %v2857, 0.0
  %v2941 = vmax.f32 %v2859, 0.0
  %v2942 = vmax.f32 %v2862, 0.0
  %v2943 = vmax.f32 %v2864, 0.0
  %v2944 = vmax.f32 %v2867, 0.0
  %v2945 = vmax.f32 %v2869, 0.0
  %v2946 = vmax.f32 %v2872, 0.0
  %v2947 = vmax.f32 %v2874, 0.0
  %v2948 = vmax.f32 %v2877, 0.0
  %v2949 = vmax.f32 %v2879, 0.0
  %v2950 = vmax.f32 %v2882, 0.0
  %v2951 = vmax.f32 %v2884, 0.0
  %v2952 = vmax.f32 %v2887, 0.0
  %v2953 = vmax.f32 %v2889, 0.0
  %v2954 = vmax.f32 %v2892, 0.0
  %v2955 = vmax.f32 %v2894, 0.0
  %v2956 = vmax.f32 %v2897, 0.0
  %v2957 = vmax.f32 %v2899, 0.0
  %v2958 = vmax.f32 %v2902, 0.0
  %v2959 = vmax.f32 %v2904, 0.0
  %v2960 = vmax.f32 %v2907, 0.0
  %v2961 = vmax.f32 %v2909, 0.0
  %v2962 = vmax.f32 %v2912, 0.0
  %v2963 = vmax.f32 %v2914, 0.0
  %v2964 = vmax.f32 %v2917, 0.0
  %v2965 = vmax.f32 %v2919, 0.0
  %v2966 = vmax.f32 %v2922, 0.0
  %v2967 = vmax.f32 %v2924, 0.0
  %v2968 = vmax.f32 %v2927, 0.0
  %v2969 = vmax.f32 %v2929, 0.0
  %v2970 = vmax.f32 %v2932, 0.0
  %v2971 = vmax.f32 %v2934, 0.0
  %v2972 = vpack.c.bf16 %v2937, %v2936
  %v2973 = vpack.c.bf16 %v2939, %v2938
  %v2974 = vpack.c.bf16 %v2941, %v2940
  %v2975 = vpack.c.bf16 %v2943, %v2942
  %v2976 = vpack.c.bf16 %v2945, %v2944
  %v2977 = vpack.c.bf16 %v2947, %v2946
  %v2978 = vpack.c.bf16 %v2949, %v2948
  %v2979 = vpack.c.bf16 %v2951, %v2950
  %v2980 = vpack.c.bf16 %v2953, %v2952
  %v2981 = vpack.c.bf16 %v2955, %v2954
  %v2982 = vpack.c.bf16 %v2957, %v2956
  %v2983 = vpack.c.bf16 %v2959, %v2958
  %v2984 = vpack.c.bf16 %v2961, %v2960
  %v2985 = vpack.c.bf16 %v2963, %v2962
  %v2986 = vpack.c.bf16 %v2965, %v2964
  %v2987 = vpack.c.bf16 %v2967, %v2966
  %v2988 = vpack.c.bf16 %v2969, %v2968
  %v2989 = vpack.c.bf16 %v2971, %v2970
  %v2990 = vld [vmem:[%s2 + $0x50] sm:$0xf]
  %v2991 = vld [vmem:[%s2 + $0x54] sm:$0xf]
  %v2992 = vld [vmem:[%s2 + $0x58] sm:$0xf]
  %v2993 = vld [vmem:[%s2 + $0x5c] sm:$0xf]
  %v2998 = vunpack.c.l.b16 %v2990
  %v2999 = vunpack.c.l.b16 %v2991
  %v3000 = vunpack.c.l.b16 %v2992
  %v3001 = vunpack.c.l.b16 %v2993
  %v3002 = vpack.c.b16 %v2999, %v2998
  %v3003 = vpack.c.b16 %v3001, %v3000
  %v3007 = vsel %vm724, %v2972, 0
  %v3010 = vsel %vm724, %v2973, 0
  %v3013 = vsel %vm724, %v2974, 0
  %v3016 = vsel %vm724, %v2975, 0
  %v3019 = vsel %vm724, %v2976, 0
  %v3022 = vsel %vm724, %v2977, 0
  %v3025 = vsel %vm724, %v2978, 0
  %v3028 = vsel %vm724, %v2979, 0
  %v3031 = vsel %vm724, %v2980, 0
  %v3034 = vsel %vm724, %v2981, 0
  %v3037 = vsel %vm724, %v2982, 0
  %v3040 = vsel %vm724, %v2983, 0
  %v3043 = vsel %vm724, %v2984, 0
  %v3046 = vsel %vm724, %v2985, 0
  %v3049 = vsel %vm724, %v2986, 0
  %v3052 = vsel %vm724, %v2987, 0
  %v3055 = vsel %vm724, %v2988, 0
  %v3058 = vsel %vm724, %v2989, 0
  %3060 = vmatpush.bf16.msra.mxu0 0
  %3061 = vmatpush.bf16.msra.mxu0 0
  %3062 = vmatpush.bf16.msra.mxu0 0
  %3063 = vmatpush.bf16.msra.mxu0 0
  %3064 = vmatpush.bf16.msra.mxu0 0
  %3065 = vmatpush.bf16.msra.mxu0 0
  %3066 = vmatpush.bf16.msra.mxu0 %v3003
  %3067 = vmatpush.bf16.msra.mxu0 %v3002
  %3068 = vmatmul.bf16.gmra.mxu0 %v3007
  %v3069 = vpop.f32.mrf.mxu0
  %v3070 = vadd.f32 0.0, %v3069
  %v3071 = vpop.f32.mrf.mxu0
  %v3072 = vadd.f32 0.0, %v3071
  %3073 = vmatmul.bf16.gmra.mxu0 %v3010
  %v3074 = vpop.f32.mrf.mxu0
  %v3075 = vadd.f32 0.0, %v3074
  %v3076 = vpop.f32.mrf.mxu0
  %v3077 = vadd.f32 0.0, %v3076
  %3078 = vmatmul.bf16.gmra.mxu0 %v3013
  %v3079 = vpop.f32.mrf.mxu0
  %v3080 = vadd.f32 0.0, %v3079
  %v3081 = vpop.f32.mrf.mxu0
  %v3082 = vadd.f32 0.0, %v3081
  %3083 = vmatmul.bf16.gmra.mxu0 %v3016
  %v3084 = vpop.f32.mrf.mxu0
  %v3085 = vadd.f32 0.0, %v3084
  %v3086 = vpop.f32.mrf.mxu0
  %v3087 = vadd.f32 0.0, %v3086
  %3088 = vmatmul.bf16.gmra.mxu0 %v3019
  %v3089 = vpop.f32.mrf.mxu0
  %v3090 = vadd.f32 0.0, %v3089
  %v3091 = vpop.f32.mrf.mxu0
  %v3092 = vadd.f32 0.0, %v3091
  %3093 = vmatmul.bf16.gmra.mxu0 %v3022
  %v3094 = vpop.f32.mrf.mxu0
  %v3095 = vadd.f32 0.0, %v3094
  %v3096 = vpop.f32.mrf.mxu0
  %v3097 = vadd.f32 0.0, %v3096
  %3098 = vmatmul.bf16.gmra.mxu0 %v3025
  %v3099 = vpop.f32.mrf.mxu0
  %v3100 = vadd.f32 0.0, %v3099
  %v3101 = vpop.f32.mrf.mxu0
  %v3102 = vadd.f32 0.0, %v3101
  %3103 = vmatmul.bf16.gmra.mxu0 %v3028
  %v3104 = vpop.f32.mrf.mxu0
  %v3105 = vadd.f32 0.0, %v3104
  %v3106 = vpop.f32.mrf.mxu0
  %v3107 = vadd.f32 0.0, %v3106
  %3108 = vmatmul.bf16.gmra.mxu0 %v3031
  %v3109 = vpop.f32.mrf.mxu0
  %v3110 = vadd.f32 0.0, %v3109
  %v3111 = vpop.f32.mrf.mxu0
  %v3112 = vadd.f32 0.0, %v3111
  %3113 = vmatmul.bf16.gmra.mxu0 %v3034
  %v3114 = vpop.f32.mrf.mxu0
  %v3115 = vadd.f32 0.0, %v3114
  %v3116 = vpop.f32.mrf.mxu0
  %v3117 = vadd.f32 0.0, %v3116
  %3118 = vmatmul.bf16.gmra.mxu0 %v3037
  %v3119 = vpop.f32.mrf.mxu0
  %v3120 = vadd.f32 0.0, %v3119
  %v3121 = vpop.f32.mrf.mxu0
  %v3122 = vadd.f32 0.0, %v3121
  %3123 = vmatmul.bf16.gmra.mxu0 %v3040
  %v3124 = vpop.f32.mrf.mxu0
  %v3125 = vadd.f32 0.0, %v3124
  %v3126 = vpop.f32.mrf.mxu0
  %v3127 = vadd.f32 0.0, %v3126
  %3128 = vmatmul.bf16.gmra.mxu0 %v3043
  %v3129 = vpop.f32.mrf.mxu0
  %v3130 = vadd.f32 0.0, %v3129
  %v3131 = vpop.f32.mrf.mxu0
  %v3132 = vadd.f32 0.0, %v3131
  %3133 = vmatmul.bf16.gmra.mxu0 %v3046
  %v3134 = vpop.f32.mrf.mxu0
  %v3135 = vadd.f32 0.0, %v3134
  %v3136 = vpop.f32.mrf.mxu0
  %v3137 = vadd.f32 0.0, %v3136
  %3138 = vmatmul.bf16.gmra.mxu0 %v3049
  %v3139 = vpop.f32.mrf.mxu0
  %v3140 = vadd.f32 0.0, %v3139
  %v3141 = vpop.f32.mrf.mxu0
  %v3142 = vadd.f32 0.0, %v3141
  %3143 = vmatmul.bf16.gmra.mxu0 %v3052
  %v3144 = vpop.f32.mrf.mxu0
  %v3145 = vadd.f32 0.0, %v3144
  %v3146 = vpop.f32.mrf.mxu0
  %v3147 = vadd.f32 0.0, %v3146
  %3148 = vmatmul.bf16.gmra.mxu0 %v3055
  %v3149 = vpop.f32.mrf.mxu0
  %v3150 = vadd.f32 0.0, %v3149
  %v3151 = vpop.f32.mrf.mxu0
  %v3152 = vadd.f32 0.0, %v3151
  %3153 = vmatmul.bf16.gmra.mxu0 %v3058
  %v3154 = vpop.f32.mrf.mxu0
  %v3155 = vadd.f32 0.0, %v3154
  %v3156 = vpop.f32.mrf.mxu0
  %v3157 = vadd.f32 0.0, %v3156
  %3158 = vdwg.mxu0
  %v3159 = vadd.f32 %v2621, %v3070
  %v3160 = vadd.f32 %v2622, %v3072
  %v3161 = vadd.f32 %v2623, %v3075
  %v3162 = vadd.f32 %v2624, %v3077
  %v3163 = vadd.f32 %v2625, %v3080
  %v3164 = vadd.f32 %v2626, %v3082
  %v3165 = vadd.f32 %v2627, %v3085
  %v3166 = vadd.f32 %v2628, %v3087
  %v3167 = vadd.f32 %v2629, %v3090
  %v3168 = vadd.f32 %v2630, %v3092
  %v3169 = vadd.f32 %v2631, %v3095
  %v3170 = vadd.f32 %v2632, %v3097
  %v3171 = vadd.f32 %v2633, %v3100
  %v3172 = vadd.f32 %v2634, %v3102
  %v3173 = vadd.f32 %v2635, %v3105
  %v3174 = vadd.f32 %v2636, %v3107
  %v3175 = vadd.f32 %v2637, %v3110
  %v3176 = vadd.f32 %v2638, %v3112
  %v3177 = vadd.f32 %v2639, %v3115
  %v3178 = vadd.f32 %v2640, %v3117
  %v3179 = vadd.f32 %v2641, %v3120
  %v3180 = vadd.f32 %v2642, %v3122
  %v3181 = vadd.f32 %v2643, %v3125
  %v3182 = vadd.f32 %v2644, %v3127
  %v3183 = vadd.f32 %v2645, %v3130
  %v3184 = vadd.f32 %v2646, %v3132
  %v3185 = vadd.f32 %v2647, %v3135
  %v3186 = vadd.f32 %v2648, %v3137
  %v3187 = vadd.f32 %v2649, %v3140
  %v3188 = vadd.f32 %v2650, %v3142
  %v3189 = vadd.f32 %v2651, %v3145
  %v3190 = vadd.f32 %v2652, %v3147
  %v3191 = vadd.f32 %v2653, %v3150
  %v3192 = vadd.f32 %v2654, %v3152
  %v3193 = vadd.f32 %v2655, %v3155
  %v3194 = vadd.f32 %v2656, %v3157
  %v3195 = vld [vmem:[%s0 + $0x360] sm:$0xf]
  %v3196 = vld [vmem:[%s0 + $0x364] sm:$0xf]
  %v3197 = vld [vmem:[%s0 + $0x368] sm:$0xf]
  %v3198 = vld [vmem:[%s0 + $0x36c] sm:$0xf]
  %v3199 = vld [vmem:[%s0 + $0x370] sm:$0xf]
  %v3200 = vld [vmem:[%s0 + $0x374] sm:$0xf]
  %v3201 = vld [vmem:[%s0 + $0x378] sm:$0xf]
  %v3202 = vld [vmem:[%s0 + $0x37c] sm:$0xf]
  %v3203 = vld [vmem:[%s0 + $0x380] sm:$0xf]
  %v3204 = vld [vmem:[%s0 + $0x384] sm:$0xf]
  %v3205 = vld [vmem:[%s0 + $0x388] sm:$0xf]
  %v3206 = vld [vmem:[%s0 + $0x38c] sm:$0xf]
  %v3207 = vld [vmem:[%s0 + $0x390] sm:$0xf]
  %v3208 = vld [vmem:[%s0 + $0x394] sm:$0xf]
  %v3209 = vld [vmem:[%s0 + $0x398] sm:$0xf]
  %v3210 = vld [vmem:[%s0 + $0x39c] sm:$0xf]
  %v3211 = vld [vmem:[%s0 + $0x3a0] sm:$0xf]
  %v3212 = vld [vmem:[%s0 + $0x3a4] sm:$0xf]
  %v3213 = vld [vmem:[%s0 + $0x3a8] sm:$0xf]
  %v3214 = vld [vmem:[%s0 + $0x3ac] sm:$0xf]
  %v3215 = vld [vmem:[%s0 + $0x3b0] sm:$0xf]
  %v3216 = vld [vmem:[%s0 + $0x3b4] sm:$0xf]
  %v3217 = vld [vmem:[%s0 + $0x3b8] sm:$0xf]
  %v3218 = vld [vmem:[%s0 + $0x3bc] sm:$0xf]
  %v3219 = vld [vmem:[%s0 + $0x3c0] sm:$0xf]
  %v3220 = vld [vmem:[%s0 + $0x3c4] sm:$0xf]
  %v3221 = vld [vmem:[%s0 + $0x3c8] sm:$0xf]
  %v3222 = vld [vmem:[%s0 + $0x3cc] sm:$0xf]
  %v3223 = vld [vmem:[%s0 + $0x3d0] sm:$0xf]
  %v3224 = vld [vmem:[%s0 + $0x3d4] sm:$0xf]
  %v3225 = vld [vmem:[%s0 + $0x3d8] sm:$0xf]
  %v3226 = vld [vmem:[%s0 + $0x3dc] sm:$0xf]
  %v3227 = vld [vmem:[%s0 + $0x3e0] sm:$0xf]
  %v3228 = vld [vmem:[%s0 + $0x3e4] sm:$0xf]
  %v3229 = vld [vmem:[%s0 + $0x3e8] sm:$0xf]
  %v3230 = vld [vmem:[%s0 + $0x3ec] sm:$0xf]
  %v3267 = vunpack.c.l.b16 %v3195
  %v3268 = vunpack.c.l.b16 %v3196
  %v3269 = vunpack.c.l.b16 %v3197
  %v3270 = vunpack.c.l.b16 %v3198
  %v3271 = vunpack.c.l.b16 %v3199
  %v3272 = vunpack.c.l.b16 %v3200
  %v3273 = vunpack.c.l.b16 %v3201
  %v3274 = vunpack.c.l.b16 %v3202
  %v3275 = vunpack.c.l.b16 %v3203
  %v3276 = vunpack.c.l.b16 %v3204
  %v3277 = vunpack.c.l.b16 %v3205
  %v3278 = vunpack.c.l.b16 %v3206
  %v3279 = vunpack.c.l.b16 %v3207
  %v3280 = vunpack.c.l.b16 %v3208
  %v3281 = vunpack.c.l.b16 %v3209
  %v3282 = vunpack.c.l.b16 %v3210
  %v3283 = vunpack.c.l.b16 %v3211
  %v3284 = vunpack.c.l.b16 %v3212
  %v3285 = vunpack.c.l.b16 %v3213
  %v3286 = vunpack.c.l.b16 %v3214
  %v3287 = vunpack.c.l.b16 %v3215
  %v3288 = vunpack.c.l.b16 %v3216
  %v3289 = vunpack.c.l.b16 %v3217
  %v3290 = vunpack.c.l.b16 %v3218
  %v3291 = vunpack.c.l.b16 %v3219
  %v3292 = vunpack.c.l.b16 %v3220
  %v3293 = vunpack.c.l.b16 %v3221
  %v3294 = vunpack.c.l.b16 %v3222
  %v3295 = vunpack.c.l.b16 %v3223
  %v3296 = vunpack.c.l.b16 %v3224
  %v3297 = vunpack.c.l.b16 %v3225
  %v3298 = vunpack.c.l.b16 %v3226
  %v3299 = vunpack.c.l.b16 %v3227
  %v3300 = vunpack.c.l.b16 %v3228
  %v3301 = vunpack.c.l.b16 %v3229
  %v3302 = vunpack.c.l.b16 %v3230
  %v3303 = vpack.c.b16 %v3268, %v3267
  %v3304 = vpack.c.b16 %v3270, %v3269
  %v3305 = vpack.c.b16 %v3272, %v3271
  %v3306 = vpack.c.b16 %v3274, %v3273
  %v3307 = vpack.c.b16 %v3276, %v3275
  %v3308 = vpack.c.b16 %v3278, %v3277
  %v3309 = vpack.c.b16 %v3280, %v3279
  %v3310 = vpack.c.b16 %v3282, %v3281
  %v3311 = vpack.c.b16 %v3284, %v3283
  %v3312 = vpack.c.b16 %v3286, %v3285
  %v3313 = vpack.c.b16 %v3288, %v3287
  %v3314 = vpack.c.b16 %v3290, %v3289
  %v3315 = vpack.c.b16 %v3292, %v3291
  %v3316 = vpack.c.b16 %v3294, %v3293
  %v3317 = vpack.c.b16 %v3296, %v3295
  %v3318 = vpack.c.b16 %v3298, %v3297
  %v3319 = vpack.c.b16 %v3300, %v3299
  %v3320 = vpack.c.b16 %v3302, %v3301
  %v3322 = vsel %vm163, %v3303, 0
  %v3325 = vsel %vm163, %v3304, 0
  %v3328 = vsel %vm163, %v3305, 0
  %v3331 = vsel %vm163, %v3306, 0
  %v3334 = vsel %vm163, %v3307, 0
  %v3337 = vsel %vm163, %v3308, 0
  %v3340 = vsel %vm163, %v3309, 0
  %v3343 = vsel %vm163, %v3310, 0
  %v3346 = vsel %vm163, %v3311, 0
  %v3349 = vsel %vm163, %v3312, 0
  %v3352 = vsel %vm163, %v3313, 0
  %v3355 = vsel %vm163, %v3314, 0
  %v3358 = vsel %vm163, %v3315, 0
  %v3361 = vsel %vm163, %v3316, 0
  %v3364 = vsel %vm163, %v3317, 0
  %v3367 = vsel %vm163, %v3318, 0
  %v3370 = vsel %vm163, %v3319, 0
  %v3373 = vsel %vm163, %v3320, 0
  %3375 = vmatpush.bf16.msra.mxu0 0
  %3376 = vmatpush.bf16.msra.mxu0 0
  %3377 = vmatpush.bf16.msra.mxu0 0
  %3378 = vmatpush.bf16.msra.mxu0 0
  %3379 = vmatpush.bf16.msra.mxu0 0
  %3380 = vmatpush.bf16.msra.mxu0 0
  %3381 = vmatpush.bf16.msra.mxu0 0
  %3382 = vmatpush.bf16.msra.mxu0 %v161
  %3383 = vmatmul.bf16.gmra.mxu0 %v3322
  %v3384 = vpop.f32.mrf.mxu0
  %v3385 = vadd.f32 %v66, %v3384
  %v3386 = vpop.f32.mrf.mxu0
  %v3387 = vadd.f32 %v66, %v3386
  %3388 = vmatmul.bf16.gmra.mxu0 %v3325
  %v3389 = vpop.f32.mrf.mxu0
  %v3390 = vadd.f32 %v66, %v3389
  %v3391 = vpop.f32.mrf.mxu0
  %v3392 = vadd.f32 %v66, %v3391
  %3393 = vmatmul.bf16.gmra.mxu0 %v3328
  %v3394 = vpop.f32.mrf.mxu0
  %v3395 = vadd.f32 %v66, %v3394
  %v3396 = vpop.f32.mrf.mxu0
  %v3397 = vadd.f32 %v66, %v3396
  %3398 = vmatmul.bf16.gmra.mxu0 %v3331
  %v3399 = vpop.f32.mrf.mxu0
  %v3400 = vadd.f32 %v66, %v3399
  %v3401 = vpop.f32.mrf.mxu0
  %v3402 = vadd.f32 %v66, %v3401
  %3403 = vmatmul.bf16.gmra.mxu0 %v3334
  %v3404 = vpop.f32.mrf.mxu0
  %v3405 = vadd.f32 %v66, %v3404
  %v3406 = vpop.f32.mrf.mxu0
  %v3407 = vadd.f32 %v66, %v3406
  %3408 = vmatmul.bf16.gmra.mxu0 %v3337
  %v3409 = vpop.f32.mrf.mxu0
  %v3410 = vadd.f32 %v66, %v3409
  %v3411 = vpop.f32.mrf.mxu0
  %v3412 = vadd.f32 %v66, %v3411
  %3413 = vmatmul.bf16.gmra.mxu0 %v3340
  %v3414 = vpop.f32.mrf.mxu0
  %v3415 = vadd.f32 %v66, %v3414
  %v3416 = vpop.f32.mrf.mxu0
  %v3417 = vadd.f32 %v66, %v3416
  %3418 = vmatmul.bf16.gmra.mxu0 %v3343
  %v3419 = vpop.f32.mrf.mxu0
  %v3420 = vadd.f32 %v66, %v3419
  %v3421 = vpop.f32.mrf.mxu0
  %v3422 = vadd.f32 %v66, %v3421
  %3423 = vmatmul.bf16.gmra.mxu0 %v3346
  %v3424 = vpop.f32.mrf.mxu0
  %v3425 = vadd.f32 %v66, %v3424
  %v3426 = vpop.f32.mrf.mxu0
  %v3427 = vadd.f32 %v66, %v3426
  %3428 = vmatmul.bf16.gmra.mxu0 %v3349
  %v3429 = vpop.f32.mrf.mxu0
  %v3430 = vadd.f32 %v66, %v3429
  %v3431 = vpop.f32.mrf.mxu0
  %v3432 = vadd.f32 %v66, %v3431
  %3433 = vmatmul.bf16.gmra.mxu0 %v3352
  %v3434 = vpop.f32.mrf.mxu0
  %v3435 = vadd.f32 %v66, %v3434
  %v3436 = vpop.f32.mrf.mxu0
  %v3437 = vadd.f32 %v66, %v3436
  %3438 = vmatmul.bf16.gmra.mxu0 %v3355
  %v3439 = vpop.f32.mrf.mxu0
  %v3440 = vadd.f32 %v66, %v3439
  %v3441 = vpop.f32.mrf.mxu0
  %v3442 = vadd.f32 %v66, %v3441
  %3443 = vmatmul.bf16.gmra.mxu0 %v3358
  %v3444 = vpop.f32.mrf.mxu0
  %v3445 = vadd.f32 %v66, %v3444
  %v3446 = vpop.f32.mrf.mxu0
  %v3447 = vadd.f32 %v66, %v3446
  %3448 = vmatmul.bf16.gmra.mxu0 %v3361
  %v3449 = vpop.f32.mrf.mxu0
  %v3450 = vadd.f32 %v66, %v3449
  %v3451 = vpop.f32.mrf.mxu0
  %v3452 = vadd.f32 %v66, %v3451
  %3453 = vmatmul.bf16.gmra.mxu0 %v3364
  %v3454 = vpop.f32.mrf.mxu0
  %v3455 = vadd.f32 %v66, %v3454
  %v3456 = vpop.f32.mrf.mxu0
  %v3457 = vadd.f32 %v66, %v3456
  %3458 = vmatmul.bf16.gmra.mxu0 %v3367
  %v3459 = vpop.f32.mrf.mxu0
  %v3460 = vadd.f32 %v66, %v3459
  %v3461 = vpop.f32.mrf.mxu0
  %v3462 = vadd.f32 %v66, %v3461
  %3463 = vmatmul.bf16.gmra.mxu0 %v3370
  %v3464 = vpop.f32.mrf.mxu0
  %v3465 = vadd.f32 %v66, %v3464
  %v3466 = vpop.f32.mrf.mxu0
  %v3467 = vadd.f32 %v66, %v3466
  %3468 = vmatmul.bf16.gmra.mxu0 %v3373
  %v3469 = vpop.f32.mrf.mxu0
  %v3470 = vadd.f32 %v66, %v3469
  %v3471 = vpop.f32.mrf.mxu0
  %v3472 = vadd.f32 %v66, %v3471
  %3473 = vdwg.mxu0
  %v3474 = vmax.f32 %v3385, 0.0
  %v3475 = vmax.f32 %v3387, 0.0
  %v3476 = vmax.f32 %v3390, 0.0
  %v3477 = vmax.f32 %v3392, 0.0
  %v3478 = vmax.f32 %v3395, 0.0
  %v3479 = vmax.f32 %v3397, 0.0
  %v3480 = vmax.f32 %v3400, 0.0
  %v3481 = vmax.f32 %v3402, 0.0
  %v3482 = vmax.f32 %v3405, 0.0
  %v3483 = vmax.f32 %v3407, 0.0
  %v3484 = vmax.f32 %v3410, 0.0
  %v3485 = vmax.f32 %v3412, 0.0
  %v3486 = vmax.f32 %v3415, 0.0
  %v3487 = vmax.f32 %v3417, 0.0
  %v3488 = vmax.f32 %v3420, 0.0
  %v3489 = vmax.f32 %v3422, 0.0
  %v3490 = vmax.f32 %v3425, 0.0
  %v3491 = vmax.f32 %v3427, 0.0
  %v3492 = vmax.f32 %v3430, 0.0
  %v3493 = vmax.f32 %v3432, 0.0
  %v3494 = vmax.f32 %v3435, 0.0
  %v3495 = vmax.f32 %v3437, 0.0
  %v3496 = vmax.f32 %v3440, 0.0
  %v3497 = vmax.f32 %v3442, 0.0
  %v3498 = vmax.f32 %v3445, 0.0
  %v3499 = vmax.f32 %v3447, 0.0
  %v3500 = vmax.f32 %v3450, 0.0
  %v3501 = vmax.f32 %v3452, 0.0
  %v3502 = vmax.f32 %v3455, 0.0
  %v3503 = vmax.f32 %v3457, 0.0
  %v3504 = vmax.f32 %v3460, 0.0
  %v3505 = vmax.f32 %v3462, 0.0
  %v3506 = vmax.f32 %v3465, 0.0
  %v3507 = vmax.f32 %v3467, 0.0
  %v3508 = vmax.f32 %v3470, 0.0
  %v3509 = vmax.f32 %v3472, 0.0
  %v3510 = vpack.c.bf16 %v3475, %v3474
  %v3511 = vpack.c.bf16 %v3477, %v3476
  %v3512 = vpack.c.bf16 %v3479, %v3478
  %v3513 = vpack.c.bf16 %v3481, %v3480
  %v3514 = vpack.c.bf16 %v3483, %v3482
  %v3515 = vpack.c.bf16 %v3485, %v3484
  %v3516 = vpack.c.bf16 %v3487, %v3486
  %v3517 = vpack.c.bf16 %v3489, %v3488
  %v3518 = vpack.c.bf16 %v3491, %v3490
  %v3519 = vpack.c.bf16 %v3493, %v3492
  %v3520 = vpack.c.bf16 %v3495, %v3494
  %v3521 = vpack.c.bf16 %v3497, %v3496
  %v3522 = vpack.c.bf16 %v3499, %v3498
  %v3523 = vpack.c.bf16 %v3501, %v3500
  %v3524 = vpack.c.bf16 %v3503, %v3502
  %v3525 = vpack.c.bf16 %v3505, %v3504
  %v3526 = vpack.c.bf16 %v3507, %v3506
  %v3527 = vpack.c.bf16 %v3509, %v3508
  %v3528 = vld [vmem:[%s2 + $0x60] sm:$0xf]
  %v3529 = vld [vmem:[%s2 + $0x64] sm:$0xf]
  %v3530 = vld [vmem:[%s2 + $0x68] sm:$0xf]
  %v3531 = vld [vmem:[%s2 + $0x6c] sm:$0xf]
  %v3536 = vunpack.c.l.b16 %v3528
  %v3537 = vunpack.c.l.b16 %v3529
  %v3538 = vunpack.c.l.b16 %v3530
  %v3539 = vunpack.c.l.b16 %v3531
  %v3540 = vpack.c.b16 %v3537, %v3536
  %v3541 = vpack.c.b16 %v3539, %v3538
  %v3545 = vsel %vm724, %v3510, 0
  %v3548 = vsel %vm724, %v3511, 0
  %v3551 = vsel %vm724, %v3512, 0
  %v3554 = vsel %vm724, %v3513, 0
  %v3557 = vsel %vm724, %v3514, 0
  %v3560 = vsel %vm724, %v3515, 0
  %v3563 = vsel %vm724, %v3516, 0
  %v3566 = vsel %vm724, %v3517, 0
  %v3569 = vsel %vm724, %v3518, 0
  %v3572 = vsel %vm724, %v3519, 0
  %v3575 = vsel %vm724, %v3520, 0
  %v3578 = vsel %vm724, %v3521, 0
  %v3581 = vsel %vm724, %v3522, 0
  %v3584 = vsel %vm724, %v3523, 0
  %v3587 = vsel %vm724, %v3524, 0
  %v3590 = vsel %vm724, %v3525, 0
  %v3593 = vsel %vm724, %v3526, 0
  %v3596 = vsel %vm724, %v3527, 0
  %3598 = vmatpush.bf16.msra.mxu0 0
  %3599 = vmatpush.bf16.msra.mxu0 0
  %3600 = vmatpush.bf16.msra.mxu0 0
  %3601 = vmatpush.bf16.msra.mxu0 0
  %3602 = vmatpush.bf16.msra.mxu0 0
  %3603 = vmatpush.bf16.msra.mxu0 0
  %3604 = vmatpush.bf16.msra.mxu0 %v3541
  %3605 = vmatpush.bf16.msra.mxu0 %v3540
  %3606 = vmatmul.bf16.gmra.mxu0 %v3545
  %v3607 = vpop.f32.mrf.mxu0
  %v3608 = vadd.f32 0.0, %v3607
  %v3609 = vpop.f32.mrf.mxu0
  %v3610 = vadd.f32 0.0, %v3609
  %3611 = vmatmul.bf16.gmra.mxu0 %v3548
  %v3612 = vpop.f32.mrf.mxu0
  %v3613 = vadd.f32 0.0, %v3612
  %v3614 = vpop.f32.mrf.mxu0
  %v3615 = vadd.f32 0.0, %v3614
  %3616 = vmatmul.bf16.gmra.mxu0 %v3551
  %v3617 = vpop.f32.mrf.mxu0
  %v3618 = vadd.f32 0.0, %v3617
  %v3619 = vpop.f32.mrf.mxu0
  %v3620 = vadd.f32 0.0, %v3619
  %3621 = vmatmul.bf16.gmra.mxu0 %v3554
  %v3622 = vpop.f32.mrf.mxu0
  %v3623 = vadd.f32 0.0, %v3622
  %v3624 = vpop.f32.mrf.mxu0
  %v3625 = vadd.f32 0.0, %v3624
  %3626 = vmatmul.bf16.gmra.mxu0 %v3557
  %v3627 = vpop.f32.mrf.mxu0
  %v3628 = vadd.f32 0.0, %v3627
  %v3629 = vpop.f32.mrf.mxu0
  %v3630 = vadd.f32 0.0, %v3629
  %3631 = vmatmul.bf16.gmra.mxu0 %v3560
  %v3632 = vpop.f32.mrf.mxu0
  %v3633 = vadd.f32 0.0, %v3632
  %v3634 = vpop.f32.mrf.mxu0
  %v3635 = vadd.f32 0.0, %v3634
  %3636 = vmatmul.bf16.gmra.mxu0 %v3563
  %v3637 = vpop.f32.mrf.mxu0
  %v3638 = vadd.f32 0.0, %v3637
  %v3639 = vpop.f32.mrf.mxu0
  %v3640 = vadd.f32 0.0, %v3639
  %3641 = vmatmul.bf16.gmra.mxu0 %v3566
  %v3642 = vpop.f32.mrf.mxu0
  %v3643 = vadd.f32 0.0, %v3642
  %v3644 = vpop.f32.mrf.mxu0
  %v3645 = vadd.f32 0.0, %v3644
  %3646 = vmatmul.bf16.gmra.mxu0 %v3569
  %v3647 = vpop.f32.mrf.mxu0
  %v3648 = vadd.f32 0.0, %v3647
  %v3649 = vpop.f32.mrf.mxu0
  %v3650 = vadd.f32 0.0, %v3649
  %3651 = vmatmul.bf16.gmra.mxu0 %v3572
  %v3652 = vpop.f32.mrf.mxu0
  %v3653 = vadd.f32 0.0, %v3652
  %v3654 = vpop.f32.mrf.mxu0
  %v3655 = vadd.f32 0.0, %v3654
  %3656 = vmatmul.bf16.gmra.mxu0 %v3575
  %v3657 = vpop.f32.mrf.mxu0
  %v3658 = vadd.f32 0.0, %v3657
  %v3659 = vpop.f32.mrf.mxu0
  %v3660 = vadd.f32 0.0, %v3659
  %3661 = vmatmul.bf16.gmra.mxu0 %v3578
  %v3662 = vpop.f32.mrf.mxu0
  %v3663 = vadd.f32 0.0, %v3662
  %v3664 = vpop.f32.mrf.mxu0
  %v3665 = vadd.f32 0.0, %v3664
  %3666 = vmatmul.bf16.gmra.mxu0 %v3581
  %v3667 = vpop.f32.mrf.mxu0
  %v3668 = vadd.f32 0.0, %v3667
  %v3669 = vpop.f32.mrf.mxu0
  %v3670 = vadd.f32 0.0, %v3669
  %3671 = vmatmul.bf16.gmra.mxu0 %v3584
  %v3672 = vpop.f32.mrf.mxu0
  %v3673 = vadd.f32 0.0, %v3672
  %v3674 = vpop.f32.mrf.mxu0
  %v3675 = vadd.f32 0.0, %v3674
  %3676 = vmatmul.bf16.gmra.mxu0 %v3587
  %v3677 = vpop.f32.mrf.mxu0
  %v3678 = vadd.f32 0.0, %v3677
  %v3679 = vpop.f32.mrf.mxu0
  %v3680 = vadd.f32 0.0, %v3679
  %3681 = vmatmul.bf16.gmra.mxu0 %v3590
  %v3682 = vpop.f32.mrf.mxu0
  %v3683 = vadd.f32 0.0, %v3682
  %v3684 = vpop.f32.mrf.mxu0
  %v3685 = vadd.f32 0.0, %v3684
  %3686 = vmatmul.bf16.gmra.mxu0 %v3593
  %v3687 = vpop.f32.mrf.mxu0
  %v3688 = vadd.f32 0.0, %v3687
  %v3689 = vpop.f32.mrf.mxu0
  %v3690 = vadd.f32 0.0, %v3689
  %3691 = vmatmul.bf16.gmra.mxu0 %v3596
  %v3692 = vpop.f32.mrf.mxu0
  %v3693 = vadd.f32 0.0, %v3692
  %v3694 = vpop.f32.mrf.mxu0
  %v3695 = vadd.f32 0.0, %v3694
  %3696 = vdwg.mxu0
  %v3697 = vadd.f32 %v3159, %v3608
  %v3698 = vadd.f32 %v3160, %v3610
  %v3699 = vadd.f32 %v3161, %v3613
  %v3700 = vadd.f32 %v3162, %v3615
  %v3701 = vadd.f32 %v3163, %v3618
  %v3702 = vadd.f32 %v3164, %v3620
  %v3703 = vadd.f32 %v3165, %v3623
  %v3704 = vadd.f32 %v3166, %v3625
  %v3705 = vadd.f32 %v3167, %v3628
  %v3706 = vadd.f32 %v3168, %v3630
  %v3707 = vadd.f32 %v3169, %v3633
  %v3708 = vadd.f32 %v3170, %v3635
  %v3709 = vadd.f32 %v3171, %v3638
  %v3710 = vadd.f32 %v3172, %v3640
  %v3711 = vadd.f32 %v3173, %v3643
  %v3712 = vadd.f32 %v3174, %v3645
  %v3713 = vadd.f32 %v3175, %v3648
  %v3714 = vadd.f32 %v3176, %v3650
  %v3715 = vadd.f32 %v3177, %v3653
  %v3716 = vadd.f32 %v3178, %v3655
  %v3717 = vadd.f32 %v3179, %v3658
  %v3718 = vadd.f32 %v3180, %v3660
  %v3719 = vadd.f32 %v3181, %v3663
  %v3720 = vadd.f32 %v3182, %v3665
  %v3721 = vadd.f32 %v3183, %v3668
  %v3722 = vadd.f32 %v3184, %v3670
  %v3723 = vadd.f32 %v3185, %v3673
  %v3724 = vadd.f32 %v3186, %v3675
  %v3725 = vadd.f32 %v3187, %v3678
  %v3726 = vadd.f32 %v3188, %v3680
  %v3727 = vadd.f32 %v3189, %v3683
  %v3728 = vadd.f32 %v3190, %v3685
  %v3729 = vadd.f32 %v3191, %v3688
  %v3730 = vadd.f32 %v3192, %v3690
  %v3731 = vadd.f32 %v3193, %v3693
  %v3732 = vadd.f32 %v3194, %v3695
  %v3733 = vld [vmem:[%s0 + $0x3f0] sm:$0xf]
  %v3734 = vld [vmem:[%s0 + $0x3f4] sm:$0xf]
  %v3735 = vld [vmem:[%s0 + $0x3f8] sm:$0xf]
  %v3736 = vld [vmem:[%s0 + $0x3fc] sm:$0xf]
  %v3737 = vld [vmem:[%s0 + $0x400] sm:$0xf]
  %v3738 = vld [vmem:[%s0 + $0x404] sm:$0xf]
  %v3739 = vld [vmem:[%s0 + $0x408] sm:$0xf]
  %v3740 = vld [vmem:[%s0 + $0x40c] sm:$0xf]
  %v3741 = vld [vmem:[%s0 + $0x410] sm:$0xf]
  %v3742 = vld [vmem:[%s0 + $0x414] sm:$0xf]
  %v3743 = vld [vmem:[%s0 + $0x418] sm:$0xf]
  %v3744 = vld [vmem:[%s0 + $0x41c] sm:$0xf]
  %v3745 = vld [vmem:[%s0 + $0x420] sm:$0xf]
  %v3746 = vld [vmem:[%s0 + $0x424] sm:$0xf]
  %v3747 = vld [vmem:[%s0 + $0x428] sm:$0xf]
  %v3748 = vld [vmem:[%s0 + $0x42c] sm:$0xf]
  %v3749 = vld [vmem:[%s0 + $0x430] sm:$0xf]
  %v3750 = vld [vmem:[%s0 + $0x434] sm:$0xf]
  %v3751 = vld [vmem:[%s0 + $0x438] sm:$0xf]
  %v3752 = vld [vmem:[%s0 + $0x43c] sm:$0xf]
  %v3753 = vld [vmem:[%s0 + $0x440] sm:$0xf]
  %v3754 = vld [vmem:[%s0 + $0x444] sm:$0xf]
  %v3755 = vld [vmem:[%s0 + $0x448] sm:$0xf]
  %v3756 = vld [vmem:[%s0 + $0x44c] sm:$0xf]
  %v3757 = vld [vmem:[%s0 + $0x450] sm:$0xf]
  %v3758 = vld [vmem:[%s0 + $0x454] sm:$0xf]
  %v3759 = vld [vmem:[%s0 + $0x458] sm:$0xf]
  %v3760 = vld [vmem:[%s0 + $0x45c] sm:$0xf]
  %v3761 = vld [vmem:[%s0 + $0x460] sm:$0xf]
  %v3762 = vld [vmem:[%s0 + $0x464] sm:$0xf]
  %v3763 = vld [vmem:[%s0 + $0x468] sm:$0xf]
  %v3764 = vld [vmem:[%s0 + $0x46c] sm:$0xf]
  %v3765 = vld [vmem:[%s0 + $0x470] sm:$0xf]
  %v3766 = vld [vmem:[%s0 + $0x474] sm:$0xf]
  %v3767 = vld [vmem:[%s0 + $0x478] sm:$0xf]
  %v3768 = vld [vmem:[%s0 + $0x47c] sm:$0xf]
  %v3805 = vunpack.c.l.b16 %v3733
  %v3806 = vunpack.c.l.b16 %v3734
  %v3807 = vunpack.c.l.b16 %v3735
  %v3808 = vunpack.c.l.b16 %v3736
  %v3809 = vunpack.c.l.b16 %v3737
  %v3810 = vunpack.c.l.b16 %v3738
  %v3811 = vunpack.c.l.b16 %v3739
  %v3812 = vunpack.c.l.b16 %v3740
  %v3813 = vunpack.c.l.b16 %v3741
  %v3814 = vunpack.c.l.b16 %v3742
  %v3815 = vunpack.c.l.b16 %v3743
  %v3816 = vunpack.c.l.b16 %v3744
  %v3817 = vunpack.c.l.b16 %v3745
  %v3818 = vunpack.c.l.b16 %v3746
  %v3819 = vunpack.c.l.b16 %v3747
  %v3820 = vunpack.c.l.b16 %v3748
  %v3821 = vunpack.c.l.b16 %v3749
  %v3822 = vunpack.c.l.b16 %v3750
  %v3823 = vunpack.c.l.b16 %v3751
  %v3824 = vunpack.c.l.b16 %v3752
  %v3825 = vunpack.c.l.b16 %v3753
  %v3826 = vunpack.c.l.b16 %v3754
  %v3827 = vunpack.c.l.b16 %v3755
  %v3828 = vunpack.c.l.b16 %v3756
  %v3829 = vunpack.c.l.b16 %v3757
  %v3830 = vunpack.c.l.b16 %v3758
  %v3831 = vunpack.c.l.b16 %v3759
  %v3832 = vunpack.c.l.b16 %v3760
  %v3833 = vunpack.c.l.b16 %v3761
  %v3834 = vunpack.c.l.b16 %v3762
  %v3835 = vunpack.c.l.b16 %v3763
  %v3836 = vunpack.c.l.b16 %v3764
  %v3837 = vunpack.c.l.b16 %v3765
  %v3838 = vunpack.c.l.b16 %v3766
  %v3839 = vunpack.c.l.b16 %v3767
  %v3840 = vunpack.c.l.b16 %v3768
  %v3841 = vpack.c.b16 %v3806, %v3805
  %v3842 = vpack.c.b16 %v3808, %v3807
  %v3843 = vpack.c.b16 %v3810, %v3809
  %v3844 = vpack.c.b16 %v3812, %v3811
  %v3845 = vpack.c.b16 %v3814, %v3813
  %v3846 = vpack.c.b16 %v3816, %v3815
  %v3847 = vpack.c.b16 %v3818, %v3817
  %v3848 = vpack.c.b16 %v3820, %v3819
  %v3849 = vpack.c.b16 %v3822, %v3821
  %v3850 = vpack.c.b16 %v3824, %v3823
  %v3851 = vpack.c.b16 %v3826, %v3825
  %v3852 = vpack.c.b16 %v3828, %v3827
  %v3853 = vpack.c.b16 %v3830, %v3829
  %v3854 = vpack.c.b16 %v3832, %v3831
  %v3855 = vpack.c.b16 %v3834, %v3833
  %v3856 = vpack.c.b16 %v3836, %v3835
  %v3857 = vpack.c.b16 %v3838, %v3837
  %v3858 = vpack.c.b16 %v3840, %v3839
  %v3860 = vsel %vm163, %v3841, 0
  %v3863 = vsel %vm163, %v3842, 0
  %v3866 = vsel %vm163, %v3843, 0
  %v3869 = vsel %vm163, %v3844, 0
  %v3872 = vsel %vm163, %v3845, 0
  %v3875 = vsel %vm163, %v3846, 0
  %v3878 = vsel %vm163, %v3847, 0
  %v3881 = vsel %vm163, %v3848, 0
  %v3884 = vsel %vm163, %v3849, 0
  %v3887 = vsel %vm163, %v3850, 0
  %v3890 = vsel %vm163, %v3851, 0
  %v3893 = vsel %vm163, %v3852, 0
  %v3896 = vsel %vm163, %v3853, 0
  %v3899 = vsel %vm163, %v3854, 0
  %v3902 = vsel %vm163, %v3855, 0
  %v3905 = vsel %vm163, %v3856, 0
  %v3908 = vsel %vm163, %v3857, 0
  %v3911 = vsel %vm163, %v3858, 0
  %3913 = vmatpush.bf16.msra.mxu0 0
  %3914 = vmatpush.bf16.msra.mxu0 0
  %3915 = vmatpush.bf16.msra.mxu0 0
  %3916 = vmatpush.bf16.msra.mxu0 0
  %3917 = vmatpush.bf16.msra.mxu0 0
  %3918 = vmatpush.bf16.msra.mxu0 0
  %3919 = vmatpush.bf16.msra.mxu0 0
  %3920 = vmatpush.bf16.msra.mxu0 %v161
  %3921 = vmatmul.bf16.gmra.mxu0 %v3860
  %v3922 = vpop.f32.mrf.mxu0
  %v3923 = vadd.f32 %v66, %v3922
  %v3924 = vpop.f32.mrf.mxu0
  %v3925 = vadd.f32 %v66, %v3924
  %3926 = vmatmul.bf16.gmra.mxu0 %v3863
  %v3927 = vpop.f32.mrf.mxu0
  %v3928 = vadd.f32 %v66, %v3927
  %v3929 = vpop.f32.mrf.mxu0
  %v3930 = vadd.f32 %v66, %v3929
  %3931 = vmatmul.bf16.gmra.mxu0 %v3866
  %v3932 = vpop.f32.mrf.mxu0
  %v3933 = vadd.f32 %v66, %v3932
  %v3934 = vpop.f32.mrf.mxu0
  %v3935 = vadd.f32 %v66, %v3934
  %3936 = vmatmul.bf16.gmra.mxu0 %v3869
  %v3937 = vpop.f32.mrf.mxu0
  %v3938 = vadd.f32 %v66, %v3937
  %v3939 = vpop.f32.mrf.mxu0
  %v3940 = vadd.f32 %v66, %v3939
  %3941 = vmatmul.bf16.gmra.mxu0 %v3872
  %v3942 = vpop.f32.mrf.mxu0
  %v3943 = vadd.f32 %v66, %v3942
  %v3944 = vpop.f32.mrf.mxu0
  %v3945 = vadd.f32 %v66, %v3944
  %3946 = vmatmul.bf16.gmra.mxu0 %v3875
  %v3947 = vpop.f32.mrf.mxu0
  %v3948 = vadd.f32 %v66, %v3947
  %v3949 = vpop.f32.mrf.mxu0
  %v3950 = vadd.f32 %v66, %v3949
  %3951 = vmatmul.bf16.gmra.mxu0 %v3878
  %v3952 = vpop.f32.mrf.mxu0
  %v3953 = vadd.f32 %v66, %v3952
  %v3954 = vpop.f32.mrf.mxu0
  %v3955 = vadd.f32 %v66, %v3954
  %3956 = vmatmul.bf16.gmra.mxu0 %v3881
  %v3957 = vpop.f32.mrf.mxu0
  %v3958 = vadd.f32 %v66, %v3957
  %v3959 = vpop.f32.mrf.mxu0
  %v3960 = vadd.f32 %v66, %v3959
  %3961 = vmatmul.bf16.gmra.mxu0 %v3884
  %v3962 = vpop.f32.mrf.mxu0
  %v3963 = vadd.f32 %v66, %v3962
  %v3964 = vpop.f32.mrf.mxu0
  %v3965 = vadd.f32 %v66, %v3964
  %3966 = vmatmul.bf16.gmra.mxu0 %v3887
  %v3967 = vpop.f32.mrf.mxu0
  %v3968 = vadd.f32 %v66, %v3967
  %v3969 = vpop.f32.mrf.mxu0
  %v3970 = vadd.f32 %v66, %v3969
  %3971 = vmatmul.bf16.gmra.mxu0 %v3890
  %v3972 = vpop.f32.mrf.mxu0
  %v3973 = vadd.f32 %v66, %v3972
  %v3974 = vpop.f32.mrf.mxu0
  %v3975 = vadd.f32 %v66, %v3974
  %3976 = vmatmul.bf16.gmra.mxu0 %v3893
  %v3977 = vpop.f32.mrf.mxu0
  %v3978 = vadd.f32 %v66, %v3977
  %v3979 = vpop.f32.mrf.mxu0
  %v3980 = vadd.f32 %v66, %v3979
  %3981 = vmatmul.bf16.gmra.mxu0 %v3896
  %v3982 = vpop.f32.mrf.mxu0
  %v3983 = vadd.f32 %v66, %v3982
  %v3984 = vpop.f32.mrf.mxu0
  %v3985 = vadd.f32 %v66, %v3984
  %3986 = vmatmul.bf16.gmra.mxu0 %v3899
  %v3987 = vpop.f32.mrf.mxu0
  %v3988 = vadd.f32 %v66, %v3987
  %v3989 = vpop.f32.mrf.mxu0
  %v3990 = vadd.f32 %v66, %v3989
  %3991 = vmatmul.bf16.gmra.mxu0 %v3902
  %v3992 = vpop.f32.mrf.mxu0
  %v3993 = vadd.f32 %v66, %v3992
  %v3994 = vpop.f32.mrf.mxu0
  %v3995 = vadd.f32 %v66, %v3994
  %3996 = vmatmul.bf16.gmra.mxu0 %v3905
  %v3997 = vpop.f32.mrf.mxu0
  %v3998 = vadd.f32 %v66, %v3997
  %v3999 = vpop.f32.mrf.mxu0
  %v4000 = vadd.f32 %v66, %v3999
  %4001 = vmatmul.bf16.gmra.mxu0 %v3908
  %v4002 = vpop.f32.mrf.mxu0
  %v4003 = vadd.f32 %v66, %v4002
  %v4004 = vpop.f32.mrf.mxu0
  %v4005 = vadd.f32 %v66, %v4004
  %4006 = vmatmul.bf16.gmra.mxu0 %v3911
  %v4007 = vpop.f32.mrf.mxu0
  %v4008 = vadd.f32 %v66, %v4007
  %v4009 = vpop.f32.mrf.mxu0
  %v4010 = vadd.f32 %v66, %v4009
  %4011 = vdwg.mxu0
  %v4012 = vmax.f32 %v3923, 0.0
  %v4013 = vmax.f32 %v3925, 0.0
  %v4014 = vmax.f32 %v3928, 0.0
  %v4015 = vmax.f32 %v3930, 0.0
  %v4016 = vmax.f32 %v3933, 0.0
  %v4017 = vmax.f32 %v3935, 0.0
  %v4018 = vmax.f32 %v3938, 0.0
  %v4019 = vmax.f32 %v3940, 0.0
  %v4020 = vmax.f32 %v3943, 0.0
  %v4021 = vmax.f32 %v3945, 0.0
  %v4022 = vmax.f32 %v3948, 0.0
  %v4023 = vmax.f32 %v3950, 0.0
  %v4024 = vmax.f32 %v3953, 0.0
  %v4025 = vmax.f32 %v3955, 0.0
  %v4026 = vmax.f32 %v3958, 0.0
  %v4027 = vmax.f32 %v3960, 0.0
  %v4028 = vmax.f32 %v3963, 0.0
  %v4029 = vmax.f32 %v3965, 0.0
  %v4030 = vmax.f32 %v3968, 0.0
  %v4031 = vmax.f32 %v3970, 0.0
  %v4032 = vmax.f32 %v3973, 0.0
  %v4033 = vmax.f32 %v3975, 0.0
  %v4034 = vmax.f32 %v3978, 0.0
  %v4035 = vmax.f32 %v3980, 0.0
  %v4036 = vmax.f32 %v3983, 0.0
  %v4037 = vmax.f32 %v3985, 0.0
  %v4038 = vmax.f32 %v3988, 0.0
  %v4039 = vmax.f32 %v3990, 0.0
  %v4040 = vmax.f32 %v3993, 0.0
  %v4041 = vmax.f32 %v3995, 0.0
  %v4042 = vmax.f32 %v3998, 0.0
  %v4043 = vmax.f32 %v4000, 0.0
  %v4044 = vmax.f32 %v4003, 0.0
  %v4045 = vmax.f32 %v4005, 0.0
  %v4046 = vmax.f32 %v4008, 0.0
  %v4047 = vmax.f32 %v4010, 0.0
  %v4048 = vpack.c.bf16 %v4013, %v4012
  %v4049 = vpack.c.bf16 %v4015, %v4014
  %v4050 = vpack.c.bf16 %v4017, %v4016
  %v4051 = vpack.c.bf16 %v4019, %v4018
  %v4052 = vpack.c.bf16 %v4021, %v4020
  %v4053 = vpack.c.bf16 %v4023, %v4022
  %v4054 = vpack.c.bf16 %v4025, %v4024
  %v4055 = vpack.c.bf16 %v4027, %v4026
  %v4056 = vpack.c.bf16 %v4029, %v4028
  %v4057 = vpack.c.bf16 %v4031, %v4030
  %v4058 = vpack.c.bf16 %v4033, %v4032
  %v4059 = vpack.c.bf16 %v4035, %v4034
  %v4060 = vpack.c.bf16 %v4037, %v4036
  %v4061 = vpack.c.bf16 %v4039, %v4038
  %v4062 = vpack.c.bf16 %v4041, %v4040
  %v4063 = vpack.c.bf16 %v4043, %v4042
  %v4064 = vpack.c.bf16 %v4045, %v4044
  %v4065 = vpack.c.bf16 %v4047, %v4046
  %v4066 = vld [vmem:[%s2 + $0x70] sm:$0xf]
  %v4067 = vld [vmem:[%s2 + $0x74] sm:$0xf]
  %v4068 = vld [vmem:[%s2 + $0x78] sm:$0xf]
  %v4069 = vld [vmem:[%s2 + $0x7c] sm:$0xf]
  %v4074 = vunpack.c.l.b16 %v4066
  %v4075 = vunpack.c.l.b16 %v4067
  %v4076 = vunpack.c.l.b16 %v4068
  %v4077 = vunpack.c.l.b16 %v4069
  %v4078 = vpack.c.b16 %v4075, %v4074
  %v4079 = vpack.c.b16 %v4077, %v4076
  %v4083 = vsel %vm724, %v4048, 0
  %v4086 = vsel %vm724, %v4049, 0
  %v4089 = vsel %vm724, %v4050, 0
  %v4092 = vsel %vm724, %v4051, 0
  %v4095 = vsel %vm724, %v4052, 0
  %v4098 = vsel %vm724, %v4053, 0
  %v4101 = vsel %vm724, %v4054, 0
  %v4104 = vsel %vm724, %v4055, 0
  %v4107 = vsel %vm724, %v4056, 0
  %v4110 = vsel %vm724, %v4057, 0
  %v4113 = vsel %vm724, %v4058, 0
  %v4116 = vsel %vm724, %v4059, 0
  %v4119 = vsel %vm724, %v4060, 0
  %v4122 = vsel %vm724, %v4061, 0
  %v4125 = vsel %vm724, %v4062, 0
  %v4128 = vsel %vm724, %v4063, 0
  %v4131 = vsel %vm724, %v4064, 0
  %v4134 = vsel %vm724, %v4065, 0
  %4136 = vmatpush.bf16.msra.mxu0 0
  %4137 = vmatpush.bf16.msra.mxu0 0
  %4138 = vmatpush.bf16.msra.mxu0 0
  %4139 = vmatpush.bf16.msra.mxu0 0
  %4140 = vmatpush.bf16.msra.mxu0 0
  %4141 = vmatpush.bf16.msra.mxu0 0
  %4142 = vmatpush.bf16.msra.mxu0 %v4079
  %4143 = vmatpush.bf16.msra.mxu0 %v4078
  %4144 = vmatmul.bf16.gmra.mxu0 %v4083
  %v4145 = vpop.f32.mrf.mxu0
  %v4146 = vadd.f32 0.0, %v4145
  %v4147 = vpop.f32.mrf.mxu0
  %v4148 = vadd.f32 0.0, %v4147
  %4149 = vmatmul.bf16.gmra.mxu0 %v4086
  %v4150 = vpop.f32.mrf.mxu0
  %v4151 = vadd.f32 0.0, %v4150
  %v4152 = vpop.f32.mrf.mxu0
  %v4153 = vadd.f32 0.0, %v4152
  %4154 = vmatmul.bf16.gmra.mxu0 %v4089
  %v4155 = vpop.f32.mrf.mxu0
  %v4156 = vadd.f32 0.0, %v4155
  %v4157 = vpop.f32.mrf.mxu0
  %v4158 = vadd.f32 0.0, %v4157
  %4159 = vmatmul.bf16.gmra.mxu0 %v4092
  %v4160 = vpop.f32.mrf.mxu0
  %v4161 = vadd.f32 0.0, %v4160
  %v4162 = vpop.f32.mrf.mxu0
  %v4163 = vadd.f32 0.0, %v4162
  %4164 = vmatmul.bf16.gmra.mxu0 %v4095
  %v4165 = vpop.f32.mrf.mxu0
  %v4166 = vadd.f32 0.0, %v4165
  %v4167 = vpop.f32.mrf.mxu0
  %v4168 = vadd.f32 0.0, %v4167
  %4169 = vmatmul.bf16.gmra.mxu0 %v4098
  %v4170 = vpop.f32.mrf.mxu0
  %v4171 = vadd.f32 0.0, %v4170
  %v4172 = vpop.f32.mrf.mxu0
  %v4173 = vadd.f32 0.0, %v4172
  %4174 = vmatmul.bf16.gmra.mxu0 %v4101
  %v4175 = vpop.f32.mrf.mxu0
  %v4176 = vadd.f32 0.0, %v4175
  %v4177 = vpop.f32.mrf.mxu0
  %v4178 = vadd.f32 0.0, %v4177
  %4179 = vmatmul.bf16.gmra.mxu0 %v4104
  %v4180 = vpop.f32.mrf.mxu0
  %v4181 = vadd.f32 0.0, %v4180
  %v4182 = vpop.f32.mrf.mxu0
  %v4183 = vadd.f32 0.0, %v4182
  %4184 = vmatmul.bf16.gmra.mxu0 %v4107
  %v4185 = vpop.f32.mrf.mxu0
  %v4186 = vadd.f32 0.0, %v4185
  %v4187 = vpop.f32.mrf.mxu0
  %v4188 = vadd.f32 0.0, %v4187
  %4189 = vmatmul.bf16.gmra.mxu0 %v4110
  %v4190 = vpop.f32.mrf.mxu0
  %v4191 = vadd.f32 0.0, %v4190
  %v4192 = vpop.f32.mrf.mxu0
  %v4193 = vadd.f32 0.0, %v4192
  %4194 = vmatmul.bf16.gmra.mxu0 %v4113
  %v4195 = vpop.f32.mrf.mxu0
  %v4196 = vadd.f32 0.0, %v4195
  %v4197 = vpop.f32.mrf.mxu0
  %v4198 = vadd.f32 0.0, %v4197
  %4199 = vmatmul.bf16.gmra.mxu0 %v4116
  %v4200 = vpop.f32.mrf.mxu0
  %v4201 = vadd.f32 0.0, %v4200
  %v4202 = vpop.f32.mrf.mxu0
  %v4203 = vadd.f32 0.0, %v4202
  %4204 = vmatmul.bf16.gmra.mxu0 %v4119
  %v4205 = vpop.f32.mrf.mxu0
  %v4206 = vadd.f32 0.0, %v4205
  %v4207 = vpop.f32.mrf.mxu0
  %v4208 = vadd.f32 0.0, %v4207
  %4209 = vmatmul.bf16.gmra.mxu0 %v4122
  %v4210 = vpop.f32.mrf.mxu0
  %v4211 = vadd.f32 0.0, %v4210
  %v4212 = vpop.f32.mrf.mxu0
  %v4213 = vadd.f32 0.0, %v4212
  %4214 = vmatmul.bf16.gmra.mxu0 %v4125
  %v4215 = vpop.f32.mrf.mxu0
  %v4216 = vadd.f32 0.0, %v4215
  %v4217 = vpop.f32.mrf.mxu0
  %v4218 = vadd.f32 0.0, %v4217
  %4219 = vmatmul.bf16.gmra.mxu0 %v4128
  %v4220 = vpop.f32.mrf.mxu0
  %v4221 = vadd.f32 0.0, %v4220
  %v4222 = vpop.f32.mrf.mxu0
  %v4223 = vadd.f32 0.0, %v4222
  %4224 = vmatmul.bf16.gmra.mxu0 %v4131
  %v4225 = vpop.f32.mrf.mxu0
  %v4226 = vadd.f32 0.0, %v4225
  %v4227 = vpop.f32.mrf.mxu0
  %v4228 = vadd.f32 0.0, %v4227
  %4229 = vmatmul.bf16.gmra.mxu0 %v4134
  %v4230 = vpop.f32.mrf.mxu0
  %v4231 = vadd.f32 0.0, %v4230
  %v4232 = vpop.f32.mrf.mxu0
  %v4233 = vadd.f32 0.0, %v4232
  %4234 = vdwg.mxu0
  %v4235 = vadd.f32 %v3697, %v4146
  %v4236 = vadd.f32 %v3698, %v4148
  %v4237 = vadd.f32 %v3699, %v4151
  %v4238 = vadd.f32 %v3700, %v4153
  %v4239 = vadd.f32 %v3701, %v4156
  %v4240 = vadd.f32 %v3702, %v4158
  %v4241 = vadd.f32 %v3703, %v4161
  %v4242 = vadd.f32 %v3704, %v4163
  %v4243 = vadd.f32 %v3705, %v4166
  %v4244 = vadd.f32 %v3706, %v4168
  %v4245 = vadd.f32 %v3707, %v4171
  %v4246 = vadd.f32 %v3708, %v4173
  %v4247 = vadd.f32 %v3709, %v4176
  %v4248 = vadd.f32 %v3710, %v4178
  %v4249 = vadd.f32 %v3711, %v4181
  %v4250 = vadd.f32 %v3712, %v4183
  %v4251 = vadd.f32 %v3713, %v4186
  %v4252 = vadd.f32 %v3714, %v4188
  %v4253 = vadd.f32 %v3715, %v4191
  %v4254 = vadd.f32 %v3716, %v4193
  %v4255 = vadd.f32 %v3717, %v4196
  %v4256 = vadd.f32 %v3718, %v4198
  %v4257 = vadd.f32 %v3719, %v4201
  %v4258 = vadd.f32 %v3720, %v4203
  %v4259 = vadd.f32 %v3721, %v4206
  %v4260 = vadd.f32 %v3722, %v4208
  %v4261 = vadd.f32 %v3723, %v4211
  %v4262 = vadd.f32 %v3724, %v4213
  %v4263 = vadd.f32 %v3725, %v4216
  %v4264 = vadd.f32 %v3726, %v4218
  %v4265 = vadd.f32 %v3727, %v4221
  %v4266 = vadd.f32 %v3728, %v4223
  %v4267 = vadd.f32 %v3729, %v4226
  %v4268 = vadd.f32 %v3730, %v4228
  %v4269 = vadd.f32 %v3731, %v4231
  %v4270 = vadd.f32 %v3732, %v4233
  %v4271 = vld [vmem:[%s0 + $0x480] sm:$0xf]
  %v4272 = vld [vmem:[%s0 + $0x484] sm:$0xf]
  %v4273 = vld [vmem:[%s0 + $0x488] sm:$0xf]
  %v4274 = vld [vmem:[%s0 + $0x48c] sm:$0xf]
  %v4275 = vld [vmem:[%s0 + $0x490] sm:$0xf]
  %v4276 = vld [vmem:[%s0 + $0x494] sm:$0xf]
  %v4277 = vld [vmem:[%s0 + $0x498] sm:$0xf]
  %v4278 = vld [vmem:[%s0 + $0x49c] sm:$0xf]
  %v4279 = vld [vmem:[%s0 + $0x4a0] sm:$0xf]
  %v4280 = vld [vmem:[%s0 + $0x4a4] sm:$0xf]
  %v4281 = vld [vmem:[%s0 + $0x4a8] sm:$0xf]
  %v4282 = vld [vmem:[%s0 + $0x4ac] sm:$0xf]
  %v4283 = vld [vmem:[%s0 + $0x4b0] sm:$0xf]
  %v4284 = vld [vmem:[%s0 + $0x4b4] sm:$0xf]
  %v4285 = vld [vmem:[%s0 + $0x4b8] sm:$0xf]
  %v4286 = vld [vmem:[%s0 + $0x4bc] sm:$0xf]
  %v4287 = vld [vmem:[%s0 + $0x4c0] sm:$0xf]
  %v4288 = vld [vmem:[%s0 + $0x4c4] sm:$0xf]
  %v4289 = vld [vmem:[%s0 + $0x4c8] sm:$0xf]
  %v4290 = vld [vmem:[%s0 + $0x4cc] sm:$0xf]
  %v4291 = vld [vmem:[%s0 + $0x4d0] sm:$0xf]
  %v4292 = vld [vmem:[%s0 + $0x4d4] sm:$0xf]
  %v4293 = vld [vmem:[%s0 + $0x4d8] sm:$0xf]
  %v4294 = vld [vmem:[%s0 + $0x4dc] sm:$0xf]
  %v4295 = vld [vmem:[%s0 + $0x4e0] sm:$0xf]
  %v4296 = vld [vmem:[%s0 + $0x4e4] sm:$0xf]
  %v4297 = vld [vmem:[%s0 + $0x4e8] sm:$0xf]
  %v4298 = vld [vmem:[%s0 + $0x4ec] sm:$0xf]
  %v4299 = vld [vmem:[%s0 + $0x4f0] sm:$0xf]
  %v4300 = vld [vmem:[%s0 + $0x4f4] sm:$0xf]
  %v4301 = vld [vmem:[%s0 + $0x4f8] sm:$0xf]
  %v4302 = vld [vmem:[%s0 + $0x4fc] sm:$0xf]
  %v4303 = vld [vmem:[%s0 + $0x500] sm:$0xf]
  %v4304 = vld [vmem:[%s0 + $0x504] sm:$0xf]
  %v4305 = vld [vmem:[%s0 + $0x508] sm:$0xf]
  %v4306 = vld [vmem:[%s0 + $0x50c] sm:$0xf]
  %v4343 = vunpack.c.l.b16 %v4271
  %v4344 = vunpack.c.l.b16 %v4272
  %v4345 = vunpack.c.l.b16 %v4273
  %v4346 = vunpack.c.l.b16 %v4274
  %v4347 = vunpack.c.l.b16 %v4275
  %v4348 = vunpack.c.l.b16 %v4276
  %v4349 = vunpack.c.l.b16 %v4277
  %v4350 = vunpack.c.l.b16 %v4278
  %v4351 = vunpack.c.l.b16 %v4279
  %v4352 = vunpack.c.l.b16 %v4280
  %v4353 = vunpack.c.l.b16 %v4281
  %v4354 = vunpack.c.l.b16 %v4282
  %v4355 = vunpack.c.l.b16 %v4283
  %v4356 = vunpack.c.l.b16 %v4284
  %v4357 = vunpack.c.l.b16 %v4285
  %v4358 = vunpack.c.l.b16 %v4286
  %v4359 = vunpack.c.l.b16 %v4287
  %v4360 = vunpack.c.l.b16 %v4288
  %v4361 = vunpack.c.l.b16 %v4289
  %v4362 = vunpack.c.l.b16 %v4290
  %v4363 = vunpack.c.l.b16 %v4291
  %v4364 = vunpack.c.l.b16 %v4292
  %v4365 = vunpack.c.l.b16 %v4293
  %v4366 = vunpack.c.l.b16 %v4294
  %v4367 = vunpack.c.l.b16 %v4295
  %v4368 = vunpack.c.l.b16 %v4296
  %v4369 = vunpack.c.l.b16 %v4297
  %v4370 = vunpack.c.l.b16 %v4298
  %v4371 = vunpack.c.l.b16 %v4299
  %v4372 = vunpack.c.l.b16 %v4300
  %v4373 = vunpack.c.l.b16 %v4301
  %v4374 = vunpack.c.l.b16 %v4302
  %v4375 = vunpack.c.l.b16 %v4303
  %v4376 = vunpack.c.l.b16 %v4304
  %v4377 = vunpack.c.l.b16 %v4305
  %v4378 = vunpack.c.l.b16 %v4306
  %v4379 = vpack.c.b16 %v4344, %v4343
  %v4380 = vpack.c.b16 %v4346, %v4345
  %v4381 = vpack.c.b16 %v4348, %v4347
  %v4382 = vpack.c.b16 %v4350, %v4349
  %v4383 = vpack.c.b16 %v4352, %v4351
  %v4384 = vpack.c.b16 %v4354, %v4353
  %v4385 = vpack.c.b16 %v4356, %v4355
  %v4386 = vpack.c.b16 %v4358, %v4357
  %v4387 = vpack.c.b16 %v4360, %v4359
  %v4388 = vpack.c.b16 %v4362, %v4361
  %v4389 = vpack.c.b16 %v4364, %v4363
  %v4390 = vpack.c.b16 %v4366, %v4365
  %v4391 = vpack.c.b16 %v4368, %v4367
  %v4392 = vpack.c.b16 %v4370, %v4369
  %v4393 = vpack.c.b16 %v4372, %v4371
  %v4394 = vpack.c.b16 %v4374, %v4373
  %v4395 = vpack.c.b16 %v4376, %v4375
  %v4396 = vpack.c.b16 %v4378, %v4377
  %v4398 = vsel %vm163, %v4379, 0
  %v4401 = vsel %vm163, %v4380, 0
  %v4404 = vsel %vm163, %v4381, 0
  %v4407 = vsel %vm163, %v4382, 0
  %v4410 = vsel %vm163, %v4383, 0
  %v4413 = vsel %vm163, %v4384, 0
  %v4416 = vsel %vm163, %v4385, 0
  %v4419 = vsel %vm163, %v4386, 0
  %v4422 = vsel %vm163, %v4387, 0
  %v4425 = vsel %vm163, %v4388, 0
  %v4428 = vsel %vm163, %v4389, 0
  %v4431 = vsel %vm163, %v4390, 0
  %v4434 = vsel %vm163, %v4391, 0
  %v4437 = vsel %vm163, %v4392, 0
  %v4440 = vsel %vm163, %v4393, 0
  %v4443 = vsel %vm163, %v4394, 0
  %v4446 = vsel %vm163, %v4395, 0
  %v4449 = vsel %vm163, %v4396, 0
  %4451 = vmatpush.bf16.msra.mxu0 0
  %4452 = vmatpush.bf16.msra.mxu0 0
  %4453 = vmatpush.bf16.msra.mxu0 0
  %4454 = vmatpush.bf16.msra.mxu0 0
  %4455 = vmatpush.bf16.msra.mxu0 0
  %4456 = vmatpush.bf16.msra.mxu0 0
  %4457 = vmatpush.bf16.msra.mxu0 0
  %4458 = vmatpush.bf16.msra.mxu0 %v161
  %4459 = vmatmul.bf16.gmra.mxu0 %v4398
  %v4460 = vpop.f32.mrf.mxu0
  %v4461 = vadd.f32 %v66, %v4460
  %v4462 = vpop.f32.mrf.mxu0
  %v4463 = vadd.f32 %v66, %v4462
  %4464 = vmatmul.bf16.gmra.mxu0 %v4401
  %v4465 = vpop.f32.mrf.mxu0
  %v4466 = vadd.f32 %v66, %v4465
  %v4467 = vpop.f32.mrf.mxu0
  %v4468 = vadd.f32 %v66, %v4467
  %4469 = vmatmul.bf16.gmra.mxu0 %v4404
  %v4470 = vpop.f32.mrf.mxu0
  %v4471 = vadd.f32 %v66, %v4470
  %v4472 = vpop.f32.mrf.mxu0
  %v4473 = vadd.f32 %v66, %v4472
  %4474 = vmatmul.bf16.gmra.mxu0 %v4407
  %v4475 = vpop.f32.mrf.mxu0
  %v4476 = vadd.f32 %v66, %v4475
  %v4477 = vpop.f32.mrf.mxu0
  %v4478 = vadd.f32 %v66, %v4477
  %4479 = vmatmul.bf16.gmra.mxu0 %v4410
  %v4480 = vpop.f32.mrf.mxu0
  %v4481 = vadd.f32 %v66, %v4480
  %v4482 = vpop.f32.mrf.mxu0
  %v4483 = vadd.f32 %v66, %v4482
  %4484 = vmatmul.bf16.gmra.mxu0 %v4413
  %v4485 = vpop.f32.mrf.mxu0
  %v4486 = vadd.f32 %v66, %v4485
  %v4487 = vpop.f32.mrf.mxu0
  %v4488 = vadd.f32 %v66, %v4487
  %4489 = vmatmul.bf16.gmra.mxu0 %v4416
  %v4490 = vpop.f32.mrf.mxu0
  %v4491 = vadd.f32 %v66, %v4490
  %v4492 = vpop.f32.mrf.mxu0
  %v4493 = vadd.f32 %v66, %v4492
  %4494 = vmatmul.bf16.gmra.mxu0 %v4419
  %v4495 = vpop.f32.mrf.mxu0
  %v4496 = vadd.f32 %v66, %v4495
  %v4497 = vpop.f32.mrf.mxu0
  %v4498 = vadd.f32 %v66, %v4497
  %4499 = vmatmul.bf16.gmra.mxu0 %v4422
  %v4500 = vpop.f32.mrf.mxu0
  %v4501 = vadd.f32 %v66, %v4500
  %v4502 = vpop.f32.mrf.mxu0
  %v4503 = vadd.f32 %v66, %v4502
  %4504 = vmatmul.bf16.gmra.mxu0 %v4425
  %v4505 = vpop.f32.mrf.mxu0
  %v4506 = vadd.f32 %v66, %v4505
  %v4507 = vpop.f32.mrf.mxu0
  %v4508 = vadd.f32 %v66, %v4507
  %4509 = vmatmul.bf16.gmra.mxu0 %v4428
  %v4510 = vpop.f32.mrf.mxu0
  %v4511 = vadd.f32 %v66, %v4510
  %v4512 = vpop.f32.mrf.mxu0
  %v4513 = vadd.f32 %v66, %v4512
  %4514 = vmatmul.bf16.gmra.mxu0 %v4431
  %v4515 = vpop.f32.mrf.mxu0
  %v4516 = vadd.f32 %v66, %v4515
  %v4517 = vpop.f32.mrf.mxu0
  %v4518 = vadd.f32 %v66, %v4517
  %4519 = vmatmul.bf16.gmra.mxu0 %v4434
  %v4520 = vpop.f32.mrf.mxu0
  %v4521 = vadd.f32 %v66, %v4520
  %v4522 = vpop.f32.mrf.mxu0
  %v4523 = vadd.f32 %v66, %v4522
  %4524 = vmatmul.bf16.gmra.mxu0 %v4437
  %v4525 = vpop.f32.mrf.mxu0
  %v4526 = vadd.f32 %v66, %v4525
  %v4527 = vpop.f32.mrf.mxu0
  %v4528 = vadd.f32 %v66, %v4527
  %4529 = vmatmul.bf16.gmra.mxu0 %v4440
  %v4530 = vpop.f32.mrf.mxu0
  %v4531 = vadd.f32 %v66, %v4530
  %v4532 = vpop.f32.mrf.mxu0
  %v4533 = vadd.f32 %v66, %v4532
  %4534 = vmatmul.bf16.gmra.mxu0 %v4443
  %v4535 = vpop.f32.mrf.mxu0
  %v4536 = vadd.f32 %v66, %v4535
  %v4537 = vpop.f32.mrf.mxu0
  %v4538 = vadd.f32 %v66, %v4537
  %4539 = vmatmul.bf16.gmra.mxu0 %v4446
  %v4540 = vpop.f32.mrf.mxu0
  %v4541 = vadd.f32 %v66, %v4540
  %v4542 = vpop.f32.mrf.mxu0
  %v4543 = vadd.f32 %v66, %v4542
  %4544 = vmatmul.bf16.gmra.mxu0 %v4449
  %v4545 = vpop.f32.mrf.mxu0
  %v4546 = vadd.f32 %v66, %v4545
  %v4547 = vpop.f32.mrf.mxu0
  %v4548 = vadd.f32 %v66, %v4547
  %4549 = vdwg.mxu0
  %v4550 = vmax.f32 %v4461, 0.0
  %v4551 = vmax.f32 %v4463, 0.0
  %v4552 = vmax.f32 %v4466, 0.0
  %v4553 = vmax.f32 %v4468, 0.0
  %v4554 = vmax.f32 %v4471, 0.0
  %v4555 = vmax.f32 %v4473, 0.0
  %v4556 = vmax.f32 %v4476, 0.0
  %v4557 = vmax.f32 %v4478, 0.0
  %v4558 = vmax.f32 %v4481, 0.0
  %v4559 = vmax.f32 %v4483, 0.0
  %v4560 = vmax.f32 %v4486, 0.0
  %v4561 = vmax.f32 %v4488, 0.0
  %v4562 = vmax.f32 %v4491, 0.0
  %v4563 = vmax.f32 %v4493, 0.0
  %v4564 = vmax.f32 %v4496, 0.0
  %v4565 = vmax.f32 %v4498, 0.0
  %v4566 = vmax.f32 %v4501, 0.0
  %v4567 = vmax.f32 %v4503, 0.0
  %v4568 = vmax.f32 %v4506, 0.0
  %v4569 = vmax.f32 %v4508, 0.0
  %v4570 = vmax.f32 %v4511, 0.0
  %v4571 = vmax.f32 %v4513, 0.0
  %v4572 = vmax.f32 %v4516, 0.0
  %v4573 = vmax.f32 %v4518, 0.0
  %v4574 = vmax.f32 %v4521, 0.0
  %v4575 = vmax.f32 %v4523, 0.0
  %v4576 = vmax.f32 %v4526, 0.0
  %v4577 = vmax.f32 %v4528, 0.0
  %v4578 = vmax.f32 %v4531, 0.0
  %v4579 = vmax.f32 %v4533, 0.0
  %v4580 = vmax.f32 %v4536, 0.0
  %v4581 = vmax.f32 %v4538, 0.0
  %v4582 = vmax.f32 %v4541, 0.0
  %v4583 = vmax.f32 %v4543, 0.0
  %v4584 = vmax.f32 %v4546, 0.0
  %v4585 = vmax.f32 %v4548, 0.0
  %v4586 = vpack.c.bf16 %v4551, %v4550
  %v4587 = vpack.c.bf16 %v4553, %v4552
  %v4588 = vpack.c.bf16 %v4555, %v4554
  %v4589 = vpack.c.bf16 %v4557, %v4556
  %v4590 = vpack.c.bf16 %v4559, %v4558
  %v4591 = vpack.c.bf16 %v4561, %v4560
  %v4592 = vpack.c.bf16 %v4563, %v4562
  %v4593 = vpack.c.bf16 %v4565, %v4564
  %v4594 = vpack.c.bf16 %v4567, %v4566
  %v4595 = vpack.c.bf16 %v4569, %v4568
  %v4596 = vpack.c.bf16 %v4571, %v4570
  %v4597 = vpack.c.bf16 %v4573, %v4572
  %v4598 = vpack.c.bf16 %v4575, %v4574
  %v4599 = vpack.c.bf16 %v4577, %v4576
  %v4600 = vpack.c.bf16 %v4579, %v4578
  %v4601 = vpack.c.bf16 %v4581, %v4580
  %v4602 = vpack.c.bf16 %v4583, %v4582
  %v4603 = vpack.c.bf16 %v4585, %v4584
  %v4604 = vld [vmem:[%s2 + $0x80] sm:$0xf]
  %v4605 = vld [vmem:[%s2 + $0x84] sm:$0xf]
  %v4606 = vld [vmem:[%s2 + $0x88] sm:$0xf]
  %v4607 = vld [vmem:[%s2 + $0x8c] sm:$0xf]
  %v4612 = vunpack.c.l.b16 %v4604
  %v4613 = vunpack.c.l.b16 %v4605
  %v4614 = vunpack.c.l.b16 %v4606
  %v4615 = vunpack.c.l.b16 %v4607
  %v4616 = vpack.c.b16 %v4613, %v4612
  %v4617 = vpack.c.b16 %v4615, %v4614
  %v4621 = vsel %vm724, %v4586, 0
  %v4624 = vsel %vm724, %v4587, 0
  %v4627 = vsel %vm724, %v4588, 0
  %v4630 = vsel %vm724, %v4589, 0
  %v4633 = vsel %vm724, %v4590, 0
  %v4636 = vsel %vm724, %v4591, 0
  %v4639 = vsel %vm724, %v4592, 0
  %v4642 = vsel %vm724, %v4593, 0
  %v4645 = vsel %vm724, %v4594, 0
  %v4648 = vsel %vm724, %v4595, 0
  %v4651 = vsel %vm724, %v4596, 0
  %v4654 = vsel %vm724, %v4597, 0
  %v4657 = vsel %vm724, %v4598, 0
  %v4660 = vsel %vm724, %v4599, 0
  %v4663 = vsel %vm724, %v4600, 0
  %v4666 = vsel %vm724, %v4601, 0
  %v4669 = vsel %vm724, %v4602, 0
  %v4672 = vsel %vm724, %v4603, 0
  %4674 = vmatpush.bf16.msra.mxu0 0
  %4675 = vmatpush.bf16.msra.mxu0 0
  %4676 = vmatpush.bf16.msra.mxu0 0
  %4677 = vmatpush.bf16.msra.mxu0 0
  %4678 = vmatpush.bf16.msra.mxu0 0
  %4679 = vmatpush.bf16.msra.mxu0 0
  %4680 = vmatpush.bf16.msra.mxu0 %v4617
  %4681 = vmatpush.bf16.msra.mxu0 %v4616
  %4682 = vmatmul.bf16.gmra.mxu0 %v4621
  %v4683 = vpop.f32.mrf.mxu0
  %v4684 = vadd.f32 0.0, %v4683
  %v4685 = vpop.f32.mrf.mxu0
  %v4686 = vadd.f32 0.0, %v4685
  %4687 = vmatmul.bf16.gmra.mxu0 %v4624
  %v4688 = vpop.f32.mrf.mxu0
  %v4689 = vadd.f32 0.0, %v4688
  %v4690 = vpop.f32.mrf.mxu0
  %v4691 = vadd.f32 0.0, %v4690
  %4692 = vmatmul.bf16.gmra.mxu0 %v4627
  %v4693 = vpop.f32.mrf.mxu0
  %v4694 = vadd.f32 0.0, %v4693
  %v4695 = vpop.f32.mrf.mxu0
  %v4696 = vadd.f32 0.0, %v4695
  %4697 = vmatmul.bf16.gmra.mxu0 %v4630
  %v4698 = vpop.f32.mrf.mxu0
  %v4699 = vadd.f32 0.0, %v4698
  %v4700 = vpop.f32.mrf.mxu0
  %v4701 = vadd.f32 0.0, %v4700
  %4702 = vmatmul.bf16.gmra.mxu0 %v4633
  %v4703 = vpop.f32.mrf.mxu0
  %v4704 = vadd.f32 0.0, %v4703
  %v4705 = vpop.f32.mrf.mxu0
  %v4706 = vadd.f32 0.0, %v4705
  %4707 = vmatmul.bf16.gmra.mxu0 %v4636
  %v4708 = vpop.f32.mrf.mxu0
  %v4709 = vadd.f32 0.0, %v4708
  %v4710 = vpop.f32.mrf.mxu0
  %v4711 = vadd.f32 0.0, %v4710
  %4712 = vmatmul.bf16.gmra.mxu0 %v4639
  %v4713 = vpop.f32.mrf.mxu0
  %v4714 = vadd.f32 0.0, %v4713
  %v4715 = vpop.f32.mrf.mxu0
  %v4716 = vadd.f32 0.0, %v4715
  %4717 = vmatmul.bf16.gmra.mxu0 %v4642
  %v4718 = vpop.f32.mrf.mxu0
  %v4719 = vadd.f32 0.0, %v4718
  %v4720 = vpop.f32.mrf.mxu0
  %v4721 = vadd.f32 0.0, %v4720
  %4722 = vmatmul.bf16.gmra.mxu0 %v4645
  %v4723 = vpop.f32.mrf.mxu0
  %v4724 = vadd.f32 0.0, %v4723
  %v4725 = vpop.f32.mrf.mxu0
  %v4726 = vadd.f32 0.0, %v4725
  %4727 = vmatmul.bf16.gmra.mxu0 %v4648
  %v4728 = vpop.f32.mrf.mxu0
  %v4729 = vadd.f32 0.0, %v4728
  %v4730 = vpop.f32.mrf.mxu0
  %v4731 = vadd.f32 0.0, %v4730
  %4732 = vmatmul.bf16.gmra.mxu0 %v4651
  %v4733 = vpop.f32.mrf.mxu0
  %v4734 = vadd.f32 0.0, %v4733
  %v4735 = vpop.f32.mrf.mxu0
  %v4736 = vadd.f32 0.0, %v4735
  %4737 = vmatmul.bf16.gmra.mxu0 %v4654
  %v4738 = vpop.f32.mrf.mxu0
  %v4739 = vadd.f32 0.0, %v4738
  %v4740 = vpop.f32.mrf.mxu0
  %v4741 = vadd.f32 0.0, %v4740
  %4742 = vmatmul.bf16.gmra.mxu0 %v4657
  %v4743 = vpop.f32.mrf.mxu0
  %v4744 = vadd.f32 0.0, %v4743
  %v4745 = vpop.f32.mrf.mxu0
  %v4746 = vadd.f32 0.0, %v4745
  %4747 = vmatmul.bf16.gmra.mxu0 %v4660
  %v4748 = vpop.f32.mrf.mxu0
  %v4749 = vadd.f32 0.0, %v4748
  %v4750 = vpop.f32.mrf.mxu0
  %v4751 = vadd.f32 0.0, %v4750
  %4752 = vmatmul.bf16.gmra.mxu0 %v4663
  %v4753 = vpop.f32.mrf.mxu0
  %v4754 = vadd.f32 0.0, %v4753
  %v4755 = vpop.f32.mrf.mxu0
  %v4756 = vadd.f32 0.0, %v4755
  %4757 = vmatmul.bf16.gmra.mxu0 %v4666
  %v4758 = vpop.f32.mrf.mxu0
  %v4759 = vadd.f32 0.0, %v4758
  %v4760 = vpop.f32.mrf.mxu0
  %v4761 = vadd.f32 0.0, %v4760
  %4762 = vmatmul.bf16.gmra.mxu0 %v4669
  %v4763 = vpop.f32.mrf.mxu0
  %v4764 = vadd.f32 0.0, %v4763
  %v4765 = vpop.f32.mrf.mxu0
  %v4766 = vadd.f32 0.0, %v4765
  %4767 = vmatmul.bf16.gmra.mxu0 %v4672
  %v4768 = vpop.f32.mrf.mxu0
  %v4769 = vadd.f32 0.0, %v4768
  %v4770 = vpop.f32.mrf.mxu0
  %v4771 = vadd.f32 0.0, %v4770
  %4772 = vdwg.mxu0
  %v4773 = vadd.f32 %v4235, %v4684
  %v4774 = vadd.f32 %v4236, %v4686
  %v4775 = vadd.f32 %v4237, %v4689
  %v4776 = vadd.f32 %v4238, %v4691
  %v4777 = vadd.f32 %v4239, %v4694
  %v4778 = vadd.f32 %v4240, %v4696
  %v4779 = vadd.f32 %v4241, %v4699
  %v4780 = vadd.f32 %v4242, %v4701
  %v4781 = vadd.f32 %v4243, %v4704
  %v4782 = vadd.f32 %v4244, %v4706
  %v4783 = vadd.f32 %v4245, %v4709
  %v4784 = vadd.f32 %v4246, %v4711
  %v4785 = vadd.f32 %v4247, %v4714
  %v4786 = vadd.f32 %v4248, %v4716
  %v4787 = vadd.f32 %v4249, %v4719
  %v4788 = vadd.f32 %v4250, %v4721
  %v4789 = vadd.f32 %v4251, %v4724
  %v4790 = vadd.f32 %v4252, %v4726
  %v4791 = vadd.f32 %v4253, %v4729
  %v4792 = vadd.f32 %v4254, %v4731
  %v4793 = vadd.f32 %v4255, %v4734
  %v4794 = vadd.f32 %v4256, %v4736
  %v4795 = vadd.f32 %v4257, %v4739
  %v4796 = vadd.f32 %v4258, %v4741
  %v4797 = vadd.f32 %v4259, %v4744
  %v4798 = vadd.f32 %v4260, %v4746
  %v4799 = vadd.f32 %v4261, %v4749
  %v4800 = vadd.f32 %v4262, %v4751
  %v4801 = vadd.f32 %v4263, %v4754
  %v4802 = vadd.f32 %v4264, %v4756
  %v4803 = vadd.f32 %v4265, %v4759
  %v4804 = vadd.f32 %v4266, %v4761
  %v4805 = vadd.f32 %v4267, %v4764
  %v4806 = vadd.f32 %v4268, %v4766
  %v4807 = vadd.f32 %v4269, %v4769
  %v4808 = vadd.f32 %v4270, %v4771
  %v4809 = vperm.slane %v27, 1
  %v4810 = vadd.f32 %v4773, %v4809
  %v4811 = vadd.f32 %v4774, %v4809
  %v4812 = vadd.f32 %v4775, %v4809
  %v4813 = vadd.f32 %v4776, %v4809
  %v4814 = vadd.f32 %v4777, %v4809
  %v4815 = vadd.f32 %v4778, %v4809
  %v4816 = vadd.f32 %v4779, %v4809
  %v4817 = vadd.f32 %v4780, %v4809
  %v4818 = vadd.f32 %v4781, %v4809
  %v4819 = vadd.f32 %v4782, %v4809
  %v4820 = vadd.f32 %v4783, %v4809
  %v4821 = vadd.f32 %v4784, %v4809
  %v4822 = vadd.f32 %v4785, %v4809
  %v4823 = vadd.f32 %v4786, %v4809
  %v4824 = vadd.f32 %v4787, %v4809
  %v4825 = vadd.f32 %v4788, %v4809
  %v4826 = vadd.f32 %v4789, %v4809
  %v4827 = vadd.f32 %v4790, %v4809
  %v4828 = vadd.f32 %v4791, %v4809
  %v4829 = vadd.f32 %v4792, %v4809
  %v4830 = vadd.f32 %v4793, %v4809
  %v4831 = vadd.f32 %v4794, %v4809
  %v4832 = vadd.f32 %v4795, %v4809
  %v4833 = vadd.f32 %v4796, %v4809
  %v4834 = vadd.f32 %v4797, %v4809
  %v4835 = vadd.f32 %v4798, %v4809
  %v4836 = vadd.f32 %v4799, %v4809
  %v4837 = vadd.f32 %v4800, %v4809
  %v4838 = vadd.f32 %v4801, %v4809
  %v4839 = vadd.f32 %v4802, %v4809
  %v4840 = vadd.f32 %v4803, %v4809
  %v4841 = vadd.f32 %v4804, %v4809
  %v4842 = vadd.f32 %v4805, %v4809
  %v4843 = vadd.f32 %v4806, %v4809
  %v4844 = vadd.f32 %v4807, %v4809
  %v4845 = vadd.f32 %v4808, %v4809
  %v4846 = vmax.f32 %v4810, 0.0
  %v4847 = vmax.f32 %v4811, 0.0
  %v4848 = vmax.f32 %v4812, 0.0
  %v4849 = vmax.f32 %v4813, 0.0
  %v4850 = vmax.f32 %v4814, 0.0
  %v4851 = vmax.f32 %v4815, 0.0
  %v4852 = vmax.f32 %v4816, 0.0
  %v4853 = vmax.f32 %v4817, 0.0
  %v4854 = vmax.f32 %v4818, 0.0
  %v4855 = vmax.f32 %v4819, 0.0
  %v4856 = vmax.f32 %v4820, 0.0
  %v4857 = vmax.f32 %v4821, 0.0
  %v4858 = vmax.f32 %v4822, 0.0
  %v4859 = vmax.f32 %v4823, 0.0
  %v4860 = vmax.f32 %v4824, 0.0
  %v4861 = vmax.f32 %v4825, 0.0
  %v4862 = vmax.f32 %v4826, 0.0
  %v4863 = vmax.f32 %v4827, 0.0
  %v4864 = vmax.f32 %v4828, 0.0
  %v4865 = vmax.f32 %v4829, 0.0
  %v4866 = vmax.f32 %v4830, 0.0
  %v4867 = vmax.f32 %v4831, 0.0
  %v4868 = vmax.f32 %v4832, 0.0
  %v4869 = vmax.f32 %v4833, 0.0
  %v4870 = vmax.f32 %v4834, 0.0
  %v4871 = vmax.f32 %v4835, 0.0
  %v4872 = vmax.f32 %v4836, 0.0
  %v4873 = vmax.f32 %v4837, 0.0
  %v4874 = vmax.f32 %v4838, 0.0
  %v4875 = vmax.f32 %v4839, 0.0
  %v4876 = vmax.f32 %v4840, 0.0
  %v4877 = vmax.f32 %v4841, 0.0
  %v4878 = vmax.f32 %v4842, 0.0
  %v4879 = vmax.f32 %v4843, 0.0
  %v4880 = vmax.f32 %v4844, 0.0
  %v4881 = vmax.f32 %v4845, 0.0
  %v4882 = vpack.c.bf16 %v4846, %v4846
  %v4883 = vld [vmem:[%s3] sm:$0xff]
  %v4884 = vld [vmem:[%s3 + $0x8] sm:$0xff]
  %v4885 = vpack.c.bf16 %v4847, %v4847
  %v4886 = vld [vmem:[%s3 + $0x10] sm:$0xff]
  %v4887 = vld [vmem:[%s3 + $0x18] sm:$0xff]
  %v4890 = vunpack.c.l.b16 %v4886
  %v4891 = vunpack.c.h.b16 %v4886
  %v4892 = vunpack.c.l.b16 %v4887
  %v4893 = vunpack.c.h.b16 %v4887
  %v4894 = vpack.c.b16 %v4892, %v4890
  %v4895 = vpack.c.b16 %v4893, %v4891
  %v4899 = vsel %vm163, %v4885, 0
  %4901 = vmatpush.bf16.msra.mxu0 0
  %4902 = vmatpush.bf16.msra.mxu0 0
  %4903 = vmatpush.bf16.msra.mxu0 0
  %4904 = vmatpush.bf16.msra.mxu0 0
  %4905 = vmatpush.bf16.msra.mxu0 0
  %4906 = vmatpush.bf16.msra.mxu0 0
  %4907 = vmatpush.bf16.msra.mxu0 0
  %4908 = vmatpush.bf16.msra.mxu0 %v4894
  %4909 = vmatmul.bf16.gmra.mxu0 %v4899
  %v4910 = vpop.f32.mrf.mxu0
  %v4911 = vadd.f32 0.0, %v4910
  %v4912 = vpop.f32.mrf.mxu0
  %4913 = vdwg.mxu0
  %4914 = vmatpush.bf16.msra.mxu0 0
  %4915 = vmatpush.bf16.msra.mxu0 0
  %4916 = vmatpush.bf16.msra.mxu0 0
  %4917 = vmatpush.bf16.msra.mxu0 0
  %4918 = vmatpush.bf16.msra.mxu0 0
  %4919 = vmatpush.bf16.msra.mxu0 0
  %4920 = vmatpush.bf16.msra.mxu0 0
  %4921 = vmatpush.bf16.msra.mxu0 %v4895
  %4922 = vmatmul.bf16.gmra.mxu0 %v4899
  %v4923 = vpop.f32.mrf.mxu0
  %v4924 = vadd.f32 0.0, %v4923
  %v4925 = vpop.f32.mrf.mxu0
  %4926 = vdwg.mxu0
  %v4929 = vunpack.c.l.b16 %v4883
  %v4930 = vunpack.c.h.b16 %v4883
  %v4931 = vunpack.c.l.b16 %v4884
  %v4932 = vunpack.c.h.b16 %v4884
  %v4933 = vpack.c.b16 %v4931, %v4929
  %v4934 = vpack.c.b16 %v4932, %v4930
  %v4938 = vsel %vm163, %v4882, 0
  %4940 = vmatpush.bf16.msra.mxu0 0
  %4941 = vmatpush.bf16.msra.mxu0 0
  %4942 = vmatpush.bf16.msra.mxu0 0
  %4943 = vmatpush.bf16.msra.mxu0 0
  %4944 = vmatpush.bf16.msra.mxu0 0
  %4945 = vmatpush.bf16.msra.mxu0 0
  %4946 = vmatpush.bf16.msra.mxu0 0
  %4947 = vmatpush.bf16.msra.mxu0 %v4933
  %4948 = vmatmul.bf16.gmra.mxu0 %v4938
  %v4949 = vpop.f32.mrf.mxu0
  %v4950 = vadd.f32 %v4911, %v4949
  %v4951 = vpop.f32.mrf.mxu0
  %4952 = vdwg.mxu0
  %4953 = vmatpush.bf16.msra.mxu0 0
  %4954 = vmatpush.bf16.msra.mxu0 0
  %4955 = vmatpush.bf16.msra.mxu0 0
  %4956 = vmatpush.bf16.msra.mxu0 0
  %4957 = vmatpush.bf16.msra.mxu0 0
  %4958 = vmatpush.bf16.msra.mxu0 0
  %4959 = vmatpush.bf16.msra.mxu0 0
  %4960 = vmatpush.bf16.msra.mxu0 %v4934
  %4961 = vmatmul.bf16.gmra.mxu0 %v4938
  %v4962 = vpop.f32.mrf.mxu0
  %v4963 = vadd.f32 %v4924, %v4962
  %v4964 = vpop.f32.mrf.mxu0
  %4965 = vdwg.mxu0
  %v4966 = vpack.c.bf16 %v4848, %v4848
  %v4967 = vld [vmem:[%s3 + $0x20] sm:$0xff]
  %v4968 = vld [vmem:[%s3 + $0x28] sm:$0xff]
  %v4971 = vunpack.c.l.b16 %v4967
  %v4972 = vunpack.c.h.b16 %v4967
  %v4973 = vunpack.c.l.b16 %v4968
  %v4974 = vunpack.c.h.b16 %v4968
  %v4975 = vpack.c.b16 %v4973, %v4971
  %v4976 = vpack.c.b16 %v4974, %v4972
  %v4980 = vsel %vm163, %v4966, 0
  %4982 = vmatpush.bf16.msra.mxu0 0
  %4983 = vmatpush.bf16.msra.mxu0 0
  %4984 = vmatpush.bf16.msra.mxu0 0
  %4985 = vmatpush.bf16.msra.mxu0 0
  %4986 = vmatpush.bf16.msra.mxu0 0
  %4987 = vmatpush.bf16.msra.mxu0 0
  %4988 = vmatpush.bf16.msra.mxu0 0
  %4989 = vmatpush.bf16.msra.mxu0 %v4975
  %4990 = vmatmul.bf16.gmra.mxu0 %v4980
  %v4991 = vpop.f32.mrf.mxu0
  %v4992 = vadd.f32 0.0, %v4991
  %v4993 = vpop.f32.mrf.mxu0
  %4994 = vdwg.mxu0
  %4995 = vmatpush.bf16.msra.mxu0 0
  %4996 = vmatpush.bf16.msra.mxu0 0
  %4997 = vmatpush.bf16.msra.mxu0 0
  %4998 = vmatpush.bf16.msra.mxu0 0
  %4999 = vmatpush.bf16.msra.mxu0 0
  %5000 = vmatpush.bf16.msra.mxu0 0
  %5001 = vmatpush.bf16.msra.mxu0 0
  %5002 = vmatpush.bf16.msra.mxu0 %v4976
  %5003 = vmatmul.bf16.gmra.mxu0 %v4980
  %v5004 = vpop.f32.mrf.mxu0
  %v5005 = vadd.f32 0.0, %v5004
  %v5006 = vpop.f32.mrf.mxu0
  %5007 = vdwg.mxu0
  %v5008 = vadd.f32 %v4950, %v4992
  %v5009 = vadd.f32 %v4963, %v5005
  %v5010 = vpack.c.bf16 %v4849, %v4849
  %v5011 = vld [vmem:[%s3 + $0x30] sm:$0xff]
  %v5012 = vld [vmem:[%s3 + $0x38] sm:$0xff]
  %v5015 = vunpack.c.l.b16 %v5011
  %v5016 = vunpack.c.h.b16 %v5011
  %v5017 = vunpack.c.l.b16 %v5012
  %v5018 = vunpack.c.h.b16 %v5012
  %v5019 = vpack.c.b16 %v5017, %v5015
  %v5020 = vpack.c.b16 %v5018, %v5016
  %v5024 = vsel %vm163, %v5010, 0
  %5026 = vmatpush.bf16.msra.mxu0 0
  %5027 = vmatpush.bf16.msra.mxu0 0
  %5028 = vmatpush.bf16.msra.mxu0 0
  %5029 = vmatpush.bf16.msra.mxu0 0
  %5030 = vmatpush.bf16.msra.mxu0 0
  %5031 = vmatpush.bf16.msra.mxu0 0
  %5032 = vmatpush.bf16.msra.mxu0 0
  %5033 = vmatpush.bf16.msra.mxu0 %v5019
  %5034 = vmatmul.bf16.gmra.mxu0 %v5024
  %v5035 = vpop.f32.mrf.mxu0
  %v5036 = vadd.f32 0.0, %v5035
  %v5037 = vpop.f32.mrf.mxu0
  %5038 = vdwg.mxu0
  %5039 = vmatpush.bf16.msra.mxu0 0
  %5040 = vmatpush.bf16.msra.mxu0 0
  %5041 = vmatpush.bf16.msra.mxu0 0
  %5042 = vmatpush.bf16.msra.mxu0 0
  %5043 = vmatpush.bf16.msra.mxu0 0
  %5044 = vmatpush.bf16.msra.mxu0 0
  %5045 = vmatpush.bf16.msra.mxu0 0
  %5046 = vmatpush.bf16.msra.mxu0 %v5020
  %5047 = vmatmul.bf16.gmra.mxu0 %v5024
  %v5048 = vpop.f32.mrf.mxu0
  %v5049 = vadd.f32 0.0, %v5048
  %v5050 = vpop.f32.mrf.mxu0
  %5051 = vdwg.mxu0
  %v5052 = vadd.f32 %v5008, %v5036
  %v5053 = vadd.f32 %v5009, %v5049
  %v5054 = vpack.c.bf16 %v4850, %v4850
  %v5055 = vld [vmem:[%s3 + $0x40] sm:$0xff]
  %v5056 = vld [vmem:[%s3 + $0x48] sm:$0xff]
  %v5059 = vunpack.c.l.b16 %v5055
  %v5060 = vunpack.c.h.b16 %v5055
  %v5061 = vunpack.c.l.b16 %v5056
  %v5062 = vunpack.c.h.b16 %v5056
  %v5063 = vpack.c.b16 %v5061, %v5059
  %v5064 = vpack.c.b16 %v5062, %v5060
  %v5068 = vsel %vm163, %v5054, 0
  %5070 = vmatpush.bf16.msra.mxu0 0
  %5071 = vmatpush.bf16.msra.mxu0 0
  %5072 = vmatpush.bf16.msra.mxu0 0
  %5073 = vmatpush.bf16.msra.mxu0 0
  %5074 = vmatpush.bf16.msra.mxu0 0
  %5075 = vmatpush.bf16.msra.mxu0 0
  %5076 = vmatpush.bf16.msra.mxu0 0
  %5077 = vmatpush.bf16.msra.mxu0 %v5063
  %5078 = vmatmul.bf16.gmra.mxu0 %v5068
  %v5079 = vpop.f32.mrf.mxu0
  %v5080 = vadd.f32 0.0, %v5079
  %v5081 = vpop.f32.mrf.mxu0
  %5082 = vdwg.mxu0
  %5083 = vmatpush.bf16.msra.mxu0 0
  %5084 = vmatpush.bf16.msra.mxu0 0
  %5085 = vmatpush.bf16.msra.mxu0 0
  %5086 = vmatpush.bf16.msra.mxu0 0
  %5087 = vmatpush.bf16.msra.mxu0 0
  %5088 = vmatpush.bf16.msra.mxu0 0
  %5089 = vmatpush.bf16.msra.mxu0 0
  %5090 = vmatpush.bf16.msra.mxu0 %v5064
  %5091 = vmatmul.bf16.gmra.mxu0 %v5068
  %v5092 = vpop.f32.mrf.mxu0
  %v5093 = vadd.f32 0.0, %v5092
  %v5094 = vpop.f32.mrf.mxu0
  %5095 = vdwg.mxu0
  %v5096 = vadd.f32 %v5052, %v5080
  %v5097 = vadd.f32 %v5053, %v5093
  %v5098 = vpack.c.bf16 %v4851, %v4851
  %v5099 = vld [vmem:[%s3 + $0x50] sm:$0xff]
  %v5100 = vld [vmem:[%s3 + $0x58] sm:$0xff]
  %v5103 = vunpack.c.l.b16 %v5099
  %v5104 = vunpack.c.h.b16 %v5099
  %v5105 = vunpack.c.l.b16 %v5100
  %v5106 = vunpack.c.h.b16 %v5100
  %v5107 = vpack.c.b16 %v5105, %v5103
  %v5108 = vpack.c.b16 %v5106, %v5104
  %v5112 = vsel %vm163, %v5098, 0
  %5114 = vmatpush.bf16.msra.mxu0 0
  %5115 = vmatpush.bf16.msra.mxu0 0
  %5116 = vmatpush.bf16.msra.mxu0 0
  %5117 = vmatpush.bf16.msra.mxu0 0
  %5118 = vmatpush.bf16.msra.mxu0 0
  %5119 = vmatpush.bf16.msra.mxu0 0
  %5120 = vmatpush.bf16.msra.mxu0 0
  %5121 = vmatpush.bf16.msra.mxu0 %v5107
  %5122 = vmatmul.bf16.gmra.mxu0 %v5112
  %v5123 = vpop.f32.mrf.mxu0
  %v5124 = vadd.f32 0.0, %v5123
  %v5125 = vpop.f32.mrf.mxu0
  %5126 = vdwg.mxu0
  %5127 = vmatpush.bf16.msra.mxu0 0
  %5128 = vmatpush.bf16.msra.mxu0 0
  %5129 = vmatpush.bf16.msra.mxu0 0
  %5130 = vmatpush.bf16.msra.mxu0 0
  %5131 = vmatpush.bf16.msra.mxu0 0
  %5132 = vmatpush.bf16.msra.mxu0 0
  %5133 = vmatpush.bf16.msra.mxu0 0
  %5134 = vmatpush.bf16.msra.mxu0 %v5108
  %5135 = vmatmul.bf16.gmra.mxu0 %v5112
  %v5136 = vpop.f32.mrf.mxu0
  %v5137 = vadd.f32 0.0, %v5136
  %v5138 = vpop.f32.mrf.mxu0
  %5139 = vdwg.mxu0
  %v5140 = vadd.f32 %v5096, %v5124
  %v5141 = vadd.f32 %v5097, %v5137
  %v5142 = vpack.c.bf16 %v4852, %v4852
  %v5143 = vld [vmem:[%s3 + $0x60] sm:$0xff]
  %v5144 = vld [vmem:[%s3 + $0x68] sm:$0xff]
  %v5147 = vunpack.c.l.b16 %v5143
  %v5148 = vunpack.c.h.b16 %v5143
  %v5149 = vunpack.c.l.b16 %v5144
  %v5150 = vunpack.c.h.b16 %v5144
  %v5151 = vpack.c.b16 %v5149, %v5147
  %v5152 = vpack.c.b16 %v5150, %v5148
  %v5156 = vsel %vm163, %v5142, 0
  %5158 = vmatpush.bf16.msra.mxu0 0
  %5159 = vmatpush.bf16.msra.mxu0 0
  %5160 = vmatpush.bf16.msra.mxu0 0
  %5161 = vmatpush.bf16.msra.mxu0 0
  %5162 = vmatpush.bf16.msra.mxu0 0
  %5163 = vmatpush.bf16.msra.mxu0 0
  %5164 = vmatpush.bf16.msra.mxu0 0
  %5165 = vmatpush.bf16.msra.mxu0 %v5151
  %5166 = vmatmul.bf16.gmra.mxu0 %v5156
  %v5167 = vpop.f32.mrf.mxu0
  %v5168 = vadd.f32 0.0, %v5167
  %v5169 = vpop.f32.mrf.mxu0
  %5170 = vdwg.mxu0
  %5171 = vmatpush.bf16.msra.mxu0 0
  %5172 = vmatpush.bf16.msra.mxu0 0
  %5173 = vmatpush.bf16.msra.mxu0 0
  %5174 = vmatpush.bf16.msra.mxu0 0
  %5175 = vmatpush.bf16.msra.mxu0 0
  %5176 = vmatpush.bf16.msra.mxu0 0
  %5177 = vmatpush.bf16.msra.mxu0 0
  %5178 = vmatpush.bf16.msra.mxu0 %v5152
  %5179 = vmatmul.bf16.gmra.mxu0 %v5156
  %v5180 = vpop.f32.mrf.mxu0
  %v5181 = vadd.f32 0.0, %v5180
  %v5182 = vpop.f32.mrf.mxu0
  %5183 = vdwg.mxu0
  %v5184 = vadd.f32 %v5140, %v5168
  %v5185 = vadd.f32 %v5141, %v5181
  %v5186 = vpack.c.bf16 %v4853, %v4853
  %v5187 = vld [vmem:[%s3 + $0x70] sm:$0xff]
  %v5188 = vld [vmem:[%s3 + $0x78] sm:$0xff]
  %v5191 = vunpack.c.l.b16 %v5187
  %v5192 = vunpack.c.h.b16 %v5187
  %v5193 = vunpack.c.l.b16 %v5188
  %v5194 = vunpack.c.h.b16 %v5188
  %v5195 = vpack.c.b16 %v5193, %v5191
  %v5196 = vpack.c.b16 %v5194, %v5192
  %v5200 = vsel %vm163, %v5186, 0
  %5202 = vmatpush.bf16.msra.mxu0 0
  %5203 = vmatpush.bf16.msra.mxu0 0
  %5204 = vmatpush.bf16.msra.mxu0 0
  %5205 = vmatpush.bf16.msra.mxu0 0
  %5206 = vmatpush.bf16.msra.mxu0 0
  %5207 = vmatpush.bf16.msra.mxu0 0
  %5208 = vmatpush.bf16.msra.mxu0 0
  %5209 = vmatpush.bf16.msra.mxu0 %v5195
  %5210 = vmatmul.bf16.gmra.mxu0 %v5200
  %v5211 = vpop.f32.mrf.mxu0
  %v5212 = vadd.f32 0.0, %v5211
  %v5213 = vpop.f32.mrf.mxu0
  %5214 = vdwg.mxu0
  %5215 = vmatpush.bf16.msra.mxu0 0
  %5216 = vmatpush.bf16.msra.mxu0 0
  %5217 = vmatpush.bf16.msra.mxu0 0
  %5218 = vmatpush.bf16.msra.mxu0 0
  %5219 = vmatpush.bf16.msra.mxu0 0
  %5220 = vmatpush.bf16.msra.mxu0 0
  %5221 = vmatpush.bf16.msra.mxu0 0
  %5222 = vmatpush.bf16.msra.mxu0 %v5196
  %5223 = vmatmul.bf16.gmra.mxu0 %v5200
  %v5224 = vpop.f32.mrf.mxu0
  %v5225 = vadd.f32 0.0, %v5224
  %v5226 = vpop.f32.mrf.mxu0
  %5227 = vdwg.mxu0
  %v5228 = vadd.f32 %v5184, %v5212
  %v5229 = vadd.f32 %v5185, %v5225
  %v5230 = vpack.c.bf16 %v4854, %v4854
  %v5231 = vld [vmem:[%s3 + $0x80] sm:$0xff]
  %v5232 = vld [vmem:[%s3 + $0x88] sm:$0xff]
  %v5235 = vunpack.c.l.b16 %v5231
  %v5236 = vunpack.c.h.b16 %v5231
  %v5237 = vunpack.c.l.b16 %v5232
  %v5238 = vunpack.c.h.b16 %v5232
  %v5239 = vpack.c.b16 %v5237, %v5235
  %v5240 = vpack.c.b16 %v5238, %v5236
  %v5244 = vsel %vm163, %v5230, 0
  %5246 = vmatpush.bf16.msra.mxu0 0
  %5247 = vmatpush.bf16.msra.mxu0 0
  %5248 = vmatpush.bf16.msra.mxu0 0
  %5249 = vmatpush.bf16.msra.mxu0 0
  %5250 = vmatpush.bf16.msra.mxu0 0
  %5251 = vmatpush.bf16.msra.mxu0 0
  %5252 = vmatpush.bf16.msra.mxu0 0
  %5253 = vmatpush.bf16.msra.mxu0 %v5239
  %5254 = vmatmul.bf16.gmra.mxu0 %v5244
  %v5255 = vpop.f32.mrf.mxu0
  %v5256 = vadd.f32 0.0, %v5255
  %v5257 = vpop.f32.mrf.mxu0
  %5258 = vdwg.mxu0
  %5259 = vmatpush.bf16.msra.mxu0 0
  %5260 = vmatpush.bf16.msra.mxu0 0
  %5261 = vmatpush.bf16.msra.mxu0 0
  %5262 = vmatpush.bf16.msra.mxu0 0
  %5263 = vmatpush.bf16.msra.mxu0 0
  %5264 = vmatpush.bf16.msra.mxu0 0
  %5265 = vmatpush.bf16.msra.mxu0 0
  %5266 = vmatpush.bf16.msra.mxu0 %v5240
  %5267 = vmatmul.bf16.gmra.mxu0 %v5244
  %v5268 = vpop.f32.mrf.mxu0
  %v5269 = vadd.f32 0.0, %v5268
  %v5270 = vpop.f32.mrf.mxu0
  %5271 = vdwg.mxu0
  %v5272 = vadd.f32 %v5228, %v5256
  %v5273 = vadd.f32 %v5229, %v5269
  %v5274 = vpack.c.bf16 %v4855, %v4855
  %v5275 = vld [vmem:[%s3 + $0x90] sm:$0xff]
  %v5276 = vld [vmem:[%s3 + $0x98] sm:$0xff]
  %v5279 = vunpack.c.l.b16 %v5275
  %v5280 = vunpack.c.h.b16 %v5275
  %v5281 = vunpack.c.l.b16 %v5276
  %v5282 = vunpack.c.h.b16 %v5276
  %v5283 = vpack.c.b16 %v5281, %v5279
  %v5284 = vpack.c.b16 %v5282, %v5280
  %v5288 = vsel %vm163, %v5274, 0
  %5290 = vmatpush.bf16.msra.mxu0 0
  %5291 = vmatpush.bf16.msra.mxu0 0
  %5292 = vmatpush.bf16.msra.mxu0 0
  %5293 = vmatpush.bf16.msra.mxu0 0
  %5294 = vmatpush.bf16.msra.mxu0 0
  %5295 = vmatpush.bf16.msra.mxu0 0
  %5296 = vmatpush.bf16.msra.mxu0 0
  %5297 = vmatpush.bf16.msra.mxu0 %v5283
  %5298 = vmatmul.bf16.gmra.mxu0 %v5288
  %v5299 = vpop.f32.mrf.mxu0
  %v5300 = vadd.f32 0.0, %v5299
  %v5301 = vpop.f32.mrf.mxu0
  %5302 = vdwg.mxu0
  %5303 = vmatpush.bf16.msra.mxu0 0
  %5304 = vmatpush.bf16.msra.mxu0 0
  %5305 = vmatpush.bf16.msra.mxu0 0
  %5306 = vmatpush.bf16.msra.mxu0 0
  %5307 = vmatpush.bf16.msra.mxu0 0
  %5308 = vmatpush.bf16.msra.mxu0 0
  %5309 = vmatpush.bf16.msra.mxu0 0
  %5310 = vmatpush.bf16.msra.mxu0 %v5284
  %5311 = vmatmul.bf16.gmra.mxu0 %v5288
  %v5312 = vpop.f32.mrf.mxu0
  %v5313 = vadd.f32 0.0, %v5312
  %v5314 = vpop.f32.mrf.mxu0
  %5315 = vdwg.mxu0
  %v5316 = vadd.f32 %v5272, %v5300
  %v5317 = vadd.f32 %v5273, %v5313
  %v5318 = vpack.c.bf16 %v4856, %v4856
  %v5319 = vld [vmem:[%s3 + $0xa0] sm:$0xff]
  %v5320 = vld [vmem:[%s3 + $0xa8] sm:$0xff]
  %v5323 = vunpack.c.l.b16 %v5319
  %v5324 = vunpack.c.h.b16 %v5319
  %v5325 = vunpack.c.l.b16 %v5320
  %v5326 = vunpack.c.h.b16 %v5320
  %v5327 = vpack.c.b16 %v5325, %v5323
  %v5328 = vpack.c.b16 %v5326, %v5324
  %v5332 = vsel %vm163, %v5318, 0
  %5334 = vmatpush.bf16.msra.mxu0 0
  %5335 = vmatpush.bf16.msra.mxu0 0
  %5336 = vmatpush.bf16.msra.mxu0 0
  %5337 = vmatpush.bf16.msra.mxu0 0
  %5338 = vmatpush.bf16.msra.mxu0 0
  %5339 = vmatpush.bf16.msra.mxu0 0
  %5340 = vmatpush.bf16.msra.mxu0 0
  %5341 = vmatpush.bf16.msra.mxu0 %v5327
  %5342 = vmatmul.bf16.gmra.mxu0 %v5332
  %v5343 = vpop.f32.mrf.mxu0
  %v5344 = vadd.f32 0.0, %v5343
  %v5345 = vpop.f32.mrf.mxu0
  %5346 = vdwg.mxu0
  %5347 = vmatpush.bf16.msra.mxu0 0
  %5348 = vmatpush.bf16.msra.mxu0 0
  %5349 = vmatpush.bf16.msra.mxu0 0
  %5350 = vmatpush.bf16.msra.mxu0 0
  %5351 = vmatpush.bf16.msra.mxu0 0
  %5352 = vmatpush.bf16.msra.mxu0 0
  %5353 = vmatpush.bf16.msra.mxu0 0
  %5354 = vmatpush.bf16.msra.mxu0 %v5328
  %5355 = vmatmul.bf16.gmra.mxu0 %v5332
  %v5356 = vpop.f32.mrf.mxu0
  %v5357 = vadd.f32 0.0, %v5356
  %v5358 = vpop.f32.mrf.mxu0
  %5359 = vdwg.mxu0
  %v5360 = vadd.f32 %v5316, %v5344
  %v5361 = vadd.f32 %v5317, %v5357
  %v5362 = vpack.c.bf16 %v4857, %v4857
  %v5363 = vld [vmem:[%s3 + $0xb0] sm:$0xff]
  %v5364 = vld [vmem:[%s3 + $0xb8] sm:$0xff]
  %v5367 = vunpack.c.l.b16 %v5363
  %v5368 = vunpack.c.h.b16 %v5363
  %v5369 = vunpack.c.l.b16 %v5364
  %v5370 = vunpack.c.h.b16 %v5364
  %v5371 = vpack.c.b16 %v5369, %v5367
  %v5372 = vpack.c.b16 %v5370, %v5368
  %v5376 = vsel %vm163, %v5362, 0
  %5378 = vmatpush.bf16.msra.mxu0 0
  %5379 = vmatpush.bf16.msra.mxu0 0
  %5380 = vmatpush.bf16.msra.mxu0 0
  %5381 = vmatpush.bf16.msra.mxu0 0
  %5382 = vmatpush.bf16.msra.mxu0 0
  %5383 = vmatpush.bf16.msra.mxu0 0
  %5384 = vmatpush.bf16.msra.mxu0 0
  %5385 = vmatpush.bf16.msra.mxu0 %v5371
  %5386 = vmatmul.bf16.gmra.mxu0 %v5376
  %v5387 = vpop.f32.mrf.mxu0
  %v5388 = vadd.f32 0.0, %v5387
  %v5389 = vpop.f32.mrf.mxu0
  %5390 = vdwg.mxu0
  %5391 = vmatpush.bf16.msra.mxu0 0
  %5392 = vmatpush.bf16.msra.mxu0 0
  %5393 = vmatpush.bf16.msra.mxu0 0
  %5394 = vmatpush.bf16.msra.mxu0 0
  %5395 = vmatpush.bf16.msra.mxu0 0
  %5396 = vmatpush.bf16.msra.mxu0 0
  %5397 = vmatpush.bf16.msra.mxu0 0
  %5398 = vmatpush.bf16.msra.mxu0 %v5372
  %5399 = vmatmul.bf16.gmra.mxu0 %v5376
  %v5400 = vpop.f32.mrf.mxu0
  %v5401 = vadd.f32 0.0, %v5400
  %v5402 = vpop.f32.mrf.mxu0
  %5403 = vdwg.mxu0
  %v5404 = vadd.f32 %v5360, %v5388
  %v5405 = vadd.f32 %v5361, %v5401
  %v5406 = vpack.c.bf16 %v4858, %v4858
  %v5407 = vld [vmem:[%s3 + $0xc0] sm:$0xff]
  %v5408 = vld [vmem:[%s3 + $0xc8] sm:$0xff]
  %v5411 = vunpack.c.l.b16 %v5407
  %v5412 = vunpack.c.h.b16 %v5407
  %v5413 = vunpack.c.l.b16 %v5408
  %v5414 = vunpack.c.h.b16 %v5408
  %v5415 = vpack.c.b16 %v5413, %v5411
  %v5416 = vpack.c.b16 %v5414, %v5412
  %v5420 = vsel %vm163, %v5406, 0
  %5422 = vmatpush.bf16.msra.mxu0 0
  %5423 = vmatpush.bf16.msra.mxu0 0
  %5424 = vmatpush.bf16.msra.mxu0 0
  %5425 = vmatpush.bf16.msra.mxu0 0
  %5426 = vmatpush.bf16.msra.mxu0 0
  %5427 = vmatpush.bf16.msra.mxu0 0
  %5428 = vmatpush.bf16.msra.mxu0 0
  %5429 = vmatpush.bf16.msra.mxu0 %v5415
  %5430 = vmatmul.bf16.gmra.mxu0 %v5420
  %v5431 = vpop.f32.mrf.mxu0
  %v5432 = vadd.f32 0.0, %v5431
  %v5433 = vpop.f32.mrf.mxu0
  %5434 = vdwg.mxu0
  %5435 = vmatpush.bf16.msra.mxu0 0
  %5436 = vmatpush.bf16.msra.mxu0 0
  %5437 = vmatpush.bf16.msra.mxu0 0
  %5438 = vmatpush.bf16.msra.mxu0 0
  %5439 = vmatpush.bf16.msra.mxu0 0
  %5440 = vmatpush.bf16.msra.mxu0 0
  %5441 = vmatpush.bf16.msra.mxu0 0
  %5442 = vmatpush.bf16.msra.mxu0 %v5416
  %5443 = vmatmul.bf16.gmra.mxu0 %v5420
  %v5444 = vpop.f32.mrf.mxu0
  %v5445 = vadd.f32 0.0, %v5444
  %v5446 = vpop.f32.mrf.mxu0
  %5447 = vdwg.mxu0
  %v5448 = vadd.f32 %v5404, %v5432
  %v5449 = vadd.f32 %v5405, %v5445
  %v5450 = vpack.c.bf16 %v4859, %v4859
  %v5451 = vld [vmem:[%s3 + $0xd0] sm:$0xff]
  %v5452 = vld [vmem:[%s3 + $0xd8] sm:$0xff]
  %v5455 = vunpack.c.l.b16 %v5451
  %v5456 = vunpack.c.h.b16 %v5451
  %v5457 = vunpack.c.l.b16 %v5452
  %v5458 = vunpack.c.h.b16 %v5452
  %v5459 = vpack.c.b16 %v5457, %v5455
  %v5460 = vpack.c.b16 %v5458, %v5456
  %v5464 = vsel %vm163, %v5450, 0
  %5466 = vmatpush.bf16.msra.mxu0 0
  %5467 = vmatpush.bf16.msra.mxu0 0
  %5468 = vmatpush.bf16.msra.mxu0 0
  %5469 = vmatpush.bf16.msra.mxu0 0
  %5470 = vmatpush.bf16.msra.mxu0 0
  %5471 = vmatpush.bf16.msra.mxu0 0
  %5472 = vmatpush.bf16.msra.mxu0 0
  %5473 = vmatpush.bf16.msra.mxu0 %v5459
  %5474 = vmatmul.bf16.gmra.mxu0 %v5464
  %v5475 = vpop.f32.mrf.mxu0
  %v5476 = vadd.f32 0.0, %v5475
  %v5477 = vpop.f32.mrf.mxu0
  %5478 = vdwg.mxu0
  %5479 = vmatpush.bf16.msra.mxu0 0
  %5480 = vmatpush.bf16.msra.mxu0 0
  %5481 = vmatpush.bf16.msra.mxu0 0
  %5482 = vmatpush.bf16.msra.mxu0 0
  %5483 = vmatpush.bf16.msra.mxu0 0
  %5484 = vmatpush.bf16.msra.mxu0 0
  %5485 = vmatpush.bf16.msra.mxu0 0
  %5486 = vmatpush.bf16.msra.mxu0 %v5460
  %5487 = vmatmul.bf16.gmra.mxu0 %v5464
  %v5488 = vpop.f32.mrf.mxu0
  %v5489 = vadd.f32 0.0, %v5488
  %v5490 = vpop.f32.mrf.mxu0
  %5491 = vdwg.mxu0
  %v5492 = vadd.f32 %v5448, %v5476
  %v5493 = vadd.f32 %v5449, %v5489
  %v5494 = vpack.c.bf16 %v4860, %v4860
  %v5495 = vld [vmem:[%s3 + $0xe0] sm:$0xff]
  %v5496 = vld [vmem:[%s3 + $0xe8] sm:$0xff]
  %v5499 = vunpack.c.l.b16 %v5495
  %v5500 = vunpack.c.h.b16 %v5495
  %v5501 = vunpack.c.l.b16 %v5496
  %v5502 = vunpack.c.h.b16 %v5496
  %v5503 = vpack.c.b16 %v5501, %v5499
  %v5504 = vpack.c.b16 %v5502, %v5500
  %v5508 = vsel %vm163, %v5494, 0
  %5510 = vmatpush.bf16.msra.mxu0 0
  %5511 = vmatpush.bf16.msra.mxu0 0
  %5512 = vmatpush.bf16.msra.mxu0 0
  %5513 = vmatpush.bf16.msra.mxu0 0
  %5514 = vmatpush.bf16.msra.mxu0 0
  %5515 = vmatpush.bf16.msra.mxu0 0
  %5516 = vmatpush.bf16.msra.mxu0 0
  %5517 = vmatpush.bf16.msra.mxu0 %v5503
  %5518 = vmatmul.bf16.gmra.mxu0 %v5508
  %v5519 = vpop.f32.mrf.mxu0
  %v5520 = vadd.f32 0.0, %v5519
  %v5521 = vpop.f32.mrf.mxu0
  %5522 = vdwg.mxu0
  %5523 = vmatpush.bf16.msra.mxu0 0
  %5524 = vmatpush.bf16.msra.mxu0 0
  %5525 = vmatpush.bf16.msra.mxu0 0
  %5526 = vmatpush.bf16.msra.mxu0 0
  %5527 = vmatpush.bf16.msra.mxu0 0
  %5528 = vmatpush.bf16.msra.mxu0 0
  %5529 = vmatpush.bf16.msra.mxu0 0
  %5530 = vmatpush.bf16.msra.mxu0 %v5504
  %5531 = vmatmul.bf16.gmra.mxu0 %v5508
  %v5532 = vpop.f32.mrf.mxu0
  %v5533 = vadd.f32 0.0, %v5532
  %v5534 = vpop.f32.mrf.mxu0
  %5535 = vdwg.mxu0
  %v5536 = vadd.f32 %v5492, %v5520
  %v5537 = vadd.f32 %v5493, %v5533
  %v5538 = vpack.c.bf16 %v4861, %v4861
  %v5539 = vld [vmem:[%s3 + $0xf0] sm:$0xff]
  %v5540 = vld [vmem:[%s3 + $0xf8] sm:$0xff]
  %v5543 = vunpack.c.l.b16 %v5539
  %v5544 = vunpack.c.h.b16 %v5539
  %v5545 = vunpack.c.l.b16 %v5540
  %v5546 = vunpack.c.h.b16 %v5540
  %v5547 = vpack.c.b16 %v5545, %v5543
  %v5548 = vpack.c.b16 %v5546, %v5544
  %v5552 = vsel %vm163, %v5538, 0
  %5554 = vmatpush.bf16.msra.mxu0 0
  %5555 = vmatpush.bf16.msra.mxu0 0
  %5556 = vmatpush.bf16.msra.mxu0 0
  %5557 = vmatpush.bf16.msra.mxu0 0
  %5558 = vmatpush.bf16.msra.mxu0 0
  %5559 = vmatpush.bf16.msra.mxu0 0
  %5560 = vmatpush.bf16.msra.mxu0 0
  %5561 = vmatpush.bf16.msra.mxu0 %v5547
  %5562 = vmatmul.bf16.gmra.mxu0 %v5552
  %v5563 = vpop.f32.mrf.mxu0
  %v5564 = vadd.f32 0.0, %v5563
  %v5565 = vpop.f32.mrf.mxu0
  %5566 = vdwg.mxu0
  %5567 = vmatpush.bf16.msra.mxu0 0
  %5568 = vmatpush.bf16.msra.mxu0 0
  %5569 = vmatpush.bf16.msra.mxu0 0
  %5570 = vmatpush.bf16.msra.mxu0 0
  %5571 = vmatpush.bf16.msra.mxu0 0
  %5572 = vmatpush.bf16.msra.mxu0 0
  %5573 = vmatpush.bf16.msra.mxu0 0
  %5574 = vmatpush.bf16.msra.mxu0 %v5548
  %5575 = vmatmul.bf16.gmra.mxu0 %v5552
  %v5576 = vpop.f32.mrf.mxu0
  %v5577 = vadd.f32 0.0, %v5576
  %v5578 = vpop.f32.mrf.mxu0
  %5579 = vdwg.mxu0
  %v5580 = vadd.f32 %v5536, %v5564
  %v5581 = vadd.f32 %v5537, %v5577
  %v5582 = vpack.c.bf16 %v4862, %v4862
  %v5583 = vld [vmem:[%s3 + $0x100] sm:$0xff]
  %v5584 = vld [vmem:[%s3 + $0x108] sm:$0xff]
  %v5587 = vunpack.c.l.b16 %v5583
  %v5588 = vunpack.c.h.b16 %v5583
  %v5589 = vunpack.c.l.b16 %v5584
  %v5590 = vunpack.c.h.b16 %v5584
  %v5591 = vpack.c.b16 %v5589, %v5587
  %v5592 = vpack.c.b16 %v5590, %v5588
  %v5596 = vsel %vm163, %v5582, 0
  %5598 = vmatpush.bf16.msra.mxu0 0
  %5599 = vmatpush.bf16.msra.mxu0 0
  %5600 = vmatpush.bf16.msra.mxu0 0
  %5601 = vmatpush.bf16.msra.mxu0 0
  %5602 = vmatpush.bf16.msra.mxu0 0
  %5603 = vmatpush.bf16.msra.mxu0 0
  %5604 = vmatpush.bf16.msra.mxu0 0
  %5605 = vmatpush.bf16.msra.mxu0 %v5591
  %5606 = vmatmul.bf16.gmra.mxu0 %v5596
  %v5607 = vpop.f32.mrf.mxu0
  %v5608 = vadd.f32 0.0, %v5607
  %v5609 = vpop.f32.mrf.mxu0
  %5610 = vdwg.mxu0
  %5611 = vmatpush.bf16.msra.mxu0 0
  %5612 = vmatpush.bf16.msra.mxu0 0
  %5613 = vmatpush.bf16.msra.mxu0 0
  %5614 = vmatpush.bf16.msra.mxu0 0
  %5615 = vmatpush.bf16.msra.mxu0 0
  %5616 = vmatpush.bf16.msra.mxu0 0
  %5617 = vmatpush.bf16.msra.mxu0 0
  %5618 = vmatpush.bf16.msra.mxu0 %v5592
  %5619 = vmatmul.bf16.gmra.mxu0 %v5596
  %v5620 = vpop.f32.mrf.mxu0
  %v5621 = vadd.f32 0.0, %v5620
  %v5622 = vpop.f32.mrf.mxu0
  %5623 = vdwg.mxu0
  %v5624 = vadd.f32 %v5580, %v5608
  %v5625 = vadd.f32 %v5581, %v5621
  %v5626 = vpack.c.bf16 %v4863, %v4863
  %v5627 = vld [vmem:[%s3 + $0x110] sm:$0xff]
  %v5628 = vld [vmem:[%s3 + $0x118] sm:$0xff]
  %v5631 = vunpack.c.l.b16 %v5627
  %v5632 = vunpack.c.h.b16 %v5627
  %v5633 = vunpack.c.l.b16 %v5628
  %v5634 = vunpack.c.h.b16 %v5628
  %v5635 = vpack.c.b16 %v5633, %v5631
  %v5636 = vpack.c.b16 %v5634, %v5632
  %v5640 = vsel %vm163, %v5626, 0
  %5642 = vmatpush.bf16.msra.mxu0 0
  %5643 = vmatpush.bf16.msra.mxu0 0
  %5644 = vmatpush.bf16.msra.mxu0 0
  %5645 = vmatpush.bf16.msra.mxu0 0
  %5646 = vmatpush.bf16.msra.mxu0 0
  %5647 = vmatpush.bf16.msra.mxu0 0
  %5648 = vmatpush.bf16.msra.mxu0 0
  %5649 = vmatpush.bf16.msra.mxu0 %v5635
  %5650 = vmatmul.bf16.gmra.mxu0 %v5640
  %v5651 = vpop.f32.mrf.mxu0
  %v5652 = vadd.f32 0.0, %v5651
  %v5653 = vpop.f32.mrf.mxu0
  %5654 = vdwg.mxu0
  %5655 = vmatpush.bf16.msra.mxu0 0
  %5656 = vmatpush.bf16.msra.mxu0 0
  %5657 = vmatpush.bf16.msra.mxu0 0
  %5658 = vmatpush.bf16.msra.mxu0 0
  %5659 = vmatpush.bf16.msra.mxu0 0
  %5660 = vmatpush.bf16.msra.mxu0 0
  %5661 = vmatpush.bf16.msra.mxu0 0
  %5662 = vmatpush.bf16.msra.mxu0 %v5636
  %5663 = vmatmul.bf16.gmra.mxu0 %v5640
  %v5664 = vpop.f32.mrf.mxu0
  %v5665 = vadd.f32 0.0, %v5664
  %v5666 = vpop.f32.mrf.mxu0
  %5667 = vdwg.mxu0
  %v5668 = vadd.f32 %v5624, %v5652
  %v5669 = vadd.f32 %v5625, %v5665
  %v5670 = vpack.c.bf16 %v4864, %v4864
  %v5671 = vld [vmem:[%s3 + $0x120] sm:$0xff]
  %v5672 = vld [vmem:[%s3 + $0x128] sm:$0xff]
  %v5675 = vunpack.c.l.b16 %v5671
  %v5676 = vunpack.c.h.b16 %v5671
  %v5677 = vunpack.c.l.b16 %v5672
  %v5678 = vunpack.c.h.b16 %v5672
  %v5679 = vpack.c.b16 %v5677, %v5675
  %v5680 = vpack.c.b16 %v5678, %v5676
  %v5684 = vsel %vm163, %v5670, 0
  %5686 = vmatpush.bf16.msra.mxu0 0
  %5687 = vmatpush.bf16.msra.mxu0 0
  %5688 = vmatpush.bf16.msra.mxu0 0
  %5689 = vmatpush.bf16.msra.mxu0 0
  %5690 = vmatpush.bf16.msra.mxu0 0
  %5691 = vmatpush.bf16.msra.mxu0 0
  %5692 = vmatpush.bf16.msra.mxu0 0
  %5693 = vmatpush.bf16.msra.mxu0 %v5679
  %5694 = vmatmul.bf16.gmra.mxu0 %v5684
  %v5695 = vpop.f32.mrf.mxu0
  %v5696 = vadd.f32 0.0, %v5695
  %v5697 = vpop.f32.mrf.mxu0
  %5698 = vdwg.mxu0
  %5699 = vmatpush.bf16.msra.mxu0 0
  %5700 = vmatpush.bf16.msra.mxu0 0
  %5701 = vmatpush.bf16.msra.mxu0 0
  %5702 = vmatpush.bf16.msra.mxu0 0
  %5703 = vmatpush.bf16.msra.mxu0 0
  %5704 = vmatpush.bf16.msra.mxu0 0
  %5705 = vmatpush.bf16.msra.mxu0 0
  %5706 = vmatpush.bf16.msra.mxu0 %v5680
  %5707 = vmatmul.bf16.gmra.mxu0 %v5684
  %v5708 = vpop.f32.mrf.mxu0
  %v5709 = vadd.f32 0.0, %v5708
  %v5710 = vpop.f32.mrf.mxu0
  %5711 = vdwg.mxu0
  %v5712 = vadd.f32 %v5668, %v5696
  %v5713 = vadd.f32 %v5669, %v5709
  %v5714 = vpack.c.bf16 %v4865, %v4865
  %v5715 = vld [vmem:[%s3 + $0x130] sm:$0xff]
  %v5716 = vld [vmem:[%s3 + $0x138] sm:$0xff]
  %v5719 = vunpack.c.l.b16 %v5715
  %v5720 = vunpack.c.h.b16 %v5715
  %v5721 = vunpack.c.l.b16 %v5716
  %v5722 = vunpack.c.h.b16 %v5716
  %v5723 = vpack.c.b16 %v5721, %v5719
  %v5724 = vpack.c.b16 %v5722, %v5720
  %v5728 = vsel %vm163, %v5714, 0
  %5730 = vmatpush.bf16.msra.mxu0 0
  %5731 = vmatpush.bf16.msra.mxu0 0
  %5732 = vmatpush.bf16.msra.mxu0 0
  %5733 = vmatpush.bf16.msra.mxu0 0
  %5734 = vmatpush.bf16.msra.mxu0 0
  %5735 = vmatpush.bf16.msra.mxu0 0
  %5736 = vmatpush.bf16.msra.mxu0 0
  %5737 = vmatpush.bf16.msra.mxu0 %v5723
  %5738 = vmatmul.bf16.gmra.mxu0 %v5728
  %v5739 = vpop.f32.mrf.mxu0
  %v5740 = vadd.f32 0.0, %v5739
  %v5741 = vpop.f32.mrf.mxu0
  %5742 = vdwg.mxu0
  %5743 = vmatpush.bf16.msra.mxu0 0
  %5744 = vmatpush.bf16.msra.mxu0 0
  %5745 = vmatpush.bf16.msra.mxu0 0
  %5746 = vmatpush.bf16.msra.mxu0 0
  %5747 = vmatpush.bf16.msra.mxu0 0
  %5748 = vmatpush.bf16.msra.mxu0 0
  %5749 = vmatpush.bf16.msra.mxu0 0
  %5750 = vmatpush.bf16.msra.mxu0 %v5724
  %5751 = vmatmul.bf16.gmra.mxu0 %v5728
  %v5752 = vpop.f32.mrf.mxu0
  %v5753 = vadd.f32 0.0, %v5752
  %v5754 = vpop.f32.mrf.mxu0
  %5755 = vdwg.mxu0
  %v5756 = vadd.f32 %v5712, %v5740
  %v5757 = vadd.f32 %v5713, %v5753
  %v5758 = vpack.c.bf16 %v4866, %v4866
  %v5759 = vld [vmem:[%s3 + $0x140] sm:$0xff]
  %v5760 = vld [vmem:[%s3 + $0x148] sm:$0xff]
  %v5763 = vunpack.c.l.b16 %v5759
  %v5764 = vunpack.c.h.b16 %v5759
  %v5765 = vunpack.c.l.b16 %v5760
  %v5766 = vunpack.c.h.b16 %v5760
  %v5767 = vpack.c.b16 %v5765, %v5763
  %v5768 = vpack.c.b16 %v5766, %v5764
  %v5772 = vsel %vm163, %v5758, 0
  %5774 = vmatpush.bf16.msra.mxu0 0
  %5775 = vmatpush.bf16.msra.mxu0 0
  %5776 = vmatpush.bf16.msra.mxu0 0
  %5777 = vmatpush.bf16.msra.mxu0 0
  %5778 = vmatpush.bf16.msra.mxu0 0
  %5779 = vmatpush.bf16.msra.mxu0 0
  %5780 = vmatpush.bf16.msra.mxu0 0
  %5781 = vmatpush.bf16.msra.mxu0 %v5767
  %5782 = vmatmul.bf16.gmra.mxu0 %v5772
  %v5783 = vpop.f32.mrf.mxu0
  %v5784 = vadd.f32 0.0, %v5783
  %v5785 = vpop.f32.mrf.mxu0
  %5786 = vdwg.mxu0
  %5787 = vmatpush.bf16.msra.mxu0 0
  %5788 = vmatpush.bf16.msra.mxu0 0
  %5789 = vmatpush.bf16.msra.mxu0 0
  %5790 = vmatpush.bf16.msra.mxu0 0
  %5791 = vmatpush.bf16.msra.mxu0 0
  %5792 = vmatpush.bf16.msra.mxu0 0
  %5793 = vmatpush.bf16.msra.mxu0 0
  %5794 = vmatpush.bf16.msra.mxu0 %v5768
  %5795 = vmatmul.bf16.gmra.mxu0 %v5772
  %v5796 = vpop.f32.mrf.mxu0
  %v5797 = vadd.f32 0.0, %v5796
  %v5798 = vpop.f32.mrf.mxu0
  %5799 = vdwg.mxu0
  %v5800 = vadd.f32 %v5756, %v5784
  %v5801 = vadd.f32 %v5757, %v5797
  %v5802 = vpack.c.bf16 %v4867, %v4867
  %v5803 = vld [vmem:[%s3 + $0x150] sm:$0xff]
  %v5804 = vld [vmem:[%s3 + $0x158] sm:$0xff]
  %v5807 = vunpack.c.l.b16 %v5803
  %v5808 = vunpack.c.h.b16 %v5803
  %v5809 = vunpack.c.l.b16 %v5804
  %v5810 = vunpack.c.h.b16 %v5804
  %v5811 = vpack.c.b16 %v5809, %v5807
  %v5812 = vpack.c.b16 %v5810, %v5808
  %v5816 = vsel %vm163, %v5802, 0
  %5818 = vmatpush.bf16.msra.mxu0 0
  %5819 = vmatpush.bf16.msra.mxu0 0
  %5820 = vmatpush.bf16.msra.mxu0 0
  %5821 = vmatpush.bf16.msra.mxu0 0
  %5822 = vmatpush.bf16.msra.mxu0 0
  %5823 = vmatpush.bf16.msra.mxu0 0
  %5824 = vmatpush.bf16.msra.mxu0 0
  %5825 = vmatpush.bf16.msra.mxu0 %v5811
  %5826 = vmatmul.bf16.gmra.mxu0 %v5816
  %v5827 = vpop.f32.mrf.mxu0
  %v5828 = vadd.f32 0.0, %v5827
  %v5829 = vpop.f32.mrf.mxu0
  %5830 = vdwg.mxu0
  %5831 = vmatpush.bf16.msra.mxu0 0
  %5832 = vmatpush.bf16.msra.mxu0 0
  %5833 = vmatpush.bf16.msra.mxu0 0
  %5834 = vmatpush.bf16.msra.mxu0 0
  %5835 = vmatpush.bf16.msra.mxu0 0
  %5836 = vmatpush.bf16.msra.mxu0 0
  %5837 = vmatpush.bf16.msra.mxu0 0
  %5838 = vmatpush.bf16.msra.mxu0 %v5812
  %5839 = vmatmul.bf16.gmra.mxu0 %v5816
  %v5840 = vpop.f32.mrf.mxu0
  %v5841 = vadd.f32 0.0, %v5840
  %v5842 = vpop.f32.mrf.mxu0
  %5843 = vdwg.mxu0
  %v5844 = vadd.f32 %v5800, %v5828
  %v5845 = vadd.f32 %v5801, %v5841
  %v5846 = vpack.c.bf16 %v4868, %v4868
  %v5847 = vld [vmem:[%s3 + $0x160] sm:$0xff]
  %v5848 = vld [vmem:[%s3 + $0x168] sm:$0xff]
  %v5851 = vunpack.c.l.b16 %v5847
  %v5852 = vunpack.c.h.b16 %v5847
  %v5853 = vunpack.c.l.b16 %v5848
  %v5854 = vunpack.c.h.b16 %v5848
  %v5855 = vpack.c.b16 %v5853, %v5851
  %v5856 = vpack.c.b16 %v5854, %v5852
  %v5860 = vsel %vm163, %v5846, 0
  %5862 = vmatpush.bf16.msra.mxu0 0
  %5863 = vmatpush.bf16.msra.mxu0 0
  %5864 = vmatpush.bf16.msra.mxu0 0
  %5865 = vmatpush.bf16.msra.mxu0 0
  %5866 = vmatpush.bf16.msra.mxu0 0
  %5867 = vmatpush.bf16.msra.mxu0 0
  %5868 = vmatpush.bf16.msra.mxu0 0
  %5869 = vmatpush.bf16.msra.mxu0 %v5855
  %5870 = vmatmul.bf16.gmra.mxu0 %v5860
  %v5871 = vpop.f32.mrf.mxu0
  %v5872 = vadd.f32 0.0, %v5871
  %v5873 = vpop.f32.mrf.mxu0
  %5874 = vdwg.mxu0
  %5875 = vmatpush.bf16.msra.mxu0 0
  %5876 = vmatpush.bf16.msra.mxu0 0
  %5877 = vmatpush.bf16.msra.mxu0 0
  %5878 = vmatpush.bf16.msra.mxu0 0
  %5879 = vmatpush.bf16.msra.mxu0 0
  %5880 = vmatpush.bf16.msra.mxu0 0
  %5881 = vmatpush.bf16.msra.mxu0 0
  %5882 = vmatpush.bf16.msra.mxu0 %v5856
  %5883 = vmatmul.bf16.gmra.mxu0 %v5860
  %v5884 = vpop.f32.mrf.mxu0
  %v5885 = vadd.f32 0.0, %v5884
  %v5886 = vpop.f32.mrf.mxu0
  %5887 = vdwg.mxu0
  %v5888 = vadd.f32 %v5844, %v5872
  %v5889 = vadd.f32 %v5845, %v5885
  %v5890 = vpack.c.bf16 %v4869, %v4869
  %v5891 = vld [vmem:[%s3 + $0x170] sm:$0xff]
  %v5892 = vld [vmem:[%s3 + $0x178] sm:$0xff]
  %v5895 = vunpack.c.l.b16 %v5891
  %v5896 = vunpack.c.h.b16 %v5891
  %v5897 = vunpack.c.l.b16 %v5892
  %v5898 = vunpack.c.h.b16 %v5892
  %v5899 = vpack.c.b16 %v5897, %v5895
  %v5900 = vpack.c.b16 %v5898, %v5896
  %v5904 = vsel %vm163, %v5890, 0
  %5906 = vmatpush.bf16.msra.mxu0 0
  %5907 = vmatpush.bf16.msra.mxu0 0
  %5908 = vmatpush.bf16.msra.mxu0 0
  %5909 = vmatpush.bf16.msra.mxu0 0
  %5910 = vmatpush.bf16.msra.mxu0 0
  %5911 = vmatpush.bf16.msra.mxu0 0
  %5912 = vmatpush.bf16.msra.mxu0 0
  %5913 = vmatpush.bf16.msra.mxu0 %v5899
  %5914 = vmatmul.bf16.gmra.mxu0 %v5904
  %v5915 = vpop.f32.mrf.mxu0
  %v5916 = vadd.f32 0.0, %v5915
  %v5917 = vpop.f32.mrf.mxu0
  %5918 = vdwg.mxu0
  %5919 = vmatpush.bf16.msra.mxu0 0
  %5920 = vmatpush.bf16.msra.mxu0 0
  %5921 = vmatpush.bf16.msra.mxu0 0
  %5922 = vmatpush.bf16.msra.mxu0 0
  %5923 = vmatpush.bf16.msra.mxu0 0
  %5924 = vmatpush.bf16.msra.mxu0 0
  %5925 = vmatpush.bf16.msra.mxu0 0
  %5926 = vmatpush.bf16.msra.mxu0 %v5900
  %5927 = vmatmul.bf16.gmra.mxu0 %v5904
  %v5928 = vpop.f32.mrf.mxu0
  %v5929 = vadd.f32 0.0, %v5928
  %v5930 = vpop.f32.mrf.mxu0
  %5931 = vdwg.mxu0
  %v5932 = vadd.f32 %v5888, %v5916
  %v5933 = vadd.f32 %v5889, %v5929
  %v5934 = vpack.c.bf16 %v4870, %v4870
  %v5935 = vld [vmem:[%s3 + $0x180] sm:$0xff]
  %v5936 = vld [vmem:[%s3 + $0x188] sm:$0xff]
  %v5939 = vunpack.c.l.b16 %v5935
  %v5940 = vunpack.c.h.b16 %v5935
  %v5941 = vunpack.c.l.b16 %v5936
  %v5942 = vunpack.c.h.b16 %v5936
  %v5943 = vpack.c.b16 %v5941, %v5939
  %v5944 = vpack.c.b16 %v5942, %v5940
  %v5948 = vsel %vm163, %v5934, 0
  %5950 = vmatpush.bf16.msra.mxu0 0
  %5951 = vmatpush.bf16.msra.mxu0 0
  %5952 = vmatpush.bf16.msra.mxu0 0
  %5953 = vmatpush.bf16.msra.mxu0 0
  %5954 = vmatpush.bf16.msra.mxu0 0
  %5955 = vmatpush.bf16.msra.mxu0 0
  %5956 = vmatpush.bf16.msra.mxu0 0
  %5957 = vmatpush.bf16.msra.mxu0 %v5943
  %5958 = vmatmul.bf16.gmra.mxu0 %v5948
  %v5959 = vpop.f32.mrf.mxu0
  %v5960 = vadd.f32 0.0, %v5959
  %v5961 = vpop.f32.mrf.mxu0
  %5962 = vdwg.mxu0
  %5963 = vmatpush.bf16.msra.mxu0 0
  %5964 = vmatpush.bf16.msra.mxu0 0
  %5965 = vmatpush.bf16.msra.mxu0 0
  %5966 = vmatpush.bf16.msra.mxu0 0
  %5967 = vmatpush.bf16.msra.mxu0 0
  %5968 = vmatpush.bf16.msra.mxu0 0
  %5969 = vmatpush.bf16.msra.mxu0 0
  %5970 = vmatpush.bf16.msra.mxu0 %v5944
  %5971 = vmatmul.bf16.gmra.mxu0 %v5948
  %v5972 = vpop.f32.mrf.mxu0
  %v5973 = vadd.f32 0.0, %v5972
  %v5974 = vpop.f32.mrf.mxu0
  %5975 = vdwg.mxu0
  %v5976 = vadd.f32 %v5932, %v5960
  %v5977 = vadd.f32 %v5933, %v5973
  %v5978 = vpack.c.bf16 %v4871, %v4871
  %v5979 = vld [vmem:[%s3 + $0x190] sm:$0xff]
  %v5980 = vld [vmem:[%s3 + $0x198] sm:$0xff]
  %v5983 = vunpack.c.l.b16 %v5979
  %v5984 = vunpack.c.h.b16 %v5979
  %v5985 = vunpack.c.l.b16 %v5980
  %v5986 = vunpack.c.h.b16 %v5980
  %v5987 = vpack.c.b16 %v5985, %v5983
  %v5988 = vpack.c.b16 %v5986, %v5984
  %v5992 = vsel %vm163, %v5978, 0
  %5994 = vmatpush.bf16.msra.mxu0 0
  %5995 = vmatpush.bf16.msra.mxu0 0
  %5996 = vmatpush.bf16.msra.mxu0 0
  %5997 = vmatpush.bf16.msra.mxu0 0
  %5998 = vmatpush.bf16.msra.mxu0 0
  %5999 = vmatpush.bf16.msra.mxu0 0
  %6000 = vmatpush.bf16.msra.mxu0 0
  %6001 = vmatpush.bf16.msra.mxu0 %v5987
  %6002 = vmatmul.bf16.gmra.mxu0 %v5992
  %v6003 = vpop.f32.mrf.mxu0
  %v6004 = vadd.f32 0.0, %v6003
  %v6005 = vpop.f32.mrf.mxu0
  %6006 = vdwg.mxu0
  %6007 = vmatpush.bf16.msra.mxu0 0
  %6008 = vmatpush.bf16.msra.mxu0 0
  %6009 = vmatpush.bf16.msra.mxu0 0
  %6010 = vmatpush.bf16.msra.mxu0 0
  %6011 = vmatpush.bf16.msra.mxu0 0
  %6012 = vmatpush.bf16.msra.mxu0 0
  %6013 = vmatpush.bf16.msra.mxu0 0
  %6014 = vmatpush.bf16.msra.mxu0 %v5988
  %6015 = vmatmul.bf16.gmra.mxu0 %v5992
  %v6016 = vpop.f32.mrf.mxu0
  %v6017 = vadd.f32 0.0, %v6016
  %v6018 = vpop.f32.mrf.mxu0
  %6019 = vdwg.mxu0
  %v6020 = vadd.f32 %v5976, %v6004
  %v6021 = vadd.f32 %v5977, %v6017
  %v6022 = vpack.c.bf16 %v4872, %v4872
  %v6023 = vld [vmem:[%s3 + $0x1a0] sm:$0xff]
  %v6024 = vld [vmem:[%s3 + $0x1a8] sm:$0xff]
  %v6027 = vunpack.c.l.b16 %v6023
  %v6028 = vunpack.c.h.b16 %v6023
  %v6029 = vunpack.c.l.b16 %v6024
  %v6030 = vunpack.c.h.b16 %v6024
  %v6031 = vpack.c.b16 %v6029, %v6027
  %v6032 = vpack.c.b16 %v6030, %v6028
  %v6036 = vsel %vm163, %v6022, 0
  %6038 = vmatpush.bf16.msra.mxu0 0
  %6039 = vmatpush.bf16.msra.mxu0 0
  %6040 = vmatpush.bf16.msra.mxu0 0
  %6041 = vmatpush.bf16.msra.mxu0 0
  %6042 = vmatpush.bf16.msra.mxu0 0
  %6043 = vmatpush.bf16.msra.mxu0 0
  %6044 = vmatpush.bf16.msra.mxu0 0
  %6045 = vmatpush.bf16.msra.mxu0 %v6031
  %6046 = vmatmul.bf16.gmra.mxu0 %v6036
  %v6047 = vpop.f32.mrf.mxu0
  %v6048 = vadd.f32 0.0, %v6047
  %v6049 = vpop.f32.mrf.mxu0
  %6050 = vdwg.mxu0
  %6051 = vmatpush.bf16.msra.mxu0 0
  %6052 = vmatpush.bf16.msra.mxu0 0
  %6053 = vmatpush.bf16.msra.mxu0 0
  %6054 = vmatpush.bf16.msra.mxu0 0
  %6055 = vmatpush.bf16.msra.mxu0 0
  %6056 = vmatpush.bf16.msra.mxu0 0
  %6057 = vmatpush.bf16.msra.mxu0 0
  %6058 = vmatpush.bf16.msra.mxu0 %v6032
  %6059 = vmatmul.bf16.gmra.mxu0 %v6036
  %v6060 = vpop.f32.mrf.mxu0
  %v6061 = vadd.f32 0.0, %v6060
  %v6062 = vpop.f32.mrf.mxu0
  %6063 = vdwg.mxu0
  %v6064 = vadd.f32 %v6020, %v6048
  %v6065 = vadd.f32 %v6021, %v6061
  %v6066 = vpack.c.bf16 %v4873, %v4873
  %v6067 = vld [vmem:[%s3 + $0x1b0] sm:$0xff]
  %v6068 = vld [vmem:[%s3 + $0x1b8] sm:$0xff]
  %v6071 = vunpack.c.l.b16 %v6067
  %v6072 = vunpack.c.h.b16 %v6067
  %v6073 = vunpack.c.l.b16 %v6068
  %v6074 = vunpack.c.h.b16 %v6068
  %v6075 = vpack.c.b16 %v6073, %v6071
  %v6076 = vpack.c.b16 %v6074, %v6072
  %v6080 = vsel %vm163, %v6066, 0
  %6082 = vmatpush.bf16.msra.mxu0 0
  %6083 = vmatpush.bf16.msra.mxu0 0
  %6084 = vmatpush.bf16.msra.mxu0 0
  %6085 = vmatpush.bf16.msra.mxu0 0
  %6086 = vmatpush.bf16.msra.mxu0 0
  %6087 = vmatpush.bf16.msra.mxu0 0
  %6088 = vmatpush.bf16.msra.mxu0 0
  %6089 = vmatpush.bf16.msra.mxu0 %v6075
  %6090 = vmatmul.bf16.gmra.mxu0 %v6080
  %v6091 = vpop.f32.mrf.mxu0
  %v6092 = vadd.f32 0.0, %v6091
  %v6093 = vpop.f32.mrf.mxu0
  %6094 = vdwg.mxu0
  %6095 = vmatpush.bf16.msra.mxu0 0
  %6096 = vmatpush.bf16.msra.mxu0 0
  %6097 = vmatpush.bf16.msra.mxu0 0
  %6098 = vmatpush.bf16.msra.mxu0 0
  %6099 = vmatpush.bf16.msra.mxu0 0
  %6100 = vmatpush.bf16.msra.mxu0 0
  %6101 = vmatpush.bf16.msra.mxu0 0
  %6102 = vmatpush.bf16.msra.mxu0 %v6076
  %6103 = vmatmul.bf16.gmra.mxu0 %v6080
  %v6104 = vpop.f32.mrf.mxu0
  %v6105 = vadd.f32 0.0, %v6104
  %v6106 = vpop.f32.mrf.mxu0
  %6107 = vdwg.mxu0
  %v6108 = vadd.f32 %v6064, %v6092
  %v6109 = vadd.f32 %v6065, %v6105
  %v6110 = vpack.c.bf16 %v4874, %v4874
  %v6111 = vld [vmem:[%s3 + $0x1c0] sm:$0xff]
  %v6112 = vld [vmem:[%s3 + $0x1c8] sm:$0xff]
  %v6115 = vunpack.c.l.b16 %v6111
  %v6116 = vunpack.c.h.b16 %v6111
  %v6117 = vunpack.c.l.b16 %v6112
  %v6118 = vunpack.c.h.b16 %v6112
  %v6119 = vpack.c.b16 %v6117, %v6115
  %v6120 = vpack.c.b16 %v6118, %v6116
  %v6124 = vsel %vm163, %v6110, 0
  %6126 = vmatpush.bf16.msra.mxu0 0
  %6127 = vmatpush.bf16.msra.mxu0 0
  %6128 = vmatpush.bf16.msra.mxu0 0
  %6129 = vmatpush.bf16.msra.mxu0 0
  %6130 = vmatpush.bf16.msra.mxu0 0
  %6131 = vmatpush.bf16.msra.mxu0 0
  %6132 = vmatpush.bf16.msra.mxu0 0
  %6133 = vmatpush.bf16.msra.mxu0 %v6119
  %6134 = vmatmul.bf16.gmra.mxu0 %v6124
  %v6135 = vpop.f32.mrf.mxu0
  %v6136 = vadd.f32 0.0, %v6135
  %v6137 = vpop.f32.mrf.mxu0
  %6138 = vdwg.mxu0
  %6139 = vmatpush.bf16.msra.mxu0 0
  %6140 = vmatpush.bf16.msra.mxu0 0
  %6141 = vmatpush.bf16.msra.mxu0 0
  %6142 = vmatpush.bf16.msra.mxu0 0
  %6143 = vmatpush.bf16.msra.mxu0 0
  %6144 = vmatpush.bf16.msra.mxu0 0
  %6145 = vmatpush.bf16.msra.mxu0 0
  %6146 = vmatpush.bf16.msra.mxu0 %v6120
  %6147 = vmatmul.bf16.gmra.mxu0 %v6124
  %v6148 = vpop.f32.mrf.mxu0
  %v6149 = vadd.f32 0.0, %v6148
  %v6150 = vpop.f32.mrf.mxu0
  %6151 = vdwg.mxu0
  %v6152 = vadd.f32 %v6108, %v6136
  %v6153 = vadd.f32 %v6109, %v6149
  %v6154 = vpack.c.bf16 %v4875, %v4875
  %v6155 = vld [vmem:[%s3 + $0x1d0] sm:$0xff]
  %v6156 = vld [vmem:[%s3 + $0x1d8] sm:$0xff]
  %v6159 = vunpack.c.l.b16 %v6155
  %v6160 = vunpack.c.h.b16 %v6155
  %v6161 = vunpack.c.l.b16 %v6156
  %v6162 = vunpack.c.h.b16 %v6156
  %v6163 = vpack.c.b16 %v6161, %v6159
  %v6164 = vpack.c.b16 %v6162, %v6160
  %v6168 = vsel %vm163, %v6154, 0
  %6170 = vmatpush.bf16.msra.mxu0 0
  %6171 = vmatpush.bf16.msra.mxu0 0
  %6172 = vmatpush.bf16.msra.mxu0 0
  %6173 = vmatpush.bf16.msra.mxu0 0
  %6174 = vmatpush.bf16.msra.mxu0 0
  %6175 = vmatpush.bf16.msra.mxu0 0
  %6176 = vmatpush.bf16.msra.mxu0 0
  %6177 = vmatpush.bf16.msra.mxu0 %v6163
  %6178 = vmatmul.bf16.gmra.mxu0 %v6168
  %v6179 = vpop.f32.mrf.mxu0
  %v6180 = vadd.f32 0.0, %v6179
  %v6181 = vpop.f32.mrf.mxu0
  %6182 = vdwg.mxu0
  %6183 = vmatpush.bf16.msra.mxu0 0
  %6184 = vmatpush.bf16.msra.mxu0 0
  %6185 = vmatpush.bf16.msra.mxu0 0
  %6186 = vmatpush.bf16.msra.mxu0 0
  %6187 = vmatpush.bf16.msra.mxu0 0
  %6188 = vmatpush.bf16.msra.mxu0 0
  %6189 = vmatpush.bf16.msra.mxu0 0
  %6190 = vmatpush.bf16.msra.mxu0 %v6164
  %6191 = vmatmul.bf16.gmra.mxu0 %v6168
  %v6192 = vpop.f32.mrf.mxu0
  %v6193 = vadd.f32 0.0, %v6192
  %v6194 = vpop.f32.mrf.mxu0
  %6195 = vdwg.mxu0
  %v6196 = vadd.f32 %v6152, %v6180
  %v6197 = vadd.f32 %v6153, %v6193
  %v6198 = vpack.c.bf16 %v4876, %v4876
  %v6199 = vld [vmem:[%s3 + $0x1e0] sm:$0xff]
  %v6200 = vld [vmem:[%s3 + $0x1e8] sm:$0xff]
  %v6203 = vunpack.c.l.b16 %v6199
  %v6204 = vunpack.c.h.b16 %v6199
  %v6205 = vunpack.c.l.b16 %v6200
  %v6206 = vunpack.c.h.b16 %v6200
  %v6207 = vpack.c.b16 %v6205, %v6203
  %v6208 = vpack.c.b16 %v6206, %v6204
  %v6212 = vsel %vm163, %v6198, 0
  %6214 = vmatpush.bf16.msra.mxu0 0
  %6215 = vmatpush.bf16.msra.mxu0 0
  %6216 = vmatpush.bf16.msra.mxu0 0
  %6217 = vmatpush.bf16.msra.mxu0 0
  %6218 = vmatpush.bf16.msra.mxu0 0
  %6219 = vmatpush.bf16.msra.mxu0 0
  %6220 = vmatpush.bf16.msra.mxu0 0
  %6221 = vmatpush.bf16.msra.mxu0 %v6207
  %6222 = vmatmul.bf16.gmra.mxu0 %v6212
  %v6223 = vpop.f32.mrf.mxu0
  %v6224 = vadd.f32 0.0, %v6223
  %v6225 = vpop.f32.mrf.mxu0
  %6226 = vdwg.mxu0
  %6227 = vmatpush.bf16.msra.mxu0 0
  %6228 = vmatpush.bf16.msra.mxu0 0
  %6229 = vmatpush.bf16.msra.mxu0 0
  %6230 = vmatpush.bf16.msra.mxu0 0
  %6231 = vmatpush.bf16.msra.mxu0 0
  %6232 = vmatpush.bf16.msra.mxu0 0
  %6233 = vmatpush.bf16.msra.mxu0 0
  %6234 = vmatpush.bf16.msra.mxu0 %v6208
  %6235 = vmatmul.bf16.gmra.mxu0 %v6212
  %v6236 = vpop.f32.mrf.mxu0
  %v6237 = vadd.f32 0.0, %v6236
  %v6238 = vpop.f32.mrf.mxu0
  %6239 = vdwg.mxu0
  %v6240 = vadd.f32 %v6196, %v6224
  %v6241 = vadd.f32 %v6197, %v6237
  %v6242 = vpack.c.bf16 %v4877, %v4877
  %v6243 = vld [vmem:[%s3 + $0x1f0] sm:$0xff]
  %v6244 = vld [vmem:[%s3 + $0x1f8] sm:$0xff]
  %v6247 = vunpack.c.l.b16 %v6243
  %v6248 = vunpack.c.h.b16 %v6243
  %v6249 = vunpack.c.l.b16 %v6244
  %v6250 = vunpack.c.h.b16 %v6244
  %v6251 = vpack.c.b16 %v6249, %v6247
  %v6252 = vpack.c.b16 %v6250, %v6248
  %v6256 = vsel %vm163, %v6242, 0
  %6258 = vmatpush.bf16.msra.mxu0 0
  %6259 = vmatpush.bf16.msra.mxu0 0
  %6260 = vmatpush.bf16.msra.mxu0 0
  %6261 = vmatpush.bf16.msra.mxu0 0
  %6262 = vmatpush.bf16.msra.mxu0 0
  %6263 = vmatpush.bf16.msra.mxu0 0
  %6264 = vmatpush.bf16.msra.mxu0 0
  %6265 = vmatpush.bf16.msra.mxu0 %v6251
  %6266 = vmatmul.bf16.gmra.mxu0 %v6256
  %v6267 = vpop.f32.mrf.mxu0
  %v6268 = vadd.f32 0.0, %v6267
  %v6269 = vpop.f32.mrf.mxu0
  %6270 = vdwg.mxu0
  %6271 = vmatpush.bf16.msra.mxu0 0
  %6272 = vmatpush.bf16.msra.mxu0 0
  %6273 = vmatpush.bf16.msra.mxu0 0
  %6274 = vmatpush.bf16.msra.mxu0 0
  %6275 = vmatpush.bf16.msra.mxu0 0
  %6276 = vmatpush.bf16.msra.mxu0 0
  %6277 = vmatpush.bf16.msra.mxu0 0
  %6278 = vmatpush.bf16.msra.mxu0 %v6252
  %6279 = vmatmul.bf16.gmra.mxu0 %v6256
  %v6280 = vpop.f32.mrf.mxu0
  %v6281 = vadd.f32 0.0, %v6280
  %v6282 = vpop.f32.mrf.mxu0
  %6283 = vdwg.mxu0
  %v6284 = vadd.f32 %v6240, %v6268
  %v6285 = vadd.f32 %v6241, %v6281
  %v6286 = vpack.c.bf16 %v4878, %v4878
  %v6287 = vld [vmem:[%s3 + $0x200] sm:$0xff]
  %v6288 = vld [vmem:[%s3 + $0x208] sm:$0xff]
  %v6291 = vunpack.c.l.b16 %v6287
  %v6292 = vunpack.c.h.b16 %v6287
  %v6293 = vunpack.c.l.b16 %v6288
  %v6294 = vunpack.c.h.b16 %v6288
  %v6295 = vpack.c.b16 %v6293, %v6291
  %v6296 = vpack.c.b16 %v6294, %v6292
  %v6300 = vsel %vm163, %v6286, 0
  %6302 = vmatpush.bf16.msra.mxu0 0
  %6303 = vmatpush.bf16.msra.mxu0 0
  %6304 = vmatpush.bf16.msra.mxu0 0
  %6305 = vmatpush.bf16.msra.mxu0 0
  %6306 = vmatpush.bf16.msra.mxu0 0
  %6307 = vmatpush.bf16.msra.mxu0 0
  %6308 = vmatpush.bf16.msra.mxu0 0
  %6309 = vmatpush.bf16.msra.mxu0 %v6295
  %6310 = vmatmul.bf16.gmra.mxu0 %v6300
  %v6311 = vpop.f32.mrf.mxu0
  %v6312 = vadd.f32 0.0, %v6311
  %v6313 = vpop.f32.mrf.mxu0
  %6314 = vdwg.mxu0
  %6315 = vmatpush.bf16.msra.mxu0 0
  %6316 = vmatpush.bf16.msra.mxu0 0
  %6317 = vmatpush.bf16.msra.mxu0 0
  %6318 = vmatpush.bf16.msra.mxu0 0
  %6319 = vmatpush.bf16.msra.mxu0 0
  %6320 = vmatpush.bf16.msra.mxu0 0
  %6321 = vmatpush.bf16.msra.mxu0 0
  %6322 = vmatpush.bf16.msra.mxu0 %v6296
  %6323 = vmatmul.bf16.gmra.mxu0 %v6300
  %v6324 = vpop.f32.mrf.mxu0
  %v6325 = vadd.f32 0.0, %v6324
  %v6326 = vpop.f32.mrf.mxu0
  %6327 = vdwg.mxu0
  %v6328 = vadd.f32 %v6284, %v6312
  %v6329 = vadd.f32 %v6285, %v6325
  %v6330 = vpack.c.bf16 %v4879, %v4879
  %v6331 = vld [vmem:[%s3 + $0x210] sm:$0xff]
  %v6332 = vld [vmem:[%s3 + $0x218] sm:$0xff]
  %v6335 = vunpack.c.l.b16 %v6331
  %v6336 = vunpack.c.h.b16 %v6331
  %v6337 = vunpack.c.l.b16 %v6332
  %v6338 = vunpack.c.h.b16 %v6332
  %v6339 = vpack.c.b16 %v6337, %v6335
  %v6340 = vpack.c.b16 %v6338, %v6336
  %v6344 = vsel %vm163, %v6330, 0
  %6346 = vmatpush.bf16.msra.mxu0 0
  %6347 = vmatpush.bf16.msra.mxu0 0
  %6348 = vmatpush.bf16.msra.mxu0 0
  %6349 = vmatpush.bf16.msra.mxu0 0
  %6350 = vmatpush.bf16.msra.mxu0 0
  %6351 = vmatpush.bf16.msra.mxu0 0
  %6352 = vmatpush.bf16.msra.mxu0 0
  %6353 = vmatpush.bf16.msra.mxu0 %v6339
  %6354 = vmatmul.bf16.gmra.mxu0 %v6344
  %v6355 = vpop.f32.mrf.mxu0
  %v6356 = vadd.f32 0.0, %v6355
  %v6357 = vpop.f32.mrf.mxu0
  %6358 = vdwg.mxu0
  %6359 = vmatpush.bf16.msra.mxu0 0
  %6360 = vmatpush.bf16.msra.mxu0 0
  %6361 = vmatpush.bf16.msra.mxu0 0
  %6362 = vmatpush.bf16.msra.mxu0 0
  %6363 = vmatpush.bf16.msra.mxu0 0
  %6364 = vmatpush.bf16.msra.mxu0 0
  %6365 = vmatpush.bf16.msra.mxu0 0
  %6366 = vmatpush.bf16.msra.mxu0 %v6340
  %6367 = vmatmul.bf16.gmra.mxu0 %v6344
  %v6368 = vpop.f32.mrf.mxu0
  %v6369 = vadd.f32 0.0, %v6368
  %v6370 = vpop.f32.mrf.mxu0
  %6371 = vdwg.mxu0
  %v6372 = vadd.f32 %v6328, %v6356
  %v6373 = vadd.f32 %v6329, %v6369
  %v6374 = vpack.c.bf16 %v4880, %v4880
  %v6375 = vld [vmem:[%s3 + $0x220] sm:$0xff]
  %v6376 = vld [vmem:[%s3 + $0x228] sm:$0xff]
  %v6379 = vunpack.c.l.b16 %v6375
  %v6380 = vunpack.c.h.b16 %v6375
  %v6381 = vunpack.c.l.b16 %v6376
  %v6382 = vunpack.c.h.b16 %v6376
  %v6383 = vpack.c.b16 %v6381, %v6379
  %v6384 = vpack.c.b16 %v6382, %v6380
  %v6388 = vsel %vm163, %v6374, 0
  %6390 = vmatpush.bf16.msra.mxu0 0
  %6391 = vmatpush.bf16.msra.mxu0 0
  %6392 = vmatpush.bf16.msra.mxu0 0
  %6393 = vmatpush.bf16.msra.mxu0 0
  %6394 = vmatpush.bf16.msra.mxu0 0
  %6395 = vmatpush.bf16.msra.mxu0 0
  %6396 = vmatpush.bf16.msra.mxu0 0
  %6397 = vmatpush.bf16.msra.mxu0 %v6383
  %6398 = vmatmul.bf16.gmra.mxu0 %v6388
  %v6399 = vpop.f32.mrf.mxu0
  %v6400 = vadd.f32 0.0, %v6399
  %v6401 = vpop.f32.mrf.mxu0
  %6402 = vdwg.mxu0
  %6403 = vmatpush.bf16.msra.mxu0 0
  %6404 = vmatpush.bf16.msra.mxu0 0
  %6405 = vmatpush.bf16.msra.mxu0 0
  %6406 = vmatpush.bf16.msra.mxu0 0
  %6407 = vmatpush.bf16.msra.mxu0 0
  %6408 = vmatpush.bf16.msra.mxu0 0
  %6409 = vmatpush.bf16.msra.mxu0 0
  %6410 = vmatpush.bf16.msra.mxu0 %v6384
  %6411 = vmatmul.bf16.gmra.mxu0 %v6388
  %v6412 = vpop.f32.mrf.mxu0
  %v6413 = vadd.f32 0.0, %v6412
  %v6414 = vpop.f32.mrf.mxu0
  %6415 = vdwg.mxu0
  %v6416 = vadd.f32 %v6372, %v6400
  %v6417 = vadd.f32 %v6373, %v6413
  %v6418 = vpack.c.bf16 %v4881, %v4881
  %v6419 = vld [vmem:[%s3 + $0x230] sm:$0xff]
  %v6420 = vld [vmem:[%s3 + $0x238] sm:$0xff]
  %v6423 = vunpack.c.l.b16 %v6419
  %v6424 = vunpack.c.h.b16 %v6419
  %v6425 = vunpack.c.l.b16 %v6420
  %v6426 = vunpack.c.h.b16 %v6420
  %v6427 = vpack.c.b16 %v6425, %v6423
  %v6428 = vpack.c.b16 %v6426, %v6424
  %v6432 = vsel %vm163, %v6418, 0
  %6434 = vmatpush.bf16.msra.mxu0 0
  %6435 = vmatpush.bf16.msra.mxu0 0
  %6436 = vmatpush.bf16.msra.mxu0 0
  %6437 = vmatpush.bf16.msra.mxu0 0
  %6438 = vmatpush.bf16.msra.mxu0 0
  %6439 = vmatpush.bf16.msra.mxu0 0
  %6440 = vmatpush.bf16.msra.mxu0 0
  %6441 = vmatpush.bf16.msra.mxu0 %v6427
  %6442 = vmatmul.bf16.gmra.mxu0 %v6432
  %v6443 = vpop.f32.mrf.mxu0
  %v6444 = vadd.f32 0.0, %v6443
  %v6445 = vpop.f32.mrf.mxu0
  %6446 = vdwg.mxu0
  %6447 = vmatpush.bf16.msra.mxu0 0
  %6448 = vmatpush.bf16.msra.mxu0 0
  %6449 = vmatpush.bf16.msra.mxu0 0
  %6450 = vmatpush.bf16.msra.mxu0 0
  %6451 = vmatpush.bf16.msra.mxu0 0
  %6452 = vmatpush.bf16.msra.mxu0 0
  %6453 = vmatpush.bf16.msra.mxu0 0
  %6454 = vmatpush.bf16.msra.mxu0 %v6428
  %6455 = vmatmul.bf16.gmra.mxu0 %v6432
  %v6456 = vpop.f32.mrf.mxu0
  %v6457 = vadd.f32 0.0, %v6456
  %v6458 = vpop.f32.mrf.mxu0
  %6459 = vdwg.mxu0
  %v6460 = vadd.f32 %v6416, %v6444
  %v6461 = vadd.f32 %v6417, %v6457
  %v6463 = vperm.slane %v27, 2
  %v6464 = vperm.slane %v27, 6
  %v6467 = vperm.slane %v6463, 2
  %v6468 = vperm.slane %v6464, 2
  %v6469 = vadd.f32 %v6460, %v6467
  %v6470 = vadd.f32 %v6461, %v6468
  %v6471 = vmax.f32 %v6469, 0.0
  %v6472 = vmax.f32 %v6470, 0.0
  %v6473 = vpack.c.bf16 %v6471, %v6471
  %v6474 = vpack.c.bf16 %v6472, %v6472
  %v6475 = vld [vmem:[%s4] sm:$0xf]
  %v6476 = vld [vmem:[%s4 + $0x4] sm:$0xf]
  %v6477 = vld [vmem:[%s4 + $0x8] sm:$0xf]
  %v6478 = vld [vmem:[%s4 + $0xc] sm:$0xf]
  %v6479 = vld [vmem:[%s4 + $0x10] sm:$0xf]
  %v6480 = vld [vmem:[%s4 + $0x14] sm:$0xf]
  %v6481 = vld [vmem:[%s4 + $0x18] sm:$0xf]
  %v6482 = vld [vmem:[%s4 + $0x1c] sm:$0xf]
  %v6483 = vld [vmem:[%s4 + $0x20] sm:$0xf]
  %v6484 = vld [vmem:[%s4 + $0x24] sm:$0xf]
  %v6485 = vld [vmem:[%s4 + $0x28] sm:$0xf]
  %v6486 = vld [vmem:[%s4 + $0x2c] sm:$0xf]
  %v6487 = vld [vmem:[%s4 + $0x30] sm:$0xf]
  %v6488 = vld [vmem:[%s4 + $0x34] sm:$0xf]
  %v6489 = vld [vmem:[%s4 + $0x38] sm:$0xf]
  %v6490 = vld [vmem:[%s4 + $0x3c] sm:$0xf]
  %v6491 = vld [vmem:[%s4 + $0x40] sm:$0xf]
  %v6492 = vld [vmem:[%s4 + $0x44] sm:$0xf]
  %v6493 = vld [vmem:[%s4 + $0x48] sm:$0xf]
  %v6494 = vld [vmem:[%s4 + $0x4c] sm:$0xf]
  %v6495 = vld [vmem:[%s4 + $0x50] sm:$0xf]
  %v6496 = vld [vmem:[%s4 + $0x54] sm:$0xf]
  %v6497 = vld [vmem:[%s4 + $0x58] sm:$0xf]
  %v6498 = vld [vmem:[%s4 + $0x5c] sm:$0xf]
  %v6499 = vld [vmem:[%s4 + $0x60] sm:$0xf]
  %v6500 = vperm.slane %v27, 3
  %v6526 = vunpack.c.l.b16 %v6475
  %v6527 = vunpack.c.l.b16 %v6476
  %v6528 = vunpack.c.l.b16 %v6477
  %v6529 = vunpack.c.l.b16 %v6478
  %v6530 = vunpack.c.l.b16 %v6479
  %v6531 = vunpack.c.l.b16 %v6480
  %v6532 = vunpack.c.l.b16 %v6481
  %v6533 = vunpack.c.l.b16 %v6482
  %v6534 = vunpack.c.l.b16 %v6483
  %v6535 = vunpack.c.l.b16 %v6484
  %v6536 = vunpack.c.l.b16 %v6485
  %v6537 = vunpack.c.l.b16 %v6486
  %v6538 = vunpack.c.l.b16 %v6487
  %v6539 = vunpack.c.l.b16 %v6488
  %v6540 = vunpack.c.l.b16 %v6489
  %v6541 = vunpack.c.l.b16 %v6490
  %v6542 = vunpack.c.l.b16 %v6491
  %v6543 = vunpack.c.l.b16 %v6492
  %v6544 = vunpack.c.l.b16 %v6493
  %v6545 = vunpack.c.l.b16 %v6494
  %v6546 = vunpack.c.l.b16 %v6495
  %v6547 = vunpack.c.l.b16 %v6496
  %v6548 = vunpack.c.l.b16 %v6497
  %v6549 = vunpack.c.l.b16 %v6498
  %v6550 = vunpack.c.l.b16 %v6499
  %v6551 = vpack.c.b16 %v6527, %v6526
  %v6552 = vpack.c.b16 %v6529, %v6528
  %v6553 = vpack.c.b16 %v6531, %v6530
  %v6554 = vpack.c.b16 %v6533, %v6532
  %v6555 = vpack.c.b16 %v6535, %v6534
  %v6556 = vpack.c.b16 %v6537, %v6536
  %v6557 = vpack.c.b16 %v6539, %v6538
  %v6558 = vpack.c.b16 %v6541, %v6540
  %v6559 = vpack.c.b16 %v6543, %v6542
  %v6560 = vpack.c.b16 %v6545, %v6544
  %v6561 = vpack.c.b16 %v6547, %v6546
  %v6562 = vpack.c.b16 %v6549, %v6548
  %v6563 = vpack.c.b16 %v6550, %v6550
  %vm6576 = vcmask 588800
  %v6578 = vsel %vm6576, %v6474, 0
  %vm6580 = vcmask 1043456
  %v6582 = vsel %vm6580, %v6563, 0
  %6584 = vmatpush.bf16.msra.mxu0 %v6558
  %6585 = vmatpush.bf16.msra.mxu0 %v6557
  %6586 = vmatpush.bf16.msra.mxu0 %v6556
  %6587 = vmatpush.bf16.msra.mxu0 %v6555
  %6588 = vmatpush.bf16.msra.mxu0 %v6554
  %6589 = vmatpush.bf16.msra.mxu0 %v6553
  %6590 = vmatpush.bf16.msra.mxu0 %v6552
  %6591 = vmatpush.bf16.msra.mxu0 %v6551
  %6592 = vmatmul.bf16.gmra.mxu0 %v6473
  %v6593 = vpop.f32.mrf.mxu0
  %v6594 = vadd.f32 %v6500, %v6593
  %v6595 = vpop.f32.mrf.mxu0
  %6596 = vdwg.mxu0
  %6597 = vmatpush.bf16.msra.mxu0 0
  %6598 = vmatpush.bf16.msra.mxu0 0
  %6599 = vmatpush.bf16.msra.mxu0 0
  %6600 = vmatpush.bf16.msra.mxu0 %v6582
  %6601 = vmatpush.bf16.msra.mxu0 %v6562
  %6602 = vmatpush.bf16.msra.mxu0 %v6561
  %6603 = vmatpush.bf16.msra.mxu0 %v6560
  %6604 = vmatpush.bf16.msra.mxu0 %v6559
  %6605 = vmatmul.bf16.gmra.mxu0 %v6578
  %v6606 = vpop.f32.mrf.mxu0
  %v6607 = vadd.f32 %v6594, %v6606
  %v6608 = vpop.f32.mrf.mxu0
  %6609 = vdwg.mxu0
  %v6610 = vmax.f32 %v6607, 0.0
  %v6611 = vpack.c.bf16 %v6610, %v6610
  %v6612 = vld [vmem:[%s5] sm:$0xf]
  %v6613 = vld [vmem:[%s5 + $0x4] sm:$0xf]
  %v6614 = vld [vmem:[%s5 + $0x8] sm:$0xf]
  %v6615 = vld [vmem:[%s5 + $0xc] sm:$0x7]
  %v6620 = vunpack.c.l.b16 %v6612
  %v6621 = vunpack.c.l.b16 %v6613
  %v6622 = vunpack.c.l.b16 %v6614
  %v6623 = vunpack.c.l.b16 %v6615
  %v6624 = vpack.c.b16 %v6621, %v6620
  %v6625 = vpack.c.b16 %v6623, %v6622
  %vm6627 = vcmask 244736
  %v6629 = vsel %vm6627, %v6611, 0
  %vm6631 = vcmask 1046528
  %v6633 = vsel %vm6631, %v6625, 0
  %6635 = vmatpush.bf16.msra.mxu0 0
  %6636 = vmatpush.bf16.msra.mxu0 0
  %6637 = vmatpush.bf16.msra.mxu0 0
  %6638 = vmatpush.bf16.msra.mxu0 0
  %6639 = vmatpush.bf16.msra.mxu0 0
  %6640 = vmatpush.bf16.msra.mxu0 0
  %6641 = vmatpush.bf16.msra.mxu0 %v6633
  %6642 = vmatpush.bf16.msra.mxu0 %v6624
  %6643 = vmatmul.bf16.gmra.mxu0 %v6629
  %v6644 = vpop.f32.mrf.mxu0
  %v6645 = vadd.f32 0.0, %v6644
  %v6646 = vpop.f32.mrf.mxu0
  %6647 = vdwg.mxu0
  %6648 = vst [vmem:[%s7] sm:$0xff] %v6645
  // Predicated region
  $region30: #{mnist_forward.1} parent=0 // pred_check
    _
  $region31: #{mnist_forward.1} parent=0 // pred_check_branch
    %6650 = sbr.rel (0) target = $region33
  $region32: #{mnist_forward.1} parent=0 // pred_region
    _
  $region33: #{mnist_forward.1} parent=0 // pred_fallthru
    _
  // Predicated region
  $region34: #{mnist_forward.1} parent=0 // pred_check
    _
  $region35: #{mnist_forward.1} parent=0 // pred_check_branch
    %6652 = sbr.rel (0) target = $region37
  $region36: #{mnist_forward.1} parent=0 // pred_region
    _
  $region37: #{mnist_forward.1} parent=0 // pred_fallthru
    _

</llo_original>
